<compile_context>
chip_gen: v7x
topology: tpu7x:2x2x1
jax: 0.10.0
libtpu: 0.0.40
codegen_flags: <defaults>
</compile_context>

<pallas_src>
import functools

import jax
import jax.numpy as jnp
import numpy as np
from jax.experimental import pallas as pl
from jax.experimental.pallas import tpu as pltpu

LN_EPS = 1e-5


def _layernorm(x, gamma, beta):
    # x: (T, C) f32, gamma/beta: (1, C) f32; biased variance like torch.nn.LayerNorm
    mu = jnp.mean(x, axis=-1, keepdims=True)
    var = jnp.mean((x - mu) ** 2, axis=-1, keepdims=True)
    return (x - mu) * jax.lax.rsqrt(var + LN_EPS) * gamma + beta


# ---------------------------------------------------------------------------
# Fused kernel: visual LayerNorm + L x (LN1 + cross-MHA + residual + LN3 + MLP
# + residual) + alpha scale.  One grid step per batch element.
# ---------------------------------------------------------------------------
def vsp_kernel(text_ref, vis_ref, ng_ref, nb_ref, alpha_ref,
               ln1g_ref, ln1b_ref, ln3g_ref, ln3b_ref,
               wq_ref, wk_ref, wv_ref, wp_ref, bp_ref,
               w1_ref, b1_ref, w2_ref, b2_ref,
               o_ref, *, num_layers, num_heads):
    f32, bf16 = jnp.float32, jnp.bfloat16

    x = text_ref[...].astype(f32)                               # (N, C)
    vis = vis_ref[...].astype(f32)                              # (M, C)

    # visual = self.norm(visual) -- computed once, shared by every decoder layer.
    vis_n = _layernorm(vis, ng_ref[...], nb_ref[...]).astype(bf16)

    for l in range(num_layers):                                 # static unroll (L = 2)
        # ---- cross attention block: x = x + MHA(LN1(x), visual, visual) ----
        xn = _layernorm(x, ln1g_ref[l], ln1b_ref[l]).astype(bf16)
        acc = jnp.zeros_like(x)                                 # (N, C) f32 accumulator
        for h in range(num_heads):                              # static unroll over heads
            # Per-head weight blocks were pre-split offline, so there is no
            # activation slicing, no .T and no concatenate inside the kernel.
            qh = jnp.dot(xn, wq_ref[l, h],                      # scale folded into Wq
                         preferred_element_type=f32).astype(bf16)       # (N, hd)
            kh = jnp.dot(vis_n, wk_ref[l, h],
                         preferred_element_type=f32).astype(bf16)       # (M, hd)
            vh = jnp.dot(vis_n, wv_ref[l, h],
                         preferred_element_type=f32).astype(bf16)       # (M, hd)
            # scores without materializing kh.T: contract the last dims.
            s = jax.lax.dot_general(qh, kh, (((1,), (1,)), ((), ())),
                                    preferred_element_type=f32)          # (N, M)
            s = s - jnp.max(s, axis=-1, keepdims=True)
            p = jnp.exp(s)
            p = p * pl.reciprocal(jnp.sum(p, axis=-1, keepdims=True), approx=True)
            ho = jnp.dot(p.astype(bf16), vh,
                         preferred_element_type=f32).astype(bf16)        # (N, hd)
            # Fold "concat + output projection" into per-head partial projections.
            acc = acc + jnp.dot(ho, wp_ref[l, h], preferred_element_type=f32)  # (N, C)
        x = x + acc + bp_ref[l]                                 # residual + proj bias

        # ---- MLP block: x = x + W2(QuickGELU(W1(LN3(x)))) ----
        xn3 = _layernorm(x, ln3g_ref[l], ln3b_ref[l]).astype(bf16)
        h1 = jnp.dot(xn3, w1_ref[l], preferred_element_type=f32) + b1_ref[l]   # (N, 4C)
        h1 = h1 * jax.nn.sigmoid(1.702 * h1)                    # QuickGELU (f32)
        y = jnp.dot(h1.astype(bf16), w2_ref[l], preferred_element_type=f32) + b2_ref[l]
        x = x + y                                               # residual

    o_ref[...] = (alpha_ref[...] * x).astype(o_ref.dtype)       # self.alpha * text


# ---------------------------------------------------------------------------
# One-time parameter preparation (outside the per-call hot path):
# pre-transpose, split per head, fold attention scale into Wq, cast to bf16.
# ---------------------------------------------------------------------------
def prepare_params(norm_g, norm_b, alpha, layers, *, num_heads):
    C = int(norm_g.shape[0])
    assert C % num_heads == 0, "embed dim must be divisible by num_heads"
    hd = C // num_heads
    scale = hd ** -0.5
    f32, bf16 = jnp.float32, jnp.bfloat16

    def row(p):
        return p.reshape(1, -1).astype(f32)

    def split_heads_in(w, fold_scale=False):
        # w: (out, in) PyTorch Linear layout -> (nh, in, hd): x(in) @ w -> per-head out
        wt = w.T.astype(f32)                                     # (in, out)
        if fold_scale:
            wt = wt * scale
        return wt.reshape(C, num_heads, hd).transpose(1, 0, 2).astype(bf16)

    def split_heads_out(w):
        # proj weight (out=C, in=C) -> (nh, hd, out): head_out(hd) @ w -> full C
        return w.T.astype(f32).reshape(num_heads, hd, C).astype(bf16)

    return {
        "norm_g": row(norm_g), "norm_b": row(norm_b), "alpha": row(alpha),
        "ln1_g": jnp.stack([row(p["ln1_g"]) for p in layers]),
        "ln1_b": jnp.stack([row(p["ln1_b"]) for p in layers]),
        "ln3_g": jnp.stack([row(p["ln3_g"]) for p in layers]),
        "ln3_b": jnp.stack([row(p["ln3_b"]) for p in layers]),
        "wq": jnp.stack([split_heads_in(p["wq"], fold_scale=True) for p in layers]),
        "wk": jnp.stack([split_heads_in(p["wk"]) for p in layers]),
        "wv": jnp.stack([split_heads_in(p["wv"]) for p in layers]),
        "wp": jnp.stack([split_heads_out(p["wp"]) for p in layers]),
        "bp": jnp.stack([row(p["bp"]) for p in layers]),
        "w1": jnp.stack([p["w1"].T.astype(bf16) for p in layers]),   # (L, C, 4C)
        "b1": jnp.stack([row(p["b1"]) for p in layers]),
        "w2": jnp.stack([p["w2"].T.astype(bf16) for p in layers]),   # (L, 4C, C)
        "b2": jnp.stack([row(p["b2"]) for p in layers]),
    }


# ---------------------------------------------------------------------------
# Wrapper: single pallas_call, grid over batch (parallel -> sharded across TCs).
# ---------------------------------------------------------------------------
def video_specific_prompt(text, visual, prep, *, num_heads):
    B, N, C = text.shape
    _, M, _ = visual.shape
    L, nh, _, hd = prep["wq"].shape
    H = prep["w1"].shape[-1]
    assert nh == num_heads

    tok = lambda T: pl.BlockSpec((None, T, C), lambda b: (b, 0, 0))  # batch squeezed

    def rep(shape):  # replicated, grid-invariant full-array block
        n = len(shape)
        return pl.BlockSpec(shape, lambda b, n=n: (0,) * n)

    fn = pl.pallas_call(
        functools.partial(vsp_kernel, num_layers=L, num_heads=num_heads),
        out_shape=jax.ShapeDtypeStruct((B, N, C), jnp.float32),
        grid=(B,),
        in_specs=[
            tok(N),                          # text tokens   (B, N, C)
            tok(M),                          # visual tokens (B, M, C)
            rep((1, C)), rep((1, C)),        # visual-norm gamma / beta
            rep((1, C)),                     # alpha
            rep((L, 1, C)), rep((L, 1, C)),  # ln1 gamma / beta (stacked over layers)
            rep((L, 1, C)), rep((L, 1, C)),  # ln3 gamma / beta
            rep((L, num_heads, C, hd)),      # Wq (scale folded, per head, (in, hd))
            rep((L, num_heads, C, hd)),      # Wk
            rep((L, num_heads, C, hd)),      # Wv
            rep((L, num_heads, hd, C)),      # Wproj (per head, (hd, out))
            rep((L, 1, C)),                  # proj bias
            rep((L, C, H)),                  # W1 (in, 4C)
            rep((L, 1, H)),                  # b1
            rep((L, H, C)),                  # W2 (4C, out)
            rep((L, 1, C)),                  # b2
        ],
        out_specs=tok(N),
        compiler_params=pltpu.CompilerParams(dimension_semantics=("parallel",)),
    )
    return fn(text, visual,
              prep["norm_g"], prep["norm_b"], prep["alpha"],
              prep["ln1_g"], prep["ln1_b"], prep["ln3_g"], prep["ln3_b"],
              prep["wq"], prep["wk"], prep["wv"], prep["wp"], prep["bp"],
              prep["w1"], prep["b1"], prep["w2"], prep["b2"])


# ---------------------------------------------------------------------------
# Pure-JAX f32 reference (mirrors the PyTorch forward exactly)
# ---------------------------------------------------------------------------
def reference(text, visual, norm_g, norm_b, alpha, layers, *, num_heads):
    def ln(z, g, b):
        mu = jnp.mean(z, axis=-1, keepdims=True)
        var = jnp.mean((z - mu) ** 2, axis=-1, keepdims=True)
        return (z - mu) / jnp.sqrt(var + LN_EPS) * g + b

    B, N, C = text.shape
    _, M, _ = visual.shape
    hd = C // num_heads
    scale = hd ** -0.5

    visual = ln(visual, norm_g, norm_b)
    for p in layers:
        qn = ln(text, p["ln1_g"], p["ln1_b"])
        q = qn @ p["wq"].T
        k = visual @ p["wk"].T
        v = visual @ p["wv"].T
        q = q.reshape(B, N, num_heads, hd).transpose(0, 2, 1, 3)
        k = k.reshape(B, M, num_heads, hd).transpose(0, 2, 1, 3)
        v = v.reshape(B, M, num_heads, hd).transpose(0, 2, 1, 3)
        attn = jax.nn.softmax((q @ k.transpose(0, 1, 3, 2)) * scale, axis=-1)
        a = (attn @ v).transpose(0, 2, 1, 3).reshape(B, N, C)
        a = a @ p["wp"].T + p["bp"]
        x1 = text + a
        xn = ln(x1, p["ln3_g"], p["ln3_b"])
        h = xn @ p["w1"].T + p["b1"]
        h = h * jax.nn.sigmoid(1.702 * h)
        y = h @ p["w2"].T + p["b2"]
        text = x1 + y
    return alpha * text


def make_layer_params(key, C):
    H = 4 * C
    ks = jax.random.split(key, 13)
    nrm = lambda k, shape, s: s * jax.random.normal(k, shape, jnp.float32)
    return {
        "ln1_g": 1.0 + nrm(ks[0], (C,), 0.1),
        "ln1_b": nrm(ks[1], (C,), 0.1),
        "ln3_g": 1.0 + nrm(ks[2], (C,), 0.1),
        "ln3_b": nrm(ks[3], (C,), 0.1),
        # nn.Linear weights are (out, in); qkv_bias=False -> no q/k/v bias.
        "wq": nrm(ks[4], (C, C), 0.02),
        "wk": nrm(ks[5], (C, C), 0.02),
        "wv": nrm(ks[6], (C, C), 0.02),
        "wp": nrm(ks[7], (C, C), 0.02),
        "bp": nrm(ks[8], (C,), 0.02),
        "w1": nrm(ks[9], (H, C), 0.02),
        "b1": nrm(ks[10], (H,), 0.02),
        "w2": nrm(ks[11], (C, H), 0.02),
        "b2": nrm(ks[12], (C,), 0.02),
    }


if __name__ == "__main__":
    # Small shapes consistent with the module: head_dim = 64 (nhead = embed_dim // 64),
    # 2 decoder layers, lane-dense C = 128.
    B, N, M, C, L = 2, 8, 16, 128, 2
    num_heads = C // 64

    key = jax.random.PRNGKey(0)
    ks = jax.random.split(key, L + 4)
    layers = [make_layer_params(ks[i], C) for i in range(L)]
    norm_g = 1.0 + 0.1 * jax.random.normal(ks[L], (C,), jnp.float32)
    norm_b = 0.1 * jax.random.normal(ks[L + 1], (C,), jnp.float32)
    alpha = 0.1 * jnp.ones((C,), jnp.float32)   # VideoSpecificPrompt alpha init

    text = jax.random.normal(ks[L + 2], (B, N, C), jnp.float32)
    visual = jax.random.normal(ks[L + 3], (B, M, C), jnp.float32)

    prep = prepare_params(norm_g, norm_b, alpha, layers, num_heads=num_heads)
    out = video_specific_prompt(text, visual, prep, num_heads=num_heads)
    out = jax.block_until_ready(out)

    ref = reference(text, visual, norm_g, norm_b, alpha, layers, num_heads=num_heads)
    # bf16 MXU inputs + approx reciprocal -> relaxed tolerance vs the f32 reference.
    np.testing.assert_allclose(np.asarray(out), np.asarray(ref), rtol=2e-2, atol=5e-3)

    print("KERNEL_OK")
</pallas_src>

<mosaic_0001>
module attributes {stable_mosaic.version = 11 : i64} {
  func.func @vsp_kernel(%arg0: i32, %arg1: memref<1x8x128xf32, #tpu.memory_space<vmem>>, %arg2: memref<1x16x128xf32, #tpu.memory_space<vmem>>, %arg3: memref<1x128xf32, #tpu.memory_space<vmem>>, %arg4: memref<1x128xf32, #tpu.memory_space<vmem>>, %arg5: memref<1x128xf32, #tpu.memory_space<vmem>>, %arg6: memref<2x1x128xf32, #tpu.memory_space<vmem>>, %arg7: memref<2x1x128xf32, #tpu.memory_space<vmem>>, %arg8: memref<2x1x128xf32, #tpu.memory_space<vmem>>, %arg9: memref<2x1x128xf32, #tpu.memory_space<vmem>>, %arg10: memref<2x2x128x64xbf16, #tpu.memory_space<vmem>>, %arg11: memref<2x2x128x64xbf16, #tpu.memory_space<vmem>>, %arg12: memref<2x2x128x64xbf16, #tpu.memory_space<vmem>>, %arg13: memref<2x2x64x128xbf16, #tpu.memory_space<vmem>>, %arg14: memref<2x1x128xf32, #tpu.memory_space<vmem>>, %arg15: memref<2x128x512xbf16, #tpu.memory_space<vmem>>, %arg16: memref<2x1x512xf32, #tpu.memory_space<vmem>>, %arg17: memref<2x512x128xbf16, #tpu.memory_space<vmem>>, %arg18: memref<2x1x128xf32, #tpu.memory_space<vmem>>, %arg19: memref<1x8x128xf32, #tpu.memory_space<vmem>>) attributes {dimension_semantics = [#tpu.dimension_semantics<parallel>], iteration_bounds = array<i64: 2>, scalar_prefetch = 0 : i64, scratch_operands = 0 : i64, tpu.core_type = #tpu.core_type<tc>, window_params = [{transform_indices = @transform_0, window_bounds = array<i64: 1, 8, 128>}, {transform_indices = @transform_1, window_bounds = array<i64: 1, 16, 128>}, {pipeline_mode = #tpu.pipeline_mode<synchronous>, transform_indices = @transform_2, window_bounds = array<i64: 1, 128>}, {pipeline_mode = #tpu.pipeline_mode<synchronous>, transform_indices = @transform_3, window_bounds = array<i64: 1, 128>}, {pipeline_mode = #tpu.pipeline_mode<synchronous>, transform_indices = @transform_4, window_bounds = array<i64: 1, 128>}, {pipeline_mode = #tpu.pipeline_mode<synchronous>, transform_indices = @transform_5, window_bounds = array<i64: 2, 1, 128>}, {pipeline_mode = #tpu.pipeline_mode<synchronous>, transform_indices = @transform_6, window_bounds = array<i64: 2, 1, 128>}, {pipeline_mode = #tpu.pipeline_mode<synchronous>, transform_indices = @transform_7, window_bounds = array<i64: 2, 1, 128>}, {pipeline_mode = #tpu.pipeline_mode<synchronous>, transform_indices = @transform_8, window_bounds = array<i64: 2, 1, 128>}, {pipeline_mode = #tpu.pipeline_mode<synchronous>, transform_indices = @transform_9, window_bounds = array<i64: 2, 2, 128, 64>}, {pipeline_mode = #tpu.pipeline_mode<synchronous>, transform_indices = @transform_10, window_bounds = array<i64: 2, 2, 128, 64>}, {pipeline_mode = #tpu.pipeline_mode<synchronous>, transform_indices = @transform_11, window_bounds = array<i64: 2, 2, 128, 64>}, {pipeline_mode = #tpu.pipeline_mode<synchronous>, transform_indices = @transform_12, window_bounds = array<i64: 2, 2, 64, 128>}, {pipeline_mode = #tpu.pipeline_mode<synchronous>, transform_indices = @transform_13, window_bounds = array<i64: 2, 1, 128>}, {pipeline_mode = #tpu.pipeline_mode<synchronous>, transform_indices = @transform_14, window_bounds = array<i64: 2, 128, 512>}, {pipeline_mode = #tpu.pipeline_mode<synchronous>, transform_indices = @transform_15, window_bounds = array<i64: 2, 1, 512>}, {pipeline_mode = #tpu.pipeline_mode<synchronous>, transform_indices = @transform_16, window_bounds = array<i64: 2, 512, 128>}, {pipeline_mode = #tpu.pipeline_mode<synchronous>, transform_indices = @transform_17, window_bounds = array<i64: 2, 1, 128>}, {transform_indices = @transform_18, window_bounds = array<i64: 1, 8, 128>}]} {
    %c0 = arith.constant 0 : index
    %c0_0 = arith.constant 0 : index
    %c0_1 = arith.constant 0 : index
    %0 = vector.load %arg1[%c0, %c0_0, %c0_1] : memref<1x8x128xf32, #tpu.memory_space<vmem>>, vector<1x8x128xf32>
    %1 = vector.shape_cast %0 : vector<1x8x128xf32> to vector<8x128xf32>
    %c0_2 = arith.constant 0 : index
    %c0_3 = arith.constant 0 : index
    %c0_4 = arith.constant 0 : index
    %2 = vector.load %arg2[%c0_2, %c0_3, %c0_4] : memref<1x16x128xf32, #tpu.memory_space<vmem>>, vector<1x16x128xf32>
    %3 = vector.shape_cast %2 : vector<1x16x128xf32> to vector<16x128xf32>
    %c0_5 = arith.constant 0 : index
    %c0_6 = arith.constant 0 : index
    %4 = vector.load %arg3[%c0_5, %c0_6] : memref<1x128xf32, #tpu.memory_space<vmem>>, vector<1x128xf32>
    %c0_7 = arith.constant 0 : index
    %c0_8 = arith.constant 0 : index
    %5 = vector.load %arg4[%c0_7, %c0_8] : memref<1x128xf32, #tpu.memory_space<vmem>>, vector<1x128xf32>
    %cst = arith.constant dense<0.000000e+00> : vector<16xf32>
    %6 = vector.multi_reduction <add>, %3, %cst [1] : vector<16x128xf32> to vector<16xf32>
    %7 = vector.shape_cast %6 : vector<16xf32> to vector<16x1xf32>
    %cst_9 = arith.constant 1.280000e+02 : f32
    %8 = vector.broadcast %cst_9 : f32 to vector<16x1xf32>
    %9 = arith.divf %7, %8 : vector<16x1xf32>
    %10 = vector.broadcast %9 : vector<16x1xf32> to vector<16x128xf32>
    %11 = arith.subf %3, %10 : vector<16x128xf32>
    %12 = arith.mulf %11, %11 : vector<16x128xf32>
    %cst_10 = arith.constant dense<0.000000e+00> : vector<16xf32>
    %13 = vector.multi_reduction <add>, %12, %cst_10 [1] : vector<16x128xf32> to vector<16xf32>
    %14 = vector.shape_cast %13 : vector<16xf32> to vector<16x1xf32>
    %cst_11 = arith.constant 1.280000e+02 : f32
    %15 = vector.broadcast %cst_11 : f32 to vector<16x1xf32>
    %16 = arith.divf %14, %15 : vector<16x1xf32>
    %17 = vector.broadcast %9 : vector<16x1xf32> to vector<16x128xf32>
    %18 = arith.subf %3, %17 : vector<16x128xf32>
    %cst_12 = arith.constant 9.99999974E-6 : f32
    %19 = vector.broadcast %cst_12 : f32 to vector<16x1xf32>
    %20 = arith.addf %16, %19 : vector<16x1xf32>
    %21 = math.rsqrt %20 : vector<16x1xf32>
    %22 = vector.broadcast %21 : vector<16x1xf32> to vector<16x128xf32>
    %23 = arith.mulf %18, %22 : vector<16x128xf32>
    %24 = vector.broadcast %4 : vector<1x128xf32> to vector<16x128xf32>
    %25 = arith.mulf %23, %24 : vector<16x128xf32>
    %26 = vector.broadcast %5 : vector<1x128xf32> to vector<16x128xf32>
    %27 = arith.addf %25, %26 : vector<16x128xf32>
    %28 = arith.truncf %27 : vector<16x128xf32> to vector<16x128xbf16>
    %c0_13 = arith.constant 0 : index
    %c0_14 = arith.constant 0 : index
    %c0_15 = arith.constant 0 : index
    %29 = vector.load %arg6[%c0_13, %c0_14, %c0_15] : memref<2x1x128xf32, #tpu.memory_space<vmem>>, vector<1x1x128xf32>
    %30 = vector.shape_cast %29 : vector<1x1x128xf32> to vector<1x128xf32>
    %c0_16 = arith.constant 0 : index
    %c0_17 = arith.constant 0 : index
    %c0_18 = arith.constant 0 : index
    %31 = vector.load %arg7[%c0_16, %c0_17, %c0_18] : memref<2x1x128xf32, #tpu.memory_space<vmem>>, vector<1x1x128xf32>
    %32 = vector.shape_cast %31 : vector<1x1x128xf32> to vector<1x128xf32>
    %cst_19 = arith.constant dense<0.000000e+00> : vector<8xf32>
    %33 = vector.multi_reduction <add>, %1, %cst_19 [1] : vector<8x128xf32> to vector<8xf32>
    %34 = vector.shape_cast %33 : vector<8xf32> to vector<8x1xf32>
    %cst_20 = arith.constant 1.280000e+02 : f32
    %35 = vector.broadcast %cst_20 : f32 to vector<8x1xf32>
    %36 = arith.divf %34, %35 : vector<8x1xf32>
    %37 = vector.broadcast %36 : vector<8x1xf32> to vector<8x128xf32>
    %38 = arith.subf %1, %37 : vector<8x128xf32>
    %39 = arith.mulf %38, %38 : vector<8x128xf32>
    %cst_21 = arith.constant dense<0.000000e+00> : vector<8xf32>
    %40 = vector.multi_reduction <add>, %39, %cst_21 [1] : vector<8x128xf32> to vector<8xf32>
    %41 = vector.shape_cast %40 : vector<8xf32> to vector<8x1xf32>
    %cst_22 = arith.constant 1.280000e+02 : f32
    %42 = vector.broadcast %cst_22 : f32 to vector<8x1xf32>
    %43 = arith.divf %41, %42 : vector<8x1xf32>
    %44 = vector.broadcast %36 : vector<8x1xf32> to vector<8x128xf32>
    %45 = arith.subf %1, %44 : vector<8x128xf32>
    %cst_23 = arith.constant 9.99999974E-6 : f32
    %46 = vector.broadcast %cst_23 : f32 to vector<8x1xf32>
    %47 = arith.addf %43, %46 : vector<8x1xf32>
    %48 = math.rsqrt %47 : vector<8x1xf32>
    %49 = vector.broadcast %48 : vector<8x1xf32> to vector<8x128xf32>
    %50 = arith.mulf %45, %49 : vector<8x128xf32>
    %51 = vector.broadcast %30 : vector<1x128xf32> to vector<8x128xf32>
    %52 = arith.mulf %50, %51 : vector<8x128xf32>
    %53 = vector.broadcast %32 : vector<1x128xf32> to vector<8x128xf32>
    %54 = arith.addf %52, %53 : vector<8x128xf32>
    %55 = arith.truncf %54 : vector<8x128xf32> to vector<8x128xbf16>
    %cst_24 = arith.constant 0.000000e+00 : f32
    %56 = vector.broadcast %cst_24 : f32 to vector<8x128xf32>
    %c0_25 = arith.constant 0 : index
    %c0_26 = arith.constant 0 : index
    %c0_27 = arith.constant 0 : index
    %c0_28 = arith.constant 0 : index
    %57 = vector.load %arg10[%c0_25, %c0_26, %c0_27, %c0_28] : memref<2x2x128x64xbf16, #tpu.memory_space<vmem>>, vector<1x1x128x64xbf16>
    %58 = vector.shape_cast %57 : vector<1x1x128x64xbf16> to vector<128x64xbf16>
    %cst_29 = arith.constant dense<0.000000e+00> : vector<8x64xf32>
    %59 = tpu.matmul %55, %58, %cst_29 {dimension_numbers = #tpu.dot_dimension_numbers<[1], [0], [0], [1], [0, 0, 1, 1], [], []>} : vector<8x128xbf16>, vector<128x64xbf16>, vector<8x64xf32> -> vector<8x64xf32>
    %60 = arith.truncf %59 : vector<8x64xf32> to vector<8x64xbf16>
    %c0_30 = arith.constant 0 : index
    %c0_31 = arith.constant 0 : index
    %c0_32 = arith.constant 0 : index
    %c0_33 = arith.constant 0 : index
    %61 = vector.load %arg11[%c0_30, %c0_31, %c0_32, %c0_33] : memref<2x2x128x64xbf16, #tpu.memory_space<vmem>>, vector<1x1x128x64xbf16>
    %62 = vector.shape_cast %61 : vector<1x1x128x64xbf16> to vector<128x64xbf16>
    %cst_34 = arith.constant dense<0.000000e+00> : vector<16x64xf32>
    %63 = tpu.matmul %28, %62, %cst_34 {dimension_numbers = #tpu.dot_dimension_numbers<[1], [0], [0], [1], [0, 0, 1, 1], [], []>} : vector<16x128xbf16>, vector<128x64xbf16>, vector<16x64xf32> -> vector<16x64xf32>
    %64 = arith.truncf %63 : vector<16x64xf32> to vector<16x64xbf16>
    %c0_35 = arith.constant 0 : index
    %c0_36 = arith.constant 0 : index
    %c0_37 = arith.constant 0 : index
    %c0_38 = arith.constant 0 : index
    %65 = vector.load %arg12[%c0_35, %c0_36, %c0_37, %c0_38] : memref<2x2x128x64xbf16, #tpu.memory_space<vmem>>, vector<1x1x128x64xbf16>
    %66 = vector.shape_cast %65 : vector<1x1x128x64xbf16> to vector<128x64xbf16>
    %cst_39 = arith.constant dense<0.000000e+00> : vector<16x64xf32>
    %67 = tpu.matmul %28, %66, %cst_39 {dimension_numbers = #tpu.dot_dimension_numbers<[1], [0], [0], [1], [0, 0, 1, 1], [], []>} : vector<16x128xbf16>, vector<128x64xbf16>, vector<16x64xf32> -> vector<16x64xf32>
    %68 = arith.truncf %67 : vector<16x64xf32> to vector<16x64xbf16>
    %cst_40 = arith.constant dense<0.000000e+00> : vector<8x16xf32>
    %69 = tpu.matmul %60, %64, %cst_40 {dimension_numbers = #tpu.dot_dimension_numbers<[1], [1], [0], [0], [0, 0, 1, 0], [], []>} : vector<8x64xbf16>, vector<16x64xbf16>, vector<8x16xf32> -> vector<8x16xf32>
    %cst_41 = arith.constant dense<0xFF800000> : vector<8xf32>
    %70 = vector.multi_reduction <maximumf>, %69, %cst_41 [1] : vector<8x16xf32> to vector<8xf32>
    %71 = vector.shape_cast %70 : vector<8xf32> to vector<8x1xf32>
    %72 = vector.broadcast %71 : vector<8x1xf32> to vector<8x16xf32>
    %73 = arith.subf %69, %72 : vector<8x16xf32>
    %74 = math.exp %73 : vector<8x16xf32>
    %cst_42 = arith.constant dense<0.000000e+00> : vector<8xf32>
    %75 = vector.multi_reduction <add>, %74, %cst_42 [1] : vector<8x16xf32> to vector<8xf32>
    %76 = vector.shape_cast %75 : vector<8xf32> to vector<8x1xf32>
    %77 = tpu.reciprocal %76 {approx = true} : vector<8x1xf32> -> vector<8x1xf32>
    %78 = vector.broadcast %77 : vector<8x1xf32> to vector<8x16xf32>
    %79 = arith.mulf %74, %78 : vector<8x16xf32>
    %80 = arith.truncf %79 : vector<8x16xf32> to vector<8x16xbf16>
    %cst_43 = arith.constant dense<0.000000e+00> : vector<8x64xf32>
    %81 = tpu.matmul %80, %68, %cst_43 {dimension_numbers = #tpu.dot_dimension_numbers<[1], [0], [0], [1], [0, 0, 1, 1], [], []>} : vector<8x16xbf16>, vector<16x64xbf16>, vector<8x64xf32> -> vector<8x64xf32>
    %82 = arith.truncf %81 : vector<8x64xf32> to vector<8x64xbf16>
    %c0_44 = arith.constant 0 : index
    %c0_45 = arith.constant 0 : index
    %c0_46 = arith.constant 0 : index
    %c0_47 = arith.constant 0 : index
    %83 = vector.load %arg13[%c0_44, %c0_45, %c0_46, %c0_47] : memref<2x2x64x128xbf16, #tpu.memory_space<vmem>>, vector<1x1x64x128xbf16>
    %84 = vector.shape_cast %83 : vector<1x1x64x128xbf16> to vector<64x128xbf16>
    %cst_48 = arith.constant dense<0.000000e+00> : vector<8x128xf32>
    %85 = tpu.matmul %82, %84, %cst_48 {dimension_numbers = #tpu.dot_dimension_numbers<[1], [0], [0], [1], [0, 0, 1, 1], [], []>} : vector<8x64xbf16>, vector<64x128xbf16>, vector<8x128xf32> -> vector<8x128xf32>
    %86 = arith.addf %56, %85 : vector<8x128xf32>
    %c0_49 = arith.constant 0 : index
    %c1 = arith.constant 1 : index
    %c0_50 = arith.constant 0 : index
    %c0_51 = arith.constant 0 : index
    %87 = vector.load %arg10[%c0_49, %c1, %c0_50, %c0_51] : memref<2x2x128x64xbf16, #tpu.memory_space<vmem>>, vector<1x1x128x64xbf16>
    %88 = vector.shape_cast %87 : vector<1x1x128x64xbf16> to vector<128x64xbf16>
    %cst_52 = arith.constant dense<0.000000e+00> : vector<8x64xf32>
    %89 = tpu.matmul %55, %88, %cst_52 {dimension_numbers = #tpu.dot_dimension_numbers<[1], [0], [0], [1], [0, 0, 1, 1], [], []>} : vector<8x128xbf16>, vector<128x64xbf16>, vector<8x64xf32> -> vector<8x64xf32>
    %90 = arith.truncf %89 : vector<8x64xf32> to vector<8x64xbf16>
    %c0_53 = arith.constant 0 : index
    %c1_54 = arith.constant 1 : index
    %c0_55 = arith.constant 0 : index
    %c0_56 = arith.constant 0 : index
    %91 = vector.load %arg11[%c0_53, %c1_54, %c0_55, %c0_56] : memref<2x2x128x64xbf16, #tpu.memory_space<vmem>>, vector<1x1x128x64xbf16>
    %92 = vector.shape_cast %91 : vector<1x1x128x64xbf16> to vector<128x64xbf16>
    %cst_57 = arith.constant dense<0.000000e+00> : vector<16x64xf32>
    %93 = tpu.matmul %28, %92, %cst_57 {dimension_numbers = #tpu.dot_dimension_numbers<[1], [0], [0], [1], [0, 0, 1, 1], [], []>} : vector<16x128xbf16>, vector<128x64xbf16>, vector<16x64xf32> -> vector<16x64xf32>
    %94 = arith.truncf %93 : vector<16x64xf32> to vector<16x64xbf16>
    %c0_58 = arith.constant 0 : index
    %c1_59 = arith.constant 1 : index
    %c0_60 = arith.constant 0 : index
    %c0_61 = arith.constant 0 : index
    %95 = vector.load %arg12[%c0_58, %c1_59, %c0_60, %c0_61] : memref<2x2x128x64xbf16, #tpu.memory_space<vmem>>, vector<1x1x128x64xbf16>
    %96 = vector.shape_cast %95 : vector<1x1x128x64xbf16> to vector<128x64xbf16>
    %cst_62 = arith.constant dense<0.000000e+00> : vector<16x64xf32>
    %97 = tpu.matmul %28, %96, %cst_62 {dimension_numbers = #tpu.dot_dimension_numbers<[1], [0], [0], [1], [0, 0, 1, 1], [], []>} : vector<16x128xbf16>, vector<128x64xbf16>, vector<16x64xf32> -> vector<16x64xf32>
    %98 = arith.truncf %97 : vector<16x64xf32> to vector<16x64xbf16>
    %cst_63 = arith.constant dense<0.000000e+00> : vector<8x16xf32>
    %99 = tpu.matmul %90, %94, %cst_63 {dimension_numbers = #tpu.dot_dimension_numbers<[1], [1], [0], [0], [0, 0, 1, 0], [], []>} : vector<8x64xbf16>, vector<16x64xbf16>, vector<8x16xf32> -> vector<8x16xf32>
    %cst_64 = arith.constant dense<0xFF800000> : vector<8xf32>
    %100 = vector.multi_reduction <maximumf>, %99, %cst_64 [1] : vector<8x16xf32> to vector<8xf32>
    %101 = vector.shape_cast %100 : vector<8xf32> to vector<8x1xf32>
    %102 = vector.broadcast %101 : vector<8x1xf32> to vector<8x16xf32>
    %103 = arith.subf %99, %102 : vector<8x16xf32>
    %104 = math.exp %103 : vector<8x16xf32>
    %cst_65 = arith.constant dense<0.000000e+00> : vector<8xf32>
    %105 = vector.multi_reduction <add>, %104, %cst_65 [1] : vector<8x16xf32> to vector<8xf32>
    %106 = vector.shape_cast %105 : vector<8xf32> to vector<8x1xf32>
    %107 = tpu.reciprocal %106 {approx = true} : vector<8x1xf32> -> vector<8x1xf32>
    %108 = vector.broadcast %107 : vector<8x1xf32> to vector<8x16xf32>
    %109 = arith.mulf %104, %108 : vector<8x16xf32>
    %110 = arith.truncf %109 : vector<8x16xf32> to vector<8x16xbf16>
    %cst_66 = arith.constant dense<0.000000e+00> : vector<8x64xf32>
    %111 = tpu.matmul %110, %98, %cst_66 {dimension_numbers = #tpu.dot_dimension_numbers<[1], [0], [0], [1], [0, 0, 1, 1], [], []>} : vector<8x16xbf16>, vector<16x64xbf16>, vector<8x64xf32> -> vector<8x64xf32>
    %112 = arith.truncf %111 : vector<8x64xf32> to vector<8x64xbf16>
    %c0_67 = arith.constant 0 : index
    %c1_68 = arith.constant 1 : index
    %c0_69 = arith.constant 0 : index
    %c0_70 = arith.constant 0 : index
    %113 = vector.load %arg13[%c0_67, %c1_68, %c0_69, %c0_70] : memref<2x2x64x128xbf16, #tpu.memory_space<vmem>>, vector<1x1x64x128xbf16>
    %114 = vector.shape_cast %113 : vector<1x1x64x128xbf16> to vector<64x128xbf16>
    %cst_71 = arith.constant dense<0.000000e+00> : vector<8x128xf32>
    %115 = tpu.matmul %112, %114, %cst_71 {dimension_numbers = #tpu.dot_dimension_numbers<[1], [0], [0], [1], [0, 0, 1, 1], [], []>} : vector<8x64xbf16>, vector<64x128xbf16>, vector<8x128xf32> -> vector<8x128xf32>
    %116 = arith.addf %86, %115 : vector<8x128xf32>
    %117 = arith.addf %1, %116 : vector<8x128xf32>
    %c0_72 = arith.constant 0 : index
    %c0_73 = arith.constant 0 : index
    %c0_74 = arith.constant 0 : index
    %118 = vector.load %arg14[%c0_72, %c0_73, %c0_74] : memref<2x1x128xf32, #tpu.memory_space<vmem>>, vector<1x1x128xf32>
    %119 = vector.shape_cast %118 : vector<1x1x128xf32> to vector<1x128xf32>
    %120 = vector.broadcast %119 : vector<1x128xf32> to vector<8x128xf32>
    %121 = arith.addf %117, %120 : vector<8x128xf32>
    %c0_75 = arith.constant 0 : index
    %c0_76 = arith.constant 0 : index
    %c0_77 = arith.constant 0 : index
    %122 = vector.load %arg8[%c0_75, %c0_76, %c0_77] : memref<2x1x128xf32, #tpu.memory_space<vmem>>, vector<1x1x128xf32>
    %123 = vector.shape_cast %122 : vector<1x1x128xf32> to vector<1x128xf32>
    %c0_78 = arith.constant 0 : index
    %c0_79 = arith.constant 0 : index
    %c0_80 = arith.constant 0 : index
    %124 = vector.load %arg9[%c0_78, %c0_79, %c0_80] : memref<2x1x128xf32, #tpu.memory_space<vmem>>, vector<1x1x128xf32>
    %125 = vector.shape_cast %124 : vector<1x1x128xf32> to vector<1x128xf32>
    %cst_81 = arith.constant dense<0.000000e+00> : vector<8xf32>
    %126 = vector.multi_reduction <add>, %121, %cst_81 [1] : vector<8x128xf32> to vector<8xf32>
    %127 = vector.shape_cast %126 : vector<8xf32> to vector<8x1xf32>
    %cst_82 = arith.constant 1.280000e+02 : f32
    %128 = vector.broadcast %cst_82 : f32 to vector<8x1xf32>
    %129 = arith.divf %127, %128 : vector<8x1xf32>
    %130 = vector.broadcast %129 : vector<8x1xf32> to vector<8x128xf32>
    %131 = arith.subf %121, %130 : vector<8x128xf32>
    %132 = arith.mulf %131, %131 : vector<8x128xf32>
    %cst_83 = arith.constant dense<0.000000e+00> : vector<8xf32>
    %133 = vector.multi_reduction <add>, %132, %cst_83 [1] : vector<8x128xf32> to vector<8xf32>
    %134 = vector.shape_cast %133 : vector<8xf32> to vector<8x1xf32>
    %cst_84 = arith.constant 1.280000e+02 : f32
    %135 = vector.broadcast %cst_84 : f32 to vector<8x1xf32>
    %136 = arith.divf %134, %135 : vector<8x1xf32>
    %137 = vector.broadcast %129 : vector<8x1xf32> to vector<8x128xf32>
    %138 = arith.subf %121, %137 : vector<8x128xf32>
    %cst_85 = arith.constant 9.99999974E-6 : f32
    %139 = vector.broadcast %cst_85 : f32 to vector<8x1xf32>
    %140 = arith.addf %136, %139 : vector<8x1xf32>
    %141 = math.rsqrt %140 : vector<8x1xf32>
    %142 = vector.broadcast %141 : vector<8x1xf32> to vector<8x128xf32>
    %143 = arith.mulf %138, %142 : vector<8x128xf32>
    %144 = vector.broadcast %123 : vector<1x128xf32> to vector<8x128xf32>
    %145 = arith.mulf %143, %144 : vector<8x128xf32>
    %146 = vector.broadcast %125 : vector<1x128xf32> to vector<8x128xf32>
    %147 = arith.addf %145, %146 : vector<8x128xf32>
    %148 = arith.truncf %147 : vector<8x128xf32> to vector<8x128xbf16>
    %c0_86 = arith.constant 0 : index
    %c0_87 = arith.constant 0 : index
    %c0_88 = arith.constant 0 : index
    %149 = vector.load %arg15[%c0_86, %c0_87, %c0_88] : memref<2x128x512xbf16, #tpu.memory_space<vmem>>, vector<1x128x512xbf16>
    %150 = vector.shape_cast %149 : vector<1x128x512xbf16> to vector<128x512xbf16>
    %cst_89 = arith.constant dense<0.000000e+00> : vector<8x512xf32>
    %151 = tpu.matmul %148, %150, %cst_89 {dimension_numbers = #tpu.dot_dimension_numbers<[1], [0], [0], [1], [0, 0, 1, 1], [], []>} : vector<8x128xbf16>, vector<128x512xbf16>, vector<8x512xf32> -> vector<8x512xf32>
    %c0_90 = arith.constant 0 : index
    %c0_91 = arith.constant 0 : index
    %c0_92 = arith.constant 0 : index
    %152 = vector.load %arg16[%c0_90, %c0_91, %c0_92] : memref<2x1x512xf32, #tpu.memory_space<vmem>>, vector<1x1x512xf32>
    %153 = vector.shape_cast %152 : vector<1x1x512xf32> to vector<1x512xf32>
    %154 = vector.broadcast %153 : vector<1x512xf32> to vector<8x512xf32>
    %155 = arith.addf %151, %154 : vector<8x512xf32>
    %cst_93 = arith.constant 1.702000e+00 : f32
    %156 = vector.broadcast %cst_93 : f32 to vector<8x512xf32>
    %157 = arith.mulf %156, %155 : vector<8x512xf32>
    %158 = arith.negf %157 : vector<8x512xf32>
    %159 = math.exp %158 : vector<8x512xf32>
    %cst_94 = arith.constant 1.000000e+00 : f32
    %160 = vector.broadcast %cst_94 : f32 to vector<8x512xf32>
    %161 = arith.addf %160, %159 : vector<8x512xf32>
    %162 = arith.divf %160, %161 : vector<8x512xf32>
    %163 = arith.mulf %155, %162 : vector<8x512xf32>
    %164 = arith.truncf %163 : vector<8x512xf32> to vector<8x512xbf16>
    %c0_95 = arith.constant 0 : index
    %c0_96 = arith.constant 0 : index
    %c0_97 = arith.constant 0 : index
    %165 = vector.load %arg17[%c0_95, %c0_96, %c0_97] : memref<2x512x128xbf16, #tpu.memory_space<vmem>>, vector<1x512x128xbf16>
    %166 = vector.shape_cast %165 : vector<1x512x128xbf16> to vector<512x128xbf16>
    %cst_98 = arith.constant dense<0.000000e+00> : vector<8x128xf32>
    %167 = tpu.matmul %164, %166, %cst_98 {dimension_numbers = #tpu.dot_dimension_numbers<[1], [0], [0], [1], [0, 0, 1, 1], [], []>} : vector<8x512xbf16>, vector<512x128xbf16>, vector<8x128xf32> -> vector<8x128xf32>
    %c0_99 = arith.constant 0 : index
    %c0_100 = arith.constant 0 : index
    %c0_101 = arith.constant 0 : index
    %168 = vector.load %arg18[%c0_99, %c0_100, %c0_101] : memref<2x1x128xf32, #tpu.memory_space<vmem>>, vector<1x1x128xf32>
    %169 = vector.shape_cast %168 : vector<1x1x128xf32> to vector<1x128xf32>
    %170 = vector.broadcast %169 : vector<1x128xf32> to vector<8x128xf32>
    %171 = arith.addf %167, %170 : vector<8x128xf32>
    %172 = arith.addf %121, %171 : vector<8x128xf32>
    %c1_102 = arith.constant 1 : index
    %c0_103 = arith.constant 0 : index
    %c0_104 = arith.constant 0 : index
    %173 = vector.load %arg6[%c1_102, %c0_103, %c0_104] : memref<2x1x128xf32, #tpu.memory_space<vmem>>, vector<1x1x128xf32>
    %174 = vector.shape_cast %173 : vector<1x1x128xf32> to vector<1x128xf32>
    %c1_105 = arith.constant 1 : index
    %c0_106 = arith.constant 0 : index
    %c0_107 = arith.constant 0 : index
    %175 = vector.load %arg7[%c1_105, %c0_106, %c0_107] : memref<2x1x128xf32, #tpu.memory_space<vmem>>, vector<1x1x128xf32>
    %176 = vector.shape_cast %175 : vector<1x1x128xf32> to vector<1x128xf32>
    %cst_108 = arith.constant dense<0.000000e+00> : vector<8xf32>
    %177 = vector.multi_reduction <add>, %172, %cst_108 [1] : vector<8x128xf32> to vector<8xf32>
    %178 = vector.shape_cast %177 : vector<8xf32> to vector<8x1xf32>
    %cst_109 = arith.constant 1.280000e+02 : f32
    %179 = vector.broadcast %cst_109 : f32 to vector<8x1xf32>
    %180 = arith.divf %178, %179 : vector<8x1xf32>
    %181 = vector.broadcast %180 : vector<8x1xf32> to vector<8x128xf32>
    %182 = arith.subf %172, %181 : vector<8x128xf32>
    %183 = arith.mulf %182, %182 : vector<8x128xf32>
    %cst_110 = arith.constant dense<0.000000e+00> : vector<8xf32>
    %184 = vector.multi_reduction <add>, %183, %cst_110 [1] : vector<8x128xf32> to vector<8xf32>
    %185 = vector.shape_cast %184 : vector<8xf32> to vector<8x1xf32>
    %cst_111 = arith.constant 1.280000e+02 : f32
    %186 = vector.broadcast %cst_111 : f32 to vector<8x1xf32>
    %187 = arith.divf %185, %186 : vector<8x1xf32>
    %188 = vector.broadcast %180 : vector<8x1xf32> to vector<8x128xf32>
    %189 = arith.subf %172, %188 : vector<8x128xf32>
    %cst_112 = arith.constant 9.99999974E-6 : f32
    %190 = vector.broadcast %cst_112 : f32 to vector<8x1xf32>
    %191 = arith.addf %187, %190 : vector<8x1xf32>
    %192 = math.rsqrt %191 : vector<8x1xf32>
    %193 = vector.broadcast %192 : vector<8x1xf32> to vector<8x128xf32>
    %194 = arith.mulf %189, %193 : vector<8x128xf32>
    %195 = vector.broadcast %174 : vector<1x128xf32> to vector<8x128xf32>
    %196 = arith.mulf %194, %195 : vector<8x128xf32>
    %197 = vector.broadcast %176 : vector<1x128xf32> to vector<8x128xf32>
    %198 = arith.addf %196, %197 : vector<8x128xf32>
    %199 = arith.truncf %198 : vector<8x128xf32> to vector<8x128xbf16>
    %cst_113 = arith.constant 0.000000e+00 : f32
    %200 = vector.broadcast %cst_113 : f32 to vector<8x128xf32>
    %c1_114 = arith.constant 1 : index
    %c0_115 = arith.constant 0 : index
    %c0_116 = arith.constant 0 : index
    %c0_117 = arith.constant 0 : index
    %201 = vector.load %arg10[%c1_114, %c0_115, %c0_116, %c0_117] : memref<2x2x128x64xbf16, #tpu.memory_space<vmem>>, vector<1x1x128x64xbf16>
    %202 = vector.shape_cast %201 : vector<1x1x128x64xbf16> to vector<128x64xbf16>
    %cst_118 = arith.constant dense<0.000000e+00> : vector<8x64xf32>
    %203 = tpu.matmul %199, %202, %cst_118 {dimension_numbers = #tpu.dot_dimension_numbers<[1], [0], [0], [1], [0, 0, 1, 1], [], []>} : vector<8x128xbf16>, vector<128x64xbf16>, vector<8x64xf32> -> vector<8x64xf32>
    %204 = arith.truncf %203 : vector<8x64xf32> to vector<8x64xbf16>
    %c1_119 = arith.constant 1 : index
    %c0_120 = arith.constant 0 : index
    %c0_121 = arith.constant 0 : index
    %c0_122 = arith.constant 0 : index
    %205 = vector.load %arg11[%c1_119, %c0_120, %c0_121, %c0_122] : memref<2x2x128x64xbf16, #tpu.memory_space<vmem>>, vector<1x1x128x64xbf16>
    %206 = vector.shape_cast %205 : vector<1x1x128x64xbf16> to vector<128x64xbf16>
    %cst_123 = arith.constant dense<0.000000e+00> : vector<16x64xf32>
    %207 = tpu.matmul %28, %206, %cst_123 {dimension_numbers = #tpu.dot_dimension_numbers<[1], [0], [0], [1], [0, 0, 1, 1], [], []>} : vector<16x128xbf16>, vector<128x64xbf16>, vector<16x64xf32> -> vector<16x64xf32>
    %208 = arith.truncf %207 : vector<16x64xf32> to vector<16x64xbf16>
    %c1_124 = arith.constant 1 : index
    %c0_125 = arith.constant 0 : index
    %c0_126 = arith.constant 0 : index
    %c0_127 = arith.constant 0 : index
    %209 = vector.load %arg12[%c1_124, %c0_125, %c0_126, %c0_127] : memref<2x2x128x64xbf16, #tpu.memory_space<vmem>>, vector<1x1x128x64xbf16>
    %210 = vector.shape_cast %209 : vector<1x1x128x64xbf16> to vector<128x64xbf16>
    %cst_128 = arith.constant dense<0.000000e+00> : vector<16x64xf32>
    %211 = tpu.matmul %28, %210, %cst_128 {dimension_numbers = #tpu.dot_dimension_numbers<[1], [0], [0], [1], [0, 0, 1, 1], [], []>} : vector<16x128xbf16>, vector<128x64xbf16>, vector<16x64xf32> -> vector<16x64xf32>
    %212 = arith.truncf %211 : vector<16x64xf32> to vector<16x64xbf16>
    %cst_129 = arith.constant dense<0.000000e+00> : vector<8x16xf32>
    %213 = tpu.matmul %204, %208, %cst_129 {dimension_numbers = #tpu.dot_dimension_numbers<[1], [1], [0], [0], [0, 0, 1, 0], [], []>} : vector<8x64xbf16>, vector<16x64xbf16>, vector<8x16xf32> -> vector<8x16xf32>
    %cst_130 = arith.constant dense<0xFF800000> : vector<8xf32>
    %214 = vector.multi_reduction <maximumf>, %213, %cst_130 [1] : vector<8x16xf32> to vector<8xf32>
    %215 = vector.shape_cast %214 : vector<8xf32> to vector<8x1xf32>
    %216 = vector.broadcast %215 : vector<8x1xf32> to vector<8x16xf32>
    %217 = arith.subf %213, %216 : vector<8x16xf32>
    %218 = math.exp %217 : vector<8x16xf32>
    %cst_131 = arith.constant dense<0.000000e+00> : vector<8xf32>
    %219 = vector.multi_reduction <add>, %218, %cst_131 [1] : vector<8x16xf32> to vector<8xf32>
    %220 = vector.shape_cast %219 : vector<8xf32> to vector<8x1xf32>
    %221 = tpu.reciprocal %220 {approx = true} : vector<8x1xf32> -> vector<8x1xf32>
    %222 = vector.broadcast %221 : vector<8x1xf32> to vector<8x16xf32>
    %223 = arith.mulf %218, %222 : vector<8x16xf32>
    %224 = arith.truncf %223 : vector<8x16xf32> to vector<8x16xbf16>
    %cst_132 = arith.constant dense<0.000000e+00> : vector<8x64xf32>
    %225 = tpu.matmul %224, %212, %cst_132 {dimension_numbers = #tpu.dot_dimension_numbers<[1], [0], [0], [1], [0, 0, 1, 1], [], []>} : vector<8x16xbf16>, vector<16x64xbf16>, vector<8x64xf32> -> vector<8x64xf32>
    %226 = arith.truncf %225 : vector<8x64xf32> to vector<8x64xbf16>
    %c1_133 = arith.constant 1 : index
    %c0_134 = arith.constant 0 : index
    %c0_135 = arith.constant 0 : index
    %c0_136 = arith.constant 0 : index
    %227 = vector.load %arg13[%c1_133, %c0_134, %c0_135, %c0_136] : memref<2x2x64x128xbf16, #tpu.memory_space<vmem>>, vector<1x1x64x128xbf16>
    %228 = vector.shape_cast %227 : vector<1x1x64x128xbf16> to vector<64x128xbf16>
    %cst_137 = arith.constant dense<0.000000e+00> : vector<8x128xf32>
    %229 = tpu.matmul %226, %228, %cst_137 {dimension_numbers = #tpu.dot_dimension_numbers<[1], [0], [0], [1], [0, 0, 1, 1], [], []>} : vector<8x64xbf16>, vector<64x128xbf16>, vector<8x128xf32> -> vector<8x128xf32>
    %230 = arith.addf %200, %229 : vector<8x128xf32>
    %c1_138 = arith.constant 1 : index
    %c1_139 = arith.constant 1 : index
    %c0_140 = arith.constant 0 : index
    %c0_141 = arith.constant 0 : index
    %231 = vector.load %arg10[%c1_138, %c1_139, %c0_140, %c0_141] : memref<2x2x128x64xbf16, #tpu.memory_space<vmem>>, vector<1x1x128x64xbf16>
    %232 = vector.shape_cast %231 : vector<1x1x128x64xbf16> to vector<128x64xbf16>
    %cst_142 = arith.constant dense<0.000000e+00> : vector<8x64xf32>
    %233 = tpu.matmul %199, %232, %cst_142 {dimension_numbers = #tpu.dot_dimension_numbers<[1], [0], [0], [1], [0, 0, 1, 1], [], []>} : vector<8x128xbf16>, vector<128x64xbf16>, vector<8x64xf32> -> vector<8x64xf32>
    %234 = arith.truncf %233 : vector<8x64xf32> to vector<8x64xbf16>
    %c1_143 = arith.constant 1 : index
    %c1_144 = arith.constant 1 : index
    %c0_145 = arith.constant 0 : index
    %c0_146 = arith.constant 0 : index
    %235 = vector.load %arg11[%c1_143, %c1_144, %c0_145, %c0_146] : memref<2x2x128x64xbf16, #tpu.memory_space<vmem>>, vector<1x1x128x64xbf16>
    %236 = vector.shape_cast %235 : vector<1x1x128x64xbf16> to vector<128x64xbf16>
    %cst_147 = arith.constant dense<0.000000e+00> : vector<16x64xf32>
    %237 = tpu.matmul %28, %236, %cst_147 {dimension_numbers = #tpu.dot_dimension_numbers<[1], [0], [0], [1], [0, 0, 1, 1], [], []>} : vector<16x128xbf16>, vector<128x64xbf16>, vector<16x64xf32> -> vector<16x64xf32>
    %238 = arith.truncf %237 : vector<16x64xf32> to vector<16x64xbf16>
    %c1_148 = arith.constant 1 : index
    %c1_149 = arith.constant 1 : index
    %c0_150 = arith.constant 0 : index
    %c0_151 = arith.constant 0 : index
    %239 = vector.load %arg12[%c1_148, %c1_149, %c0_150, %c0_151] : memref<2x2x128x64xbf16, #tpu.memory_space<vmem>>, vector<1x1x128x64xbf16>
    %240 = vector.shape_cast %239 : vector<1x1x128x64xbf16> to vector<128x64xbf16>
    %cst_152 = arith.constant dense<0.000000e+00> : vector<16x64xf32>
    %241 = tpu.matmul %28, %240, %cst_152 {dimension_numbers = #tpu.dot_dimension_numbers<[1], [0], [0], [1], [0, 0, 1, 1], [], []>} : vector<16x128xbf16>, vector<128x64xbf16>, vector<16x64xf32> -> vector<16x64xf32>
    %242 = arith.truncf %241 : vector<16x64xf32> to vector<16x64xbf16>
    %cst_153 = arith.constant dense<0.000000e+00> : vector<8x16xf32>
    %243 = tpu.matmul %234, %238, %cst_153 {dimension_numbers = #tpu.dot_dimension_numbers<[1], [1], [0], [0], [0, 0, 1, 0], [], []>} : vector<8x64xbf16>, vector<16x64xbf16>, vector<8x16xf32> -> vector<8x16xf32>
    %cst_154 = arith.constant dense<0xFF800000> : vector<8xf32>
    %244 = vector.multi_reduction <maximumf>, %243, %cst_154 [1] : vector<8x16xf32> to vector<8xf32>
    %245 = vector.shape_cast %244 : vector<8xf32> to vector<8x1xf32>
    %246 = vector.broadcast %245 : vector<8x1xf32> to vector<8x16xf32>
    %247 = arith.subf %243, %246 : vector<8x16xf32>
    %248 = math.exp %247 : vector<8x16xf32>
    %cst_155 = arith.constant dense<0.000000e+00> : vector<8xf32>
    %249 = vector.multi_reduction <add>, %248, %cst_155 [1] : vector<8x16xf32> to vector<8xf32>
    %250 = vector.shape_cast %249 : vector<8xf32> to vector<8x1xf32>
    %251 = tpu.reciprocal %250 {approx = true} : vector<8x1xf32> -> vector<8x1xf32>
    %252 = vector.broadcast %251 : vector<8x1xf32> to vector<8x16xf32>
    %253 = arith.mulf %248, %252 : vector<8x16xf32>
    %254 = arith.truncf %253 : vector<8x16xf32> to vector<8x16xbf16>
    %cst_156 = arith.constant dense<0.000000e+00> : vector<8x64xf32>
    %255 = tpu.matmul %254, %242, %cst_156 {dimension_numbers = #tpu.dot_dimension_numbers<[1], [0], [0], [1], [0, 0, 1, 1], [], []>} : vector<8x16xbf16>, vector<16x64xbf16>, vector<8x64xf32> -> vector<8x64xf32>
    %256 = arith.truncf %255 : vector<8x64xf32> to vector<8x64xbf16>
    %c1_157 = arith.constant 1 : index
    %c1_158 = arith.constant 1 : index
    %c0_159 = arith.constant 0 : index
    %c0_160 = arith.constant 0 : index
    %257 = vector.load %arg13[%c1_157, %c1_158, %c0_159, %c0_160] : memref<2x2x64x128xbf16, #tpu.memory_space<vmem>>, vector<1x1x64x128xbf16>
    %258 = vector.shape_cast %257 : vector<1x1x64x128xbf16> to vector<64x128xbf16>
    %cst_161 = arith.constant dense<0.000000e+00> : vector<8x128xf32>
    %259 = tpu.matmul %256, %258, %cst_161 {dimension_numbers = #tpu.dot_dimension_numbers<[1], [0], [0], [1], [0, 0, 1, 1], [], []>} : vector<8x64xbf16>, vector<64x128xbf16>, vector<8x128xf32> -> vector<8x128xf32>
    %260 = arith.addf %230, %259 : vector<8x128xf32>
    %261 = arith.addf %172, %260 : vector<8x128xf32>
    %c1_162 = arith.constant 1 : index
    %c0_163 = arith.constant 0 : index
    %c0_164 = arith.constant 0 : index
    %262 = vector.load %arg14[%c1_162, %c0_163, %c0_164] : memref<2x1x128xf32, #tpu.memory_space<vmem>>, vector<1x1x128xf32>
    %263 = vector.shape_cast %262 : vector<1x1x128xf32> to vector<1x128xf32>
    %264 = vector.broadcast %263 : vector<1x128xf32> to vector<8x128xf32>
    %265 = arith.addf %261, %264 : vector<8x128xf32>
    %c1_165 = arith.constant 1 : index
    %c0_166 = arith.constant 0 : index
    %c0_167 = arith.constant 0 : index
    %266 = vector.load %arg8[%c1_165, %c0_166, %c0_167] : memref<2x1x128xf32, #tpu.memory_space<vmem>>, vector<1x1x128xf32>
    %267 = vector.shape_cast %266 : vector<1x1x128xf32> to vector<1x128xf32>
    %c1_168 = arith.constant 1 : index
    %c0_169 = arith.constant 0 : index
    %c0_170 = arith.constant 0 : index
    %268 = vector.load %arg9[%c1_168, %c0_169, %c0_170] : memref<2x1x128xf32, #tpu.memory_space<vmem>>, vector<1x1x128xf32>
    %269 = vector.shape_cast %268 : vector<1x1x128xf32> to vector<1x128xf32>
    %cst_171 = arith.constant dense<0.000000e+00> : vector<8xf32>
    %270 = vector.multi_reduction <add>, %265, %cst_171 [1] : vector<8x128xf32> to vector<8xf32>
    %271 = vector.shape_cast %270 : vector<8xf32> to vector<8x1xf32>
    %cst_172 = arith.constant 1.280000e+02 : f32
    %272 = vector.broadcast %cst_172 : f32 to vector<8x1xf32>
    %273 = arith.divf %271, %272 : vector<8x1xf32>
    %274 = vector.broadcast %273 : vector<8x1xf32> to vector<8x128xf32>
    %275 = arith.subf %265, %274 : vector<8x128xf32>
    %276 = arith.mulf %275, %275 : vector<8x128xf32>
    %cst_173 = arith.constant dense<0.000000e+00> : vector<8xf32>
    %277 = vector.multi_reduction <add>, %276, %cst_173 [1] : vector<8x128xf32> to vector<8xf32>
    %278 = vector.shape_cast %277 : vector<8xf32> to vector<8x1xf32>
    %cst_174 = arith.constant 1.280000e+02 : f32
    %279 = vector.broadcast %cst_174 : f32 to vector<8x1xf32>
    %280 = arith.divf %278, %279 : vector<8x1xf32>
    %281 = vector.broadcast %273 : vector<8x1xf32> to vector<8x128xf32>
    %282 = arith.subf %265, %281 : vector<8x128xf32>
    %cst_175 = arith.constant 9.99999974E-6 : f32
    %283 = vector.broadcast %cst_175 : f32 to vector<8x1xf32>
    %284 = arith.addf %280, %283 : vector<8x1xf32>
    %285 = math.rsqrt %284 : vector<8x1xf32>
    %286 = vector.broadcast %285 : vector<8x1xf32> to vector<8x128xf32>
    %287 = arith.mulf %282, %286 : vector<8x128xf32>
    %288 = vector.broadcast %267 : vector<1x128xf32> to vector<8x128xf32>
    %289 = arith.mulf %287, %288 : vector<8x128xf32>
    %290 = vector.broadcast %269 : vector<1x128xf32> to vector<8x128xf32>
    %291 = arith.addf %289, %290 : vector<8x128xf32>
    %292 = arith.truncf %291 : vector<8x128xf32> to vector<8x128xbf16>
    %c1_176 = arith.constant 1 : index
    %c0_177 = arith.constant 0 : index
    %c0_178 = arith.constant 0 : index
    %293 = vector.load %arg15[%c1_176, %c0_177, %c0_178] : memref<2x128x512xbf16, #tpu.memory_space<vmem>>, vector<1x128x512xbf16>
    %294 = vector.shape_cast %293 : vector<1x128x512xbf16> to vector<128x512xbf16>
    %cst_179 = arith.constant dense<0.000000e+00> : vector<8x512xf32>
    %295 = tpu.matmul %292, %294, %cst_179 {dimension_numbers = #tpu.dot_dimension_numbers<[1], [0], [0], [1], [0, 0, 1, 1], [], []>} : vector<8x128xbf16>, vector<128x512xbf16>, vector<8x512xf32> -> vector<8x512xf32>
    %c1_180 = arith.constant 1 : index
    %c0_181 = arith.constant 0 : index
    %c0_182 = arith.constant 0 : index
    %296 = vector.load %arg16[%c1_180, %c0_181, %c0_182] : memref<2x1x512xf32, #tpu.memory_space<vmem>>, vector<1x1x512xf32>
    %297 = vector.shape_cast %296 : vector<1x1x512xf32> to vector<1x512xf32>
    %298 = vector.broadcast %297 : vector<1x512xf32> to vector<8x512xf32>
    %299 = arith.addf %295, %298 : vector<8x512xf32>
    %cst_183 = arith.constant 1.702000e+00 : f32
    %300 = vector.broadcast %cst_183 : f32 to vector<8x512xf32>
    %301 = arith.mulf %300, %299 : vector<8x512xf32>
    %302 = arith.negf %301 : vector<8x512xf32>
    %303 = math.exp %302 : vector<8x512xf32>
    %cst_184 = arith.constant 1.000000e+00 : f32
    %304 = vector.broadcast %cst_184 : f32 to vector<8x512xf32>
    %305 = arith.addf %304, %303 : vector<8x512xf32>
    %306 = arith.divf %304, %305 : vector<8x512xf32>
    %307 = arith.mulf %299, %306 : vector<8x512xf32>
    %308 = arith.truncf %307 : vector<8x512xf32> to vector<8x512xbf16>
    %c1_185 = arith.constant 1 : index
    %c0_186 = arith.constant 0 : index
    %c0_187 = arith.constant 0 : index
    %309 = vector.load %arg17[%c1_185, %c0_186, %c0_187] : memref<2x512x128xbf16, #tpu.memory_space<vmem>>, vector<1x512x128xbf16>
    %310 = vector.shape_cast %309 : vector<1x512x128xbf16> to vector<512x128xbf16>
    %cst_188 = arith.constant dense<0.000000e+00> : vector<8x128xf32>
    %311 = tpu.matmul %308, %310, %cst_188 {dimension_numbers = #tpu.dot_dimension_numbers<[1], [0], [0], [1], [0, 0, 1, 1], [], []>} : vector<8x512xbf16>, vector<512x128xbf16>, vector<8x128xf32> -> vector<8x128xf32>
    %c1_189 = arith.constant 1 : index
    %c0_190 = arith.constant 0 : index
    %c0_191 = arith.constant 0 : index
    %312 = vector.load %arg18[%c1_189, %c0_190, %c0_191] : memref<2x1x128xf32, #tpu.memory_space<vmem>>, vector<1x1x128xf32>
    %313 = vector.shape_cast %312 : vector<1x1x128xf32> to vector<1x128xf32>
    %314 = vector.broadcast %313 : vector<1x128xf32> to vector<8x128xf32>
    %315 = arith.addf %311, %314 : vector<8x128xf32>
    %316 = arith.addf %265, %315 : vector<8x128xf32>
    %c0_192 = arith.constant 0 : index
    %c0_193 = arith.constant 0 : index
    %317 = vector.load %arg5[%c0_192, %c0_193] : memref<1x128xf32, #tpu.memory_space<vmem>>, vector<1x128xf32>
    %318 = vector.broadcast %317 : vector<1x128xf32> to vector<8x128xf32>
    %319 = arith.mulf %318, %316 : vector<8x128xf32>
    %c0_194 = arith.constant 0 : index
    %c0_195 = arith.constant 0 : index
    %c0_196 = arith.constant 0 : index
    %320 = vector.load %arg19[%c0_194, %c0_195, %c0_196] : memref<1x8x128xf32, #tpu.memory_space<vmem>>, vector<1x8x128xf32>
    %321 = vector.shape_cast %320 : vector<1x8x128xf32> to vector<8x128xf32>
    %322 = vector.shape_cast %319 : vector<8x128xf32> to vector<1x8x128xf32>
    tpu.vector_store %arg19[%c0_194, %c0_195, %c0_196], %322 {strides = array<i32>} : memref<1x8x128xf32, #tpu.memory_space<vmem>>, vector<1x8x128xf32>,
    return
  }
  func.func @transform_0(%arg0: i32) -> (i32, i32, i32) {
    %c0_i32 = arith.constant 0 : i32
    %c0_i32_0 = arith.constant 0 : i32
    %c0_i32_1 = arith.constant 0 : i32
    return %arg0, %c0_i32, %c0_i32_0 : i32, i32, i32
  }
  func.func @transform_1(%arg0: i32) -> (i32, i32, i32) {
    %c0_i32 = arith.constant 0 : i32
    %c0_i32_0 = arith.constant 0 : i32
    %c0_i32_1 = arith.constant 0 : i32
    return %arg0, %c0_i32, %c0_i32_0 : i32, i32, i32
  }
  func.func @transform_2(%arg0: i32) -> (i32, i32) {
    %c0_i32 = arith.constant 0 : i32
    %c0_i32_0 = arith.constant 0 : i32
    %c0_i32_1 = arith.constant 0 : i32
    return %c0_i32, %c0_i32_0 : i32, i32
  }
  func.func @transform_3(%arg0: i32) -> (i32, i32) {
    %c0_i32 = arith.constant 0 : i32
    %c0_i32_0 = arith.constant 0 : i32
    %c0_i32_1 = arith.constant 0 : i32
    return %c0_i32, %c0_i32_0 : i32, i32
  }
  func.func @transform_4(%arg0: i32) -> (i32, i32) {
    %c0_i32 = arith.constant 0 : i32
    %c0_i32_0 = arith.constant 0 : i32
    %c0_i32_1 = arith.constant 0 : i32
    return %c0_i32, %c0_i32_0 : i32, i32
  }
  func.func @transform_5(%arg0: i32) -> (i32, i32, i32) {
    %c0_i32 = arith.constant 0 : i32
    %c0_i32_0 = arith.constant 0 : i32
    %c0_i32_1 = arith.constant 0 : i32
    %c0_i32_2 = arith.constant 0 : i32
    return %c0_i32, %c0_i32_0, %c0_i32_1 : i32, i32, i32
  }
  func.func @transform_6(%arg0: i32) -> (i32, i32, i32) {
    %c0_i32 = arith.constant 0 : i32
    %c0_i32_0 = arith.constant 0 : i32
    %c0_i32_1 = arith.constant 0 : i32
    %c0_i32_2 = arith.constant 0 : i32
    return %c0_i32, %c0_i32_0, %c0_i32_1 : i32, i32, i32
  }
  func.func @transform_7(%arg0: i32) -> (i32, i32, i32) {
    %c0_i32 = arith.constant 0 : i32
    %c0_i32_0 = arith.constant 0 : i32
    %c0_i32_1 = arith.constant 0 : i32
    %c0_i32_2 = arith.constant 0 : i32
    return %c0_i32, %c0_i32_0, %c0_i32_1 : i32, i32, i32
  }
  func.func @transform_8(%arg0: i32) -> (i32, i32, i32) {
    %c0_i32 = arith.constant 0 : i32
    %c0_i32_0 = arith.constant 0 : i32
    %c0_i32_1 = arith.constant 0 : i32
    %c0_i32_2 = arith.constant 0 : i32
    return %c0_i32, %c0_i32_0, %c0_i32_1 : i32, i32, i32
  }
  func.func @transform_9(%arg0: i32) -> (i32, i32, i32, i32) {
    %c0_i32 = arith.constant 0 : i32
    %c0_i32_0 = arith.constant 0 : i32
    %c0_i32_1 = arith.constant 0 : i32
    %c0_i32_2 = arith.constant 0 : i32
    %c0_i32_3 = arith.constant 0 : i32
    return %c0_i32, %c0_i32_0, %c0_i32_1, %c0_i32_2 : i32, i32, i32, i32
  }
  func.func @transform_10(%arg0: i32) -> (i32, i32, i32, i32) {
    %c0_i32 = arith.constant 0 : i32
    %c0_i32_0 = arith.constant 0 : i32
    %c0_i32_1 = arith.constant 0 : i32
    %c0_i32_2 = arith.constant 0 : i32
    %c0_i32_3 = arith.constant 0 : i32
    return %c0_i32, %c0_i32_0, %c0_i32_1, %c0_i32_2 : i32, i32, i32, i32
  }
  func.func @transform_11(%arg0: i32) -> (i32, i32, i32, i32) {
    %c0_i32 = arith.constant 0 : i32
    %c0_i32_0 = arith.constant 0 : i32
    %c0_i32_1 = arith.constant 0 : i32
    %c0_i32_2 = arith.constant 0 : i32
    %c0_i32_3 = arith.constant 0 : i32
    return %c0_i32, %c0_i32_0, %c0_i32_1, %c0_i32_2 : i32, i32, i32, i32
  }
  func.func @transform_12(%arg0: i32) -> (i32, i32, i32, i32) {
    %c0_i32 = arith.constant 0 : i32
    %c0_i32_0 = arith.constant 0 : i32
    %c0_i32_1 = arith.constant 0 : i32
    %c0_i32_2 = arith.constant 0 : i32
    %c0_i32_3 = arith.constant 0 : i32
    return %c0_i32, %c0_i32_0, %c0_i32_1, %c0_i32_2 : i32, i32, i32, i32
  }
  func.func @transform_13(%arg0: i32) -> (i32, i32, i32) {
    %c0_i32 = arith.constant 0 : i32
    %c0_i32_0 = arith.constant 0 : i32
    %c0_i32_1 = arith.constant 0 : i32
    %c0_i32_2 = arith.constant 0 : i32
    return %c0_i32, %c0_i32_0, %c0_i32_1 : i32, i32, i32
  }
  func.func @transform_14(%arg0: i32) -> (i32, i32, i32) {
    %c0_i32 = arith.constant 0 : i32
    %c0_i32_0 = arith.constant 0 : i32
    %c0_i32_1 = arith.constant 0 : i32
    %c0_i32_2 = arith.constant 0 : i32
    return %c0_i32, %c0_i32_0, %c0_i32_1 : i32, i32, i32
  }
  func.func @transform_15(%arg0: i32) -> (i32, i32, i32) {
    %c0_i32 = arith.constant 0 : i32
    %c0_i32_0 = arith.constant 0 : i32
    %c0_i32_1 = arith.constant 0 : i32
    %c0_i32_2 = arith.constant 0 : i32
    return %c0_i32, %c0_i32_0, %c0_i32_1 : i32, i32, i32
  }
  func.func @transform_16(%arg0: i32) -> (i32, i32, i32) {
    %c0_i32 = arith.constant 0 : i32
    %c0_i32_0 = arith.constant 0 : i32
    %c0_i32_1 = arith.constant 0 : i32
    %c0_i32_2 = arith.constant 0 : i32
    return %c0_i32, %c0_i32_0, %c0_i32_1 : i32, i32, i32
  }
  func.func @transform_17(%arg0: i32) -> (i32, i32, i32) {
    %c0_i32 = arith.constant 0 : i32
    %c0_i32_0 = arith.constant 0 : i32
    %c0_i32_1 = arith.constant 0 : i32
    %c0_i32_2 = arith.constant 0 : i32
    return %c0_i32, %c0_i32_0, %c0_i32_1 : i32, i32, i32
  }
  func.func @transform_18(%arg0: i32) -> (i32, i32, i32) {
    %c0_i32 = arith.constant 0 : i32
    %c0_i32_0 = arith.constant 0 : i32
    %c0_i32_1 = arith.constant 0 : i32
    return %arg0, %c0_i32, %c0_i32_0 : i32, i32, i32
  }
}

</mosaic_0001>

<llo_original>
// kernel: tpu_custom_call.1
$region0: #{tpu_custom_call.1}
  #allocation0 [shape = 'u32[]', space=smem, size = 0x4, offset = 0x4, fixed_abs, tag = 'smem constant byte address 0x4 - core index']
  #allocation1 [shape = 'u32[144,128]{1,0:T(1,128)}', space=vmem, size = 0x12000, scoped, tag = 'internal scratch']
  %s0 = inlined_call_operand.hbm [shape: f32[2,8,128], index: 0, kind: input, shape index: {}]
  %s1 = inlined_call_operand.hbm [shape: f32[2,16,128], index: 1, kind: input, shape index: {}]
  %s2 = inlined_call_operand.vmem [shape: f32[1,128], index: 2, kind: input, shape index: {}]
  %s3 = inlined_call_operand.hbm [shape: f32[1,128], index: 3, kind: input, shape index: {}]
  %s4 = inlined_call_operand.hbm [shape: f32[1,128], index: 4, kind: input, shape index: {}]
  %s5 = inlined_call_operand.vmem [shape: f32[2,1,128], index: 5, kind: input, shape index: {}]
  %s6 = inlined_call_operand.vmem [shape: f32[2,1,128], index: 6, kind: input, shape index: {}]
  %s7 = inlined_call_operand.vmem [shape: f32[2,1,128], index: 7, kind: input, shape index: {}]
  %s8 = inlined_call_operand.vmem [shape: f32[2,1,128], index: 8, kind: input, shape index: {}]
  %s9 = inlined_call_operand.vmem [shape: bf16[2,2,128,64], index: 9, kind: input, shape index: {}]
  %s10 = inlined_call_operand.vmem [shape: bf16[2,2,128,64], index: 10, kind: input, shape index: {}]
  %s11 = inlined_call_operand.vmem [shape: bf16[2,2,128,64], index: 11, kind: input, shape index: {}]
  %s12 = inlined_call_operand.hbm [shape: bf16[2,2,64,128], index: 12, kind: input, shape index: {}]
  %s13 = inlined_call_operand.vmem [shape: f32[2,1,128], index: 13, kind: input, shape index: {}]
  %s14 = inlined_call_operand.vmem [shape: bf16[2,128,512], index: 14, kind: input, shape index: {}]
  %s15 = inlined_call_operand.vmem [shape: f32[2,1,512], index: 15, kind: input, shape index: {}]
  %s16 = inlined_call_operand.vmem [shape: bf16[2,512,128], index: 16, kind: input, shape index: {}]
  %s17 = inlined_call_operand.vmem [shape: f32[2,1,128], index: 17, kind: input, shape index: {}]
  %s18 = inlined_call_operand.hbm [shape: f32[2,8,128], index: 18, kind: output, shape index: {}]
  %s19 = sld [smem:[#allocation0]]
  $region125: #{tpu_custom_call.1} parent=0
    _
  %s21 = ssub.s32 1, %s19
  %s22 = scalar_select 0, %s21, %s19
  $region1: #{tpu_custom_call.1} parent=0
    #allocation2 [shape = 'u8[8192]{0}', space=vmem, size = 0x2000, scoped, tag = 'input window, operand 0']
    #allocation3 [shape = 's32[2]{0}', space=sflag, size = 0x8, scoped, tag = 'scoped memory for tpu_custom_call.1']
    #allocation4 [shape = 's32[2]{0}', space=sflag, size = 0x8, scoped, tag = 'scoped memory for tpu_custom_call.1']
    #allocation5 [shape = 'u8[16384]{0}', space=vmem, size = 0x4000, scoped, tag = 'input window, operand 1']
    #allocation6 [shape = 's32[2]{0}', space=sflag, size = 0x8, scoped, tag = 'scoped memory for tpu_custom_call.1']
    #allocation7 [shape = 'u8[512]{0}', space=vmem, size = 0x400, scoped, tag = 'input window, operand 3, single buffered']
    #allocation8 [shape = 'u8[512]{0}', space=vmem, size = 0x400, scoped, tag = 'input window, operand 4, single buffered']
    #allocation9 [shape = 's32[1]{0}', space=sflag, size = 0x4, scoped, tag = 'scoped memory for tpu_custom_call.1']
    #allocation10 [shape = 'u8[65536]{0}', space=vmem, size = 0x10000, scoped, tag = 'input window, operand 12, single buffered']
    #allocation11 [shape = 'u8[8192]{0}', space=vmem, size = 0x2000, scoped, tag = 'output window, operand 0']
    %23 = vsyncpa [#allocation3], 0
    %s24 = scalar_lea.sflag [#allocation3], 1
    %25 = vsyncpa %s24, 0
    %26 = vsyncpa [#allocation6], 0
    %s27 = scalar_lea.sflag [#allocation6], 1
    %28 = vsyncpa %s27, 0
    %29 = vsyncpa [#allocation9], 0
    %30 = vsyncpa [#allocation4], 0
    %s31 = scalar_lea.sflag [#allocation4], 1
    %32 = vsyncpa %s31, 0
    loop: start=0, step=1, limit=4
    $region2: #{tpu_custom_call.1} parent=1 // loop_pre_header
      _
    $region3: #{tpu_custom_call.1} parent=1 // loop_header
      %s34 = sphi 0, %s38
      %p35 = scmp.ge.s32.totalorder %s34, 4
      %s44 = sphi 0, %s46
      %s47 = sphi 0, %s44
      %s48 = sphi 0, %s47
      %s64 = sphi 0, %s48
      %s70 = sphi 0, %s72
      %s73 = sphi 0, %s70
      %s74 = sphi 0, %s73
      %s90 = sphi 0, %s74
      %s94 = sphi 0, %s94
      %s96 = sphi 0, %s94
      %s97 = sphi 0, %s96
      %s111 = sphi 0, %s97
      %s115 = sphi 0, %s115
      %s117 = sphi 0, %s115
      %s118 = sphi 0, %s117
      %s132 = sphi 0, %s118
      %s136 = sphi 0, %s136
      %s138 = sphi 0, %s136
      %s139 = sphi 0, %s138
      %s153 = sphi 0, %s139
      %s157 = sphi 0, %s157
      %s159 = sphi 0, %s157
      %s160 = sphi 0, %s159
      %s174 = sphi 0, %s160
      %s178 = sphi 0, %s178
      %s180 = sphi 0, %s178
      %s181 = sphi 0, %s180
      %s195 = sphi 0, %s181
      %s199 = sphi 0, %s199
      %s201 = sphi 0, %s199
      %s202 = sphi 0, %s201
      %s216 = sphi 0, %s202
      %s220 = sphi 0, %s220
      %s222 = sphi 0, %s220
      %s223 = sphi 0, %s222
      %s237 = sphi 0, %s223
      %s241 = sphi 0, %s241
      %s243 = sphi 0, %s241
      %s244 = sphi 0, %s243
      %s258 = sphi 0, %s244
      %s262 = sphi 0, %s262
      %s264 = sphi 0, %s262
      %s265 = sphi 0, %s264
      %s279 = sphi 0, %s265
      %s283 = sphi 0, %s283
      %s285 = sphi 0, %s283
      %s286 = sphi 0, %s285
      %s300 = sphi 0, %s286
      %s304 = sphi 0, %s304
      %s306 = sphi 0, %s304
      %s307 = sphi 0, %s306
      %s321 = sphi 0, %s307
      %s325 = sphi 0, %s325
      %s327 = sphi 0, %s325
      %s328 = sphi 0, %s327
      %s342 = sphi 0, %s328
      %s346 = sphi 0, %s346
      %s348 = sphi 0, %s346
      %s349 = sphi 0, %s348
      %s363 = sphi 0, %s349
      %s367 = sphi 0, %s367
      %s369 = sphi 0, %s367
      %s370 = sphi 0, %s369
      %s384 = sphi 0, %s370
      %s388 = sphi 0, %s388
      %s390 = sphi 0, %s388
      %s391 = sphi 0, %s390
      %s405 = sphi 0, %s391
      %s409 = sphi 0, %s409
      %s411 = sphi 0, %s409
      %s412 = sphi 0, %s411
      %s426 = sphi 0, %s412
      %s432 = sphi 0, %s434
      %s435 = sphi 0, %s432
      %s436 = sphi 0, %s435
      %s452 = sphi 0, %s436
    $region4: #{tpu_custom_call.1} parent=1 // loop_header_branch
      %37 = sbr.rel (%p35) target = $region8
    $region5: #{tpu_custom_call.1} parent=1 // loop_body
      %s39 = ssub.s32 %s34, 1
      %s40 = ssub.s32 %s34, 2
      %s41 = sadd.s32 %s34, 1
      %s42 = ssub.s32 %s34, %s41
      %p43 = scmp.eq.s32.totalorder %s42, 0
      %s45 = sadd.s32 %s44, 1
      %s46 = scalar_select %p43, %s44, %s45
      %p49 = pneg %p43
      %p50 = scmp.eq.s32.totalorder %s34, 1
      %p51 = por %p49, %p50
      %p52 = scmp.ne.s32.totalorder %s44, %s47
      %p53 = scmp.eq.s32.totalorder %s34, 0
      %p54 = por %p52, %p53
      %p55 = scmp.ne.s32.totalorder %s44, %s47
      %p56 = scmp.eq.s32.totalorder %s39, 1
      %p57 = por %p55, %p56
      %p58 = scmp.ne.s32.totalorder %s47, %s48
      %p59 = scmp.eq.s32.totalorder %s39, 0
      %p60 = por %p58, %p59
      %p61 = scmp.ne.s32.totalorder %s47, %s48
      %p62 = scmp.eq.s32.totalorder %s40, 1
      %p63 = por %p61, %p62
      %p65 = scmp.ne.s32.totalorder %s48, %s64
      %p66 = scmp.eq.s32.totalorder %s40, 0
      %p67 = por %p65, %p66
      %s68 = ssub.s32 %s34, %s41
      %p69 = scmp.eq.s32.totalorder %s68, 0
      %s71 = sadd.s32 %s70, 1
      %s72 = scalar_select %p69, %s70, %s71
      %p75 = pneg %p69
      %p76 = scmp.eq.s32.totalorder %s34, 1
      %p77 = por %p75, %p76
      %p78 = scmp.ne.s32.totalorder %s70, %s73
      %p79 = scmp.eq.s32.totalorder %s34, 0
      %p80 = por %p78, %p79
      %p81 = scmp.ne.s32.totalorder %s70, %s73
      %p82 = scmp.eq.s32.totalorder %s39, 1
      %p83 = por %p81, %p82
      %p84 = scmp.ne.s32.totalorder %s73, %s74
      %p85 = scmp.eq.s32.totalorder %s39, 0
      %p86 = por %p84, %p85
      %p87 = scmp.ne.s32.totalorder %s73, %s74
      %p88 = scmp.eq.s32.totalorder %s40, 1
      %p89 = por %p87, %p88
      %p91 = scmp.ne.s32.totalorder %s74, %s90
      %p92 = scmp.eq.s32.totalorder %s40, 0
      %p93 = por %p91, %p92
      %s95 = sadd.s32 %s94, 1
      %p98 = scmp.eq.s32.totalorder %s34, 1
      %p99 = scmp.ne.s32.totalorder %s94, %s96
      %p100 = scmp.eq.s32.totalorder %s34, 0
      %p101 = por %p99, %p100
      %p102 = scmp.ne.s32.totalorder %s94, %s96
      %p103 = scmp.eq.s32.totalorder %s39, 1
      %p104 = por %p102, %p103
      %p105 = scmp.ne.s32.totalorder %s96, %s97
      %p106 = scmp.eq.s32.totalorder %s39, 0
      %p107 = por %p105, %p106
      %p108 = scmp.ne.s32.totalorder %s96, %s97
      %p109 = scmp.eq.s32.totalorder %s40, 1
      %p110 = por %p108, %p109
      %p112 = scmp.ne.s32.totalorder %s97, %s111
      %p113 = scmp.eq.s32.totalorder %s40, 0
      %p114 = por %p112, %p113
      %s116 = sadd.s32 %s115, 1
      %p119 = scmp.eq.s32.totalorder %s34, 1
      %p120 = scmp.ne.s32.totalorder %s115, %s117
      %p121 = scmp.eq.s32.totalorder %s34, 0
      %p122 = por %p120, %p121
      %p123 = scmp.ne.s32.totalorder %s115, %s117
      %p124 = scmp.eq.s32.totalorder %s39, 1
      %p125 = por %p123, %p124
      %p126 = scmp.ne.s32.totalorder %s117, %s118
      %p127 = scmp.eq.s32.totalorder %s39, 0
      %p128 = por %p126, %p127
      %p129 = scmp.ne.s32.totalorder %s117, %s118
      %p130 = scmp.eq.s32.totalorder %s40, 1
      %p131 = por %p129, %p130
      %p133 = scmp.ne.s32.totalorder %s118, %s132
      %p134 = scmp.eq.s32.totalorder %s40, 0
      %p135 = por %p133, %p134
      %s137 = sadd.s32 %s136, 1
      %p140 = scmp.eq.s32.totalorder %s34, 1
      %p141 = scmp.ne.s32.totalorder %s136, %s138
      %p142 = scmp.eq.s32.totalorder %s34, 0
      %p143 = por %p141, %p142
      %p144 = scmp.ne.s32.totalorder %s136, %s138
      %p145 = scmp.eq.s32.totalorder %s39, 1
      %p146 = por %p144, %p145
      %p147 = scmp.ne.s32.totalorder %s138, %s139
      %p148 = scmp.eq.s32.totalorder %s39, 0
      %p149 = por %p147, %p148
      %p150 = scmp.ne.s32.totalorder %s138, %s139
      %p151 = scmp.eq.s32.totalorder %s40, 1
      %p152 = por %p150, %p151
      %p154 = scmp.ne.s32.totalorder %s139, %s153
      %p155 = scmp.eq.s32.totalorder %s40, 0
      %p156 = por %p154, %p155
      %s158 = sadd.s32 %s157, 1
      %p161 = scmp.eq.s32.totalorder %s34, 1
      %p162 = scmp.ne.s32.totalorder %s157, %s159
      %p163 = scmp.eq.s32.totalorder %s34, 0
      %p164 = por %p162, %p163
      %p165 = scmp.ne.s32.totalorder %s157, %s159
      %p166 = scmp.eq.s32.totalorder %s39, 1
      %p167 = por %p165, %p166
      %p168 = scmp.ne.s32.totalorder %s159, %s160
      %p169 = scmp.eq.s32.totalorder %s39, 0
      %p170 = por %p168, %p169
      %p171 = scmp.ne.s32.totalorder %s159, %s160
      %p172 = scmp.eq.s32.totalorder %s40, 1
      %p173 = por %p171, %p172
      %p175 = scmp.ne.s32.totalorder %s160, %s174
      %p176 = scmp.eq.s32.totalorder %s40, 0
      %p177 = por %p175, %p176
      %s179 = sadd.s32 %s178, 1
      %p182 = scmp.eq.s32.totalorder %s34, 1
      %p183 = scmp.ne.s32.totalorder %s178, %s180
      %p184 = scmp.eq.s32.totalorder %s34, 0
      %p185 = por %p183, %p184
      %p186 = scmp.ne.s32.totalorder %s178, %s180
      %p187 = scmp.eq.s32.totalorder %s39, 1
      %p188 = por %p186, %p187
      %p189 = scmp.ne.s32.totalorder %s180, %s181
      %p190 = scmp.eq.s32.totalorder %s39, 0
      %p191 = por %p189, %p190
      %p192 = scmp.ne.s32.totalorder %s180, %s181
      %p193 = scmp.eq.s32.totalorder %s40, 1
      %p194 = por %p192, %p193
      %p196 = scmp.ne.s32.totalorder %s181, %s195
      %p197 = scmp.eq.s32.totalorder %s40, 0
      %p198 = por %p196, %p197
      %s200 = sadd.s32 %s199, 1
      %p203 = scmp.eq.s32.totalorder %s34, 1
      %p204 = scmp.ne.s32.totalorder %s199, %s201
      %p205 = scmp.eq.s32.totalorder %s34, 0
      %p206 = por %p204, %p205
      %p207 = scmp.ne.s32.totalorder %s199, %s201
      %p208 = scmp.eq.s32.totalorder %s39, 1
      %p209 = por %p207, %p208
      %p210 = scmp.ne.s32.totalorder %s201, %s202
      %p211 = scmp.eq.s32.totalorder %s39, 0
      %p212 = por %p210, %p211
      %p213 = scmp.ne.s32.totalorder %s201, %s202
      %p214 = scmp.eq.s32.totalorder %s40, 1
      %p215 = por %p213, %p214
      %p217 = scmp.ne.s32.totalorder %s202, %s216
      %p218 = scmp.eq.s32.totalorder %s40, 0
      %p219 = por %p217, %p218
      %s221 = sadd.s32 %s220, 1
      %p224 = scmp.eq.s32.totalorder %s34, 1
      %p225 = scmp.ne.s32.totalorder %s220, %s222
      %p226 = scmp.eq.s32.totalorder %s34, 0
      %p227 = por %p225, %p226
      %p228 = scmp.ne.s32.totalorder %s220, %s222
      %p229 = scmp.eq.s32.totalorder %s39, 1
      %p230 = por %p228, %p229
      %p231 = scmp.ne.s32.totalorder %s222, %s223
      %p232 = scmp.eq.s32.totalorder %s39, 0
      %p233 = por %p231, %p232
      %p234 = scmp.ne.s32.totalorder %s222, %s223
      %p235 = scmp.eq.s32.totalorder %s40, 1
      %p236 = por %p234, %p235
      %p238 = scmp.ne.s32.totalorder %s223, %s237
      %p239 = scmp.eq.s32.totalorder %s40, 0
      %p240 = por %p238, %p239
      %s242 = sadd.s32 %s241, 1
      %p245 = scmp.eq.s32.totalorder %s34, 1
      %p246 = scmp.ne.s32.totalorder %s241, %s243
      %p247 = scmp.eq.s32.totalorder %s34, 0
      %p248 = por %p246, %p247
      %p249 = scmp.ne.s32.totalorder %s241, %s243
      %p250 = scmp.eq.s32.totalorder %s39, 1
      %p251 = por %p249, %p250
      %p252 = scmp.ne.s32.totalorder %s243, %s244
      %p253 = scmp.eq.s32.totalorder %s39, 0
      %p254 = por %p252, %p253
      %p255 = scmp.ne.s32.totalorder %s243, %s244
      %p256 = scmp.eq.s32.totalorder %s40, 1
      %p257 = por %p255, %p256
      %p259 = scmp.ne.s32.totalorder %s244, %s258
      %p260 = scmp.eq.s32.totalorder %s40, 0
      %p261 = por %p259, %p260
      %s263 = sadd.s32 %s262, 1
      %p266 = scmp.eq.s32.totalorder %s34, 1
      %p267 = scmp.ne.s32.totalorder %s262, %s264
      %p268 = scmp.eq.s32.totalorder %s34, 0
      %p269 = por %p267, %p268
      %p270 = scmp.ne.s32.totalorder %s262, %s264
      %p271 = scmp.eq.s32.totalorder %s39, 1
      %p272 = por %p270, %p271
      %p273 = scmp.ne.s32.totalorder %s264, %s265
      %p274 = scmp.eq.s32.totalorder %s39, 0
      %p275 = por %p273, %p274
      %p276 = scmp.ne.s32.totalorder %s264, %s265
      %p277 = scmp.eq.s32.totalorder %s40, 1
      %p278 = por %p276, %p277
      %p280 = scmp.ne.s32.totalorder %s265, %s279
      %p281 = scmp.eq.s32.totalorder %s40, 0
      %p282 = por %p280, %p281
      %s284 = sadd.s32 %s283, 1
      %p287 = scmp.eq.s32.totalorder %s34, 1
      %p288 = scmp.ne.s32.totalorder %s283, %s285
      %p289 = scmp.eq.s32.totalorder %s34, 0
      %p290 = por %p288, %p289
      %p291 = scmp.ne.s32.totalorder %s283, %s285
      %p292 = scmp.eq.s32.totalorder %s39, 1
      %p293 = por %p291, %p292
      %p294 = scmp.ne.s32.totalorder %s285, %s286
      %p295 = scmp.eq.s32.totalorder %s39, 0
      %p296 = por %p294, %p295
      %p297 = scmp.ne.s32.totalorder %s285, %s286
      %p298 = scmp.eq.s32.totalorder %s40, 1
      %p299 = por %p297, %p298
      %p301 = scmp.ne.s32.totalorder %s286, %s300
      %p302 = scmp.eq.s32.totalorder %s40, 0
      %p303 = por %p301, %p302
      %s305 = sadd.s32 %s304, 1
      %p308 = scmp.eq.s32.totalorder %s34, 1
      %p309 = scmp.ne.s32.totalorder %s304, %s306
      %p310 = scmp.eq.s32.totalorder %s34, 0
      %p311 = por %p309, %p310
      %p312 = scmp.ne.s32.totalorder %s304, %s306
      %p313 = scmp.eq.s32.totalorder %s39, 1
      %p314 = por %p312, %p313
      %p315 = scmp.ne.s32.totalorder %s306, %s307
      %p316 = scmp.eq.s32.totalorder %s39, 0
      %p317 = por %p315, %p316
      %p318 = scmp.ne.s32.totalorder %s306, %s307
      %p319 = scmp.eq.s32.totalorder %s40, 1
      %p320 = por %p318, %p319
      %p322 = scmp.ne.s32.totalorder %s307, %s321
      %p323 = scmp.eq.s32.totalorder %s40, 0
      %p324 = por %p322, %p323
      %s326 = sadd.s32 %s325, 1
      %p329 = scmp.eq.s32.totalorder %s34, 1
      %p330 = scmp.ne.s32.totalorder %s325, %s327
      %p331 = scmp.eq.s32.totalorder %s34, 0
      %p332 = por %p330, %p331
      %p333 = scmp.ne.s32.totalorder %s325, %s327
      %p334 = scmp.eq.s32.totalorder %s39, 1
      %p335 = por %p333, %p334
      %p336 = scmp.ne.s32.totalorder %s327, %s328
      %p337 = scmp.eq.s32.totalorder %s39, 0
      %p338 = por %p336, %p337
      %p339 = scmp.ne.s32.totalorder %s327, %s328
      %p340 = scmp.eq.s32.totalorder %s40, 1
      %p341 = por %p339, %p340
      %p343 = scmp.ne.s32.totalorder %s328, %s342
      %p344 = scmp.eq.s32.totalorder %s40, 0
      %p345 = por %p343, %p344
      %s347 = sadd.s32 %s346, 1
      %p350 = scmp.eq.s32.totalorder %s34, 1
      %p351 = scmp.ne.s32.totalorder %s346, %s348
      %p352 = scmp.eq.s32.totalorder %s34, 0
      %p353 = por %p351, %p352
      %p354 = scmp.ne.s32.totalorder %s346, %s348
      %p355 = scmp.eq.s32.totalorder %s39, 1
      %p356 = por %p354, %p355
      %p357 = scmp.ne.s32.totalorder %s348, %s349
      %p358 = scmp.eq.s32.totalorder %s39, 0
      %p359 = por %p357, %p358
      %p360 = scmp.ne.s32.totalorder %s348, %s349
      %p361 = scmp.eq.s32.totalorder %s40, 1
      %p362 = por %p360, %p361
      %p364 = scmp.ne.s32.totalorder %s349, %s363
      %p365 = scmp.eq.s32.totalorder %s40, 0
      %p366 = por %p364, %p365
      %s368 = sadd.s32 %s367, 1
      %p371 = scmp.eq.s32.totalorder %s34, 1
      %p372 = scmp.ne.s32.totalorder %s367, %s369
      %p373 = scmp.eq.s32.totalorder %s34, 0
      %p374 = por %p372, %p373
      %p375 = scmp.ne.s32.totalorder %s367, %s369
      %p376 = scmp.eq.s32.totalorder %s39, 1
      %p377 = por %p375, %p376
      %p378 = scmp.ne.s32.totalorder %s369, %s370
      %p379 = scmp.eq.s32.totalorder %s39, 0
      %p380 = por %p378, %p379
      %p381 = scmp.ne.s32.totalorder %s369, %s370
      %p382 = scmp.eq.s32.totalorder %s40, 1
      %p383 = por %p381, %p382
      %p385 = scmp.ne.s32.totalorder %s370, %s384
      %p386 = scmp.eq.s32.totalorder %s40, 0
      %p387 = por %p385, %p386
      %s389 = sadd.s32 %s388, 1
      %p392 = scmp.eq.s32.totalorder %s34, 1
      %p393 = scmp.ne.s32.totalorder %s388, %s390
      %p394 = scmp.eq.s32.totalorder %s34, 0
      %p395 = por %p393, %p394
      %p396 = scmp.ne.s32.totalorder %s388, %s390
      %p397 = scmp.eq.s32.totalorder %s39, 1
      %p398 = por %p396, %p397
      %p399 = scmp.ne.s32.totalorder %s390, %s391
      %p400 = scmp.eq.s32.totalorder %s39, 0
      %p401 = por %p399, %p400
      %p402 = scmp.ne.s32.totalorder %s390, %s391
      %p403 = scmp.eq.s32.totalorder %s40, 1
      %p404 = por %p402, %p403
      %p406 = scmp.ne.s32.totalorder %s391, %s405
      %p407 = scmp.eq.s32.totalorder %s40, 0
      %p408 = por %p406, %p407
      %s410 = sadd.s32 %s409, 1
      %p413 = scmp.eq.s32.totalorder %s34, 1
      %p414 = scmp.ne.s32.totalorder %s409, %s411
      %p415 = scmp.eq.s32.totalorder %s34, 0
      %p416 = por %p414, %p415
      %p417 = scmp.ne.s32.totalorder %s409, %s411
      %p418 = scmp.eq.s32.totalorder %s39, 1
      %p419 = por %p417, %p418
      %p420 = scmp.ne.s32.totalorder %s411, %s412
      %p421 = scmp.eq.s32.totalorder %s39, 0
      %p422 = por %p420, %p421
      %p423 = scmp.ne.s32.totalorder %s411, %s412
      %p424 = scmp.eq.s32.totalorder %s40, 1
      %p425 = por %p423, %p424
      %p427 = scmp.ne.s32.totalorder %s412, %s426
      %p428 = scmp.eq.s32.totalorder %s40, 0
      %p429 = por %p427, %p428
      %s430 = ssub.s32 %s34, %s41
      %p431 = scmp.eq.s32.totalorder %s430, 0
      %s433 = sadd.s32 %s432, 1
      %s434 = scalar_select %p431, %s432, %s433
      %p437 = pneg %p431
      %p438 = scmp.eq.s32.totalorder %s34, 1
      %p439 = por %p437, %p438
      %p440 = scmp.ne.s32.totalorder %s432, %s435
      %p441 = scmp.eq.s32.totalorder %s34, 0
      %p442 = por %p440, %p441
      %p443 = scmp.ne.s32.totalorder %s432, %s435
      %p444 = scmp.eq.s32.totalorder %s39, 1
      %p445 = por %p443, %p444
      %p446 = scmp.ne.s32.totalorder %s435, %s436
      %p447 = scmp.eq.s32.totalorder %s39, 0
      %p448 = por %p446, %p447
      %p449 = scmp.ne.s32.totalorder %s435, %s436
      %p450 = scmp.eq.s32.totalorder %s40, 1
      %p451 = por %p449, %p450
      %p453 = scmp.ne.s32.totalorder %s436, %s452
      %p454 = scmp.eq.s32.totalorder %s40, 0
      %p455 = por %p453, %p454
      %p456 = scmp.le.s32.totalorder 1, %s34
      %p457 = scmp.lt.s32.totalorder %s34, 3
      %p458 = pnand %p456, %p457
      %p459 = pneg %p458
      // Predicated region
      $region9: #{tpu_custom_call.1} parent=5 // pred_check
        _
      $region10: #{tpu_custom_call.1} parent=5 // pred_check_branch
        %461 = sbr.rel (%p458) target = $region12
      $region11: #{tpu_custom_call.1} parent=5 // pred_region
        %s462 = ssub.s32 %s34, 1
        // Predicated region
        $region13: #{tpu_custom_call.1} parent=11 // pred_check
          %p463 = pneg %p107
        $region14: #{tpu_custom_call.1} parent=11 // pred_check_branch
          %465 = sbr.rel (%p463) target = $region16
        $region15: #{tpu_custom_call.1} parent=11 // pred_region
          _
        $region16: #{tpu_custom_call.1} parent=11 // pred_fallthru
          _
        // Predicated region
        $region17: #{tpu_custom_call.1} parent=11 // pred_check
          %p466 = pneg %p128
        $region18: #{tpu_custom_call.1} parent=11 // pred_check_branch
          %468 = sbr.rel (%p466) target = $region20
        $region19: #{tpu_custom_call.1} parent=11 // pred_region
          %s470 = ssub.s32 16, 16
          %471 = vsyncadd [#allocation6], %s470
          %s473 = sshll.u32 [#allocation7], 4
          %s474 = int_to_ptr.vmem [resolvable:$true] %s473
          %476 = dma.hbm_to_vmem [thread:$0]  %s3, 16, %s474, [#allocation6]
        $region20: #{tpu_custom_call.1} parent=11 // pred_fallthru
          _
        // Predicated region
        $region21: #{tpu_custom_call.1} parent=11 // pred_check
          %p477 = pneg %p149
        $region22: #{tpu_custom_call.1} parent=11 // pred_check_branch
          %479 = sbr.rel (%p477) target = $region24
        $region23: #{tpu_custom_call.1} parent=11 // pred_region
          %s481 = ssub.s32 16, 16
          %482 = vsyncadd [#allocation9], %s481
          %s484 = sshll.u32 [#allocation8], 4
          %s485 = int_to_ptr.vmem [resolvable:$true] %s484
          %487 = dma.hbm_to_vmem [thread:$0]  %s4, 16, %s485, [#allocation9]
        $region24: #{tpu_custom_call.1} parent=11 // pred_fallthru
          _
        // Predicated region
        $region25: #{tpu_custom_call.1} parent=11 // pred_check
          %p488 = pneg %p170
        $region26: #{tpu_custom_call.1} parent=11 // pred_check_branch
          %490 = sbr.rel (%p488) target = $region28
        $region27: #{tpu_custom_call.1} parent=11 // pred_region
          _
        $region28: #{tpu_custom_call.1} parent=11 // pred_fallthru
          _
        // Predicated region
        $region29: #{tpu_custom_call.1} parent=11 // pred_check
          %p491 = pneg %p191
        $region30: #{tpu_custom_call.1} parent=11 // pred_check_branch
          %493 = sbr.rel (%p491) target = $region32
        $region31: #{tpu_custom_call.1} parent=11 // pred_region
          _
        $region32: #{tpu_custom_call.1} parent=11 // pred_fallthru
          _
        // Predicated region
        $region33: #{tpu_custom_call.1} parent=11 // pred_check
          %p494 = pneg %p212
        $region34: #{tpu_custom_call.1} parent=11 // pred_check_branch
          %496 = sbr.rel (%p494) target = $region36
        $region35: #{tpu_custom_call.1} parent=11 // pred_region
          _
        $region36: #{tpu_custom_call.1} parent=11 // pred_fallthru
          _
        // Predicated region
        $region37: #{tpu_custom_call.1} parent=11 // pred_check
          %p497 = pneg %p233
        $region38: #{tpu_custom_call.1} parent=11 // pred_check_branch
          %499 = sbr.rel (%p497) target = $region40
        $region39: #{tpu_custom_call.1} parent=11 // pred_region
          _
        $region40: #{tpu_custom_call.1} parent=11 // pred_fallthru
          _
        // Predicated region
        $region41: #{tpu_custom_call.1} parent=11 // pred_check
          %p500 = pneg %p254
        $region42: #{tpu_custom_call.1} parent=11 // pred_check_branch
          %502 = sbr.rel (%p500) target = $region44
        $region43: #{tpu_custom_call.1} parent=11 // pred_region
          _
        $region44: #{tpu_custom_call.1} parent=11 // pred_fallthru
          _
        // Predicated region
        $region45: #{tpu_custom_call.1} parent=11 // pred_check
          %p503 = pneg %p275
        $region46: #{tpu_custom_call.1} parent=11 // pred_check_branch
          %505 = sbr.rel (%p503) target = $region48
        $region47: #{tpu_custom_call.1} parent=11 // pred_region
          _
        $region48: #{tpu_custom_call.1} parent=11 // pred_fallthru
          _
        // Predicated region
        $region49: #{tpu_custom_call.1} parent=11 // pred_check
          %p506 = pneg %p296
        $region50: #{tpu_custom_call.1} parent=11 // pred_check_branch
          %508 = sbr.rel (%p506) target = $region52
        $region51: #{tpu_custom_call.1} parent=11 // pred_region
          _
        $region52: #{tpu_custom_call.1} parent=11 // pred_fallthru
          _
        // Predicated region
        $region53: #{tpu_custom_call.1} parent=11 // pred_check
          %p509 = pneg %p317
        $region54: #{tpu_custom_call.1} parent=11 // pred_check_branch
          %511 = sbr.rel (%p509) target = $region56
        $region55: #{tpu_custom_call.1} parent=11 // pred_region
          %s513 = ssub.s32 2048, 2048
          %514 = vsyncadd [#allocation9], %s513
          %s515 = sshll.u32 [#allocation10], 4
          %s516 = int_to_ptr.vmem [resolvable:$true] %s515
          %521 = dma.hbm_to_vmem [thread:$0]  %s12, 2048, %s516, [#allocation9], 64, 64, 4
        $region56: #{tpu_custom_call.1} parent=11 // pred_fallthru
          _
        // Predicated region
        $region57: #{tpu_custom_call.1} parent=11 // pred_check
          %p522 = pneg %p338
        $region58: #{tpu_custom_call.1} parent=11 // pred_check_branch
          %524 = sbr.rel (%p522) target = $region60
        $region59: #{tpu_custom_call.1} parent=11 // pred_region
          _
        $region60: #{tpu_custom_call.1} parent=11 // pred_fallthru
          _
        // Predicated region
        $region61: #{tpu_custom_call.1} parent=11 // pred_check
          %p525 = pneg %p359
        $region62: #{tpu_custom_call.1} parent=11 // pred_check_branch
          %527 = sbr.rel (%p525) target = $region64
        $region63: #{tpu_custom_call.1} parent=11 // pred_region
          _
        $region64: #{tpu_custom_call.1} parent=11 // pred_fallthru
          _
        // Predicated region
        $region65: #{tpu_custom_call.1} parent=11 // pred_check
          %p528 = pneg %p380
        $region66: #{tpu_custom_call.1} parent=11 // pred_check_branch
          %530 = sbr.rel (%p528) target = $region68
        $region67: #{tpu_custom_call.1} parent=11 // pred_region
          _
        $region68: #{tpu_custom_call.1} parent=11 // pred_fallthru
          _
        // Predicated region
        $region69: #{tpu_custom_call.1} parent=11 // pred_check
          %p531 = pneg %p401
        $region70: #{tpu_custom_call.1} parent=11 // pred_check_branch
          %533 = sbr.rel (%p531) target = $region72
        $region71: #{tpu_custom_call.1} parent=11 // pred_region
          _
        $region72: #{tpu_custom_call.1} parent=11 // pred_fallthru
          _
        // Predicated region
        $region73: #{tpu_custom_call.1} parent=11 // pred_check
          %p534 = pneg %p422
        $region74: #{tpu_custom_call.1} parent=11 // pred_check_branch
          %536 = sbr.rel (%p534) target = $region76
        $region75: #{tpu_custom_call.1} parent=11 // pred_region
          _
        $region76: #{tpu_custom_call.1} parent=11 // pred_fallthru
          _
      $region12: #{tpu_custom_call.1} parent=5 // pred_fallthru
        _
      %p537 = scmp.lt.s32.totalorder %s34, 2
      // Predicated region
      $region77: #{tpu_custom_call.1} parent=5 // pred_check
        %p538 = pneg %p537
      $region78: #{tpu_custom_call.1} parent=5 // pred_check_branch
        %540 = sbr.rel (%p538) target = $region80
      $region79: #{tpu_custom_call.1} parent=5 // pred_region
        // Predicated region
        $region81: #{tpu_custom_call.1} parent=79 // pred_check
          %p541 = pneg %p54
        $region82: #{tpu_custom_call.1} parent=79 // pred_check_branch
          %543 = sbr.rel (%p541) target = $region84
        $region83: #{tpu_custom_call.1} parent=79 // pred_region
          %s544 = sand.u32 %s44, 1
          %s545 = scalar_lea.sflag [#allocation3], %s544
          %s546 = sand.u32 %s44, 1
          %s547 = smul.addr %s546, 8
          %s548 = scalar_lea.vmem [#allocation2], %s547
          %s550 = ssub.s32 128, 128
          %551 = vsyncadd %s545, %s550
          %s552 = smul.addr %s34, 128
          %s553 = scalar_lea.hbm %s0, %s552
          %s555 = sshll.u32 %s548, 4
          %s556 = int_to_ptr.vmem [resolvable:$true] %s555
          %558 = dma.hbm_to_vmem [thread:$0]  %s553, 128, %s556, %s545
        $region84: #{tpu_custom_call.1} parent=79 // pred_fallthru
          _
        // Predicated region
        $region85: #{tpu_custom_call.1} parent=79 // pred_check
          %p559 = pneg %p80
        $region86: #{tpu_custom_call.1} parent=79 // pred_check_branch
          %561 = sbr.rel (%p559) target = $region88
        $region87: #{tpu_custom_call.1} parent=79 // pred_region
          %s562 = sand.u32 %s34, 1
          %s563 = scalar_lea.sflag [#allocation6], %s562
          %s564 = sand.u32 %s70, 1
          %s565 = smul.addr %s564, 16
          %s566 = scalar_lea.vmem [#allocation5], %s565
          %s568 = ssub.s32 256, 256
          %569 = vsyncadd %s563, %s568
          %s570 = smul.addr %s34, 2
          %s571 = smul.addr %s570, 128
          %s572 = scalar_lea.hbm %s1, %s571
          %s573 = sshll.u32 %s566, 4
          %s574 = int_to_ptr.vmem [resolvable:$true] %s573
          %579 = dma.hbm_to_vmem [thread:$0]  %s572, 256, %s574, %s563, 128, 128, 8
        $region88: #{tpu_custom_call.1} parent=79 // pred_fallthru
          _
      $region80: #{tpu_custom_call.1} parent=5 // pred_fallthru
        _
      %p580 = scmp.le.s32.totalorder 1, %s34
      %p581 = scmp.lt.s32.totalorder %s34, 3
      %p582 = pnand %p580, %p581
      %p583 = pneg %p582
      // Predicated region
      $region89: #{tpu_custom_call.1} parent=5 // pred_check
        _
      $region90: #{tpu_custom_call.1} parent=5 // pred_check_branch
        %585 = sbr.rel (%p582) target = $region92
      $region91: #{tpu_custom_call.1} parent=5 // pred_region
        %s586 = ssub.s32 %s34, 1
        %s587 = sand.u32 %s47, 1
        %s588 = scalar_lea.sflag [#allocation3], %s587
        %s589 = sand.u32 %s47, 1
        %s590 = smul.addr %s589, 8
        %s591 = scalar_lea.vmem [#allocation2], %s590
        // Predicated region
        $region93: #{tpu_custom_call.1} parent=91 // pred_check
          %p592 = pneg %p60
        $region94: #{tpu_custom_call.1} parent=91 // pred_check_branch
          %594 = sbr.rel (%p592) target = $region96
        $region95: #{tpu_custom_call.1} parent=91 // pred_region
          %595 = dma.done %s588, 128
        $region96: #{tpu_custom_call.1} parent=91 // pred_fallthru
          _
        %s596 = sand.u32 %s39, 1
        %s597 = scalar_lea.sflag [#allocation6], %s596
        %s598 = sand.u32 %s73, 1
        %s599 = smul.addr %s598, 16
        %s600 = scalar_lea.vmem [#allocation5], %s599
        // Predicated region
        $region97: #{tpu_custom_call.1} parent=91 // pred_check
          %p601 = pneg %p86
        $region98: #{tpu_custom_call.1} parent=91 // pred_check_branch
          %603 = sbr.rel (%p601) target = $region100
        $region99: #{tpu_custom_call.1} parent=91 // pred_region
          %604 = dma.done %s597, 256
        $region100: #{tpu_custom_call.1} parent=91 // pred_fallthru
          _
        // Predicated region
        $region101: #{tpu_custom_call.1} parent=91 // pred_check
          %p605 = pneg %p128
        $region102: #{tpu_custom_call.1} parent=91 // pred_check_branch
          %607 = sbr.rel (%p605) target = $region104
        $region103: #{tpu_custom_call.1} parent=91 // pred_region
          %608 = dma.done [#allocation6], 16
        $region104: #{tpu_custom_call.1} parent=91 // pred_fallthru
          _
        // Predicated region
        $region105: #{tpu_custom_call.1} parent=91 // pred_check
          %p609 = pneg %p149
        $region106: #{tpu_custom_call.1} parent=91 // pred_check_branch
          %611 = sbr.rel (%p609) target = $region108
        $region107: #{tpu_custom_call.1} parent=91 // pred_region
          %612 = dma.done [#allocation9], 16
        $region108: #{tpu_custom_call.1} parent=91 // pred_fallthru
          _
        // Predicated region
        $region109: #{tpu_custom_call.1} parent=91 // pred_check
          %p613 = pneg %p317
        $region110: #{tpu_custom_call.1} parent=91 // pred_check_branch
          %615 = sbr.rel (%p613) target = $region112
        $region111: #{tpu_custom_call.1} parent=91 // pred_region
          %616 = dma.done [#allocation9], 2048
        $region112: #{tpu_custom_call.1} parent=91 // pred_fallthru
          _
        %s617 = sand.u32 %s47, 1
        %s618 = scalar_lea.sflag [#allocation3], %s617
        %s619 = sand.u32 %s47, 1
        %s620 = smul.addr %s619, 8
        %s621 = scalar_lea.vmem [#allocation2], %s620
        %p622 = pneg %p60
        %p623 = pneg %p57
        %s624 = sand.u32 %s39, 1
        %s625 = scalar_lea.sflag [#allocation6], %s624
        %s626 = sand.u32 %s73, 1
        %s627 = smul.addr %s626, 16
        %s628 = scalar_lea.vmem [#allocation5], %s627
        %p629 = pneg %p86
        %p630 = pneg %p83
        %p631 = pneg %p107
        %p632 = pneg %p104
        %p633 = pneg %p128
        %p634 = pneg %p125
        %p635 = pneg %p149
        %p636 = pneg %p146
        %p637 = pneg %p170
        %p638 = pneg %p167
        %p639 = pneg %p191
        %p640 = pneg %p188
        %p641 = pneg %p212
        %p642 = pneg %p209
        %p643 = pneg %p233
        %p644 = pneg %p230
        %p645 = pneg %p254
        %p646 = pneg %p251
        %p647 = pneg %p275
        %p648 = pneg %p272
        %p649 = pneg %p296
        %p650 = pneg %p293
        %p651 = pneg %p317
        %p652 = pneg %p314
        %p653 = pneg %p338
        %p654 = pneg %p335
        %p655 = pneg %p359
        %p656 = pneg %p356
        %p657 = pneg %p380
        %p658 = pneg %p377
        %p659 = pneg %p401
        %p660 = pneg %p398
        %p661 = pneg %p422
        %p662 = pneg %p419
        %p663 = pneg %p448
        %p664 = pneg %p445
        %s665 = sand.u32 %s435, 1
        %s666 = scalar_lea.sflag [#allocation4], %s665
        %s667 = sand.u32 %s435, 1
        %s668 = smul.addr %s667, 8
        %s669 = scalar_lea.vmem [#allocation11], %s668
        %v671 = vld [vmem:[%s591] sm:$0xff]
        %v672 = vld [vmem:[%s600] sm:$0xff]
        %v673 = vld [vmem:[%s600 + $0x8] sm:$0xff]
        %v674 = vld [vmem:[%s2] sm:$0x1]
        %v675 = vld [vmem:[#allocation7] sm:$0x1]
        %676 = vadd.xlane.f32.xlu0 %v672
        %v677 = vpop.xlane.xlu0 %676
        %678 = vadd.xlane.f32.xlu0 %v673
        %v679 = vpop.xlane.xlu0 %678
        %v680 = vrcp.pop 128.0
        %v681 = vmul.f32 %v677, %v680
        %v682 = vmul.f32 %v679, %v680
        %v683 = vsub.f32 %v672, %v681
        %v684 = vsub.f32 %v673, %v682
        %v685 = vmul.f32 %v683, %v683
        %v686 = vmul.f32 %v684, %v684
        %687 = vadd.xlane.f32.xlu0 %v685
        %v688 = vpop.xlane.xlu0 %687
        %689 = vadd.xlane.f32.xlu0 %v686
        %v690 = vpop.xlane.xlu0 %689
        %v691 = vmul.f32 %v688, %v680
        %v692 = vmul.f32 %v690, %v680
        %v693 = vadd.f32 %v691, 1e-05
        %v694 = vadd.f32 %v692, 1e-05
        %v695 = vrsqrt.pop %v693
        %v696 = vrsqrt.pop %v694
        %v697 = vmul.f32 %v683, %v695
        %v698 = vmul.f32 %v684, %v696
        %v700 = vlaneseq
        %v701 = vshrl.u32 %v700, 7
        %v702 = vsub.s32 0, %v701
        %v703 = vrot.slane %v674, %v702
        %v705 = vmul.f32 %v697, %v703
        %v706 = vmul.f32 %v698, %v703
        %v708 = vlaneseq
        %v709 = vshrl.u32 %v708, 7
        %v710 = vsub.s32 0, %v709
        %v711 = vrot.slane %v675, %v710
        %v713 = vadd.f32 %v705, %v711
        %v714 = vadd.f32 %v706, %v711
        %v715 = vpack.c.bf16 %v714, %v713
        %v716 = vld [vmem:[%s5] sm:$0x1]
        %v717 = vld [vmem:[%s6] sm:$0x1]
        %718 = vadd.xlane.f32.xlu0 %v671
        %v719 = vpop.xlane.xlu0 %718
        %v720 = vmul.f32 %v719, %v680
        %v721 = vsub.f32 %v671, %v720
        %v722 = vmul.f32 %v721, %v721
        %723 = vadd.xlane.f32.xlu0 %v722
        %v724 = vpop.xlane.xlu0 %723
        %v725 = vmul.f32 %v724, %v680
        %v726 = vadd.f32 %v725, 1e-05
        %v727 = vrsqrt.pop %v726
        %v728 = vmul.f32 %v721, %v727
        %v730 = vlaneseq
        %v731 = vshrl.u32 %v730, 7
        %v732 = vsub.s32 0, %v731
        %v733 = vrot.slane %v716, %v732
        %v735 = vmul.f32 %v728, %v733
        %v737 = vlaneseq
        %v738 = vshrl.u32 %v737, 7
        %v739 = vsub.s32 0, %v738
        %v740 = vrot.slane %v717, %v739
        %v742 = vadd.f32 %v735, %v740
        %v743 = vpack.c.bf16 %v742, %v742
        %v744 = vld [vmem:[%s9] sm:$0xf]
        %v745 = vld [vmem:[%s9 + $0x4] sm:$0xf]
        %v746 = vld [vmem:[%s9 + $0x8] sm:$0xf]
        %v747 = vld [vmem:[%s9 + $0xc] sm:$0xf]
        %v748 = vld [vmem:[%s9 + $0x10] sm:$0xf]
        %v749 = vld [vmem:[%s9 + $0x14] sm:$0xf]
        %v750 = vld [vmem:[%s9 + $0x18] sm:$0xf]
        %v751 = vld [vmem:[%s9 + $0x1c] sm:$0xf]
        %v752 = vld [vmem:[%s9 + $0x20] sm:$0xf]
        %v753 = vld [vmem:[%s9 + $0x24] sm:$0xf]
        %v754 = vld [vmem:[%s9 + $0x28] sm:$0xf]
        %v755 = vld [vmem:[%s9 + $0x2c] sm:$0xf]
        %v756 = vld [vmem:[%s9 + $0x30] sm:$0xf]
        %v757 = vld [vmem:[%s9 + $0x34] sm:$0xf]
        %v758 = vld [vmem:[%s9 + $0x38] sm:$0xf]
        %v759 = vld [vmem:[%s9 + $0x3c] sm:$0xf]
        %v776 = vunpack.c.l.b16 %v744
        %v777 = vunpack.c.l.b16 %v745
        %v778 = vunpack.c.l.b16 %v746
        %v779 = vunpack.c.l.b16 %v747
        %v780 = vunpack.c.l.b16 %v748
        %v781 = vunpack.c.l.b16 %v749
        %v782 = vunpack.c.l.b16 %v750
        %v783 = vunpack.c.l.b16 %v751
        %v784 = vunpack.c.l.b16 %v752
        %v785 = vunpack.c.l.b16 %v753
        %v786 = vunpack.c.l.b16 %v754
        %v787 = vunpack.c.l.b16 %v755
        %v788 = vunpack.c.l.b16 %v756
        %v789 = vunpack.c.l.b16 %v757
        %v790 = vunpack.c.l.b16 %v758
        %v791 = vunpack.c.l.b16 %v759
        %v792 = vpack.c.b16 %v777, %v776
        %v793 = vpack.c.b16 %v779, %v778
        %v794 = vpack.c.b16 %v781, %v780
        %v795 = vpack.c.b16 %v783, %v782
        %v796 = vpack.c.b16 %v785, %v784
        %v797 = vpack.c.b16 %v787, %v786
        %v798 = vpack.c.b16 %v789, %v788
        %v799 = vpack.c.b16 %v791, %v790
        %808 = vmatprep.subr.bf16.mxu0 0
        %809 = vmatpush1.bf16.msra.mxu0 %v792
        %810 = vmatprep.subr.bf16.mxu0 0
        %811 = vmatpush1.bf16.msra.mxu0 %v793
        %812 = vmatprep.subr.bf16.mxu0 0
        %813 = vmatpush1.bf16.msra.mxu0 %v794
        %814 = vmatprep.subr.bf16.mxu0 0
        %815 = vmatpush1.bf16.msra.mxu0 %v795
        %816 = vmatprep.subr.bf16.mxu0 0
        %817 = vmatpush1.bf16.msra.mxu0 %v796
        %818 = vmatprep.subr.bf16.mxu0 0
        %819 = vmatpush1.bf16.msra.mxu0 %v797
        %820 = vmatprep.subr.bf16.mxu0 0
        %821 = vmatpush1.bf16.msra.mxu0 %v798
        %822 = vmatprep.subr.bf16.mxu0 0
        %823 = vmatpush1.bf16.msra.mxu0 %v799
        %824 = vmatprep.subr.bf16.mxu0 0
        %825 = vmatpush1.bf16.msra.mxu0 0
        %826 = vmatprep.subr.bf16.mxu0 0
        %827 = vmatpush1.bf16.msra.mxu0 0
        %828 = vmatprep.subr.bf16.mxu0 0
        %829 = vmatpush1.bf16.msra.mxu0 0
        %830 = vmatprep.subr.bf16.mxu0 0
        %831 = vmatpush1.bf16.msra.mxu0 0
        %832 = vmatprep.subr.bf16.mxu0 0
        %833 = vmatpush1.bf16.msra.mxu0 0
        %834 = vmatprep.subr.bf16.mxu0 0
        %835 = vmatpush1.bf16.msra.mxu0 0
        %836 = vmatprep.subr.bf16.mxu0 0
        %837 = vmatpush1.bf16.msra.mxu0 0
        %838 = vmatprep.subr.bf16.mxu0 0
        %839 = vmatpush1.bf16.msra.mxu0 0
        %840 = vmatprep.mubr.bf16.mxu0 0
        %841 = vmatmul.mubr.bf16.gmra.mrb[0].mxu0 %v743
        %v842 = vpop.f32.mrb[0].mxu0
        %v843 = vadd.f32 0.0, %v842
        %v844 = vpop.f32.mrb[0].mxu0
        %v845 = vpop.f32.mrb[0].mxu0
        %v846 = vpop.f32.mrb[0].mxu0
        %847 = vdwg.mxu0
        %v848 = vpack.c.bf16 %v843, %v843
        %v849 = vld [vmem:[%s10] sm:$0xf]
        %v850 = vld [vmem:[%s10 + $0x4] sm:$0xf]
        %v851 = vld [vmem:[%s10 + $0x8] sm:$0xf]
        %v852 = vld [vmem:[%s10 + $0xc] sm:$0xf]
        %v853 = vld [vmem:[%s10 + $0x10] sm:$0xf]
        %v854 = vld [vmem:[%s10 + $0x14] sm:$0xf]
        %v855 = vld [vmem:[%s10 + $0x18] sm:$0xf]
        %v856 = vld [vmem:[%s10 + $0x1c] sm:$0xf]
        %v857 = vld [vmem:[%s10 + $0x20] sm:$0xf]
        %v858 = vld [vmem:[%s10 + $0x24] sm:$0xf]
        %v859 = vld [vmem:[%s10 + $0x28] sm:$0xf]
        %v860 = vld [vmem:[%s10 + $0x2c] sm:$0xf]
        %v861 = vld [vmem:[%s10 + $0x30] sm:$0xf]
        %v862 = vld [vmem:[%s10 + $0x34] sm:$0xf]
        %v863 = vld [vmem:[%s10 + $0x38] sm:$0xf]
        %v864 = vld [vmem:[%s10 + $0x3c] sm:$0xf]
        %v881 = vunpack.c.l.b16 %v849
        %v882 = vunpack.c.l.b16 %v850
        %v883 = vunpack.c.l.b16 %v851
        %v884 = vunpack.c.l.b16 %v852
        %v885 = vunpack.c.l.b16 %v853
        %v886 = vunpack.c.l.b16 %v854
        %v887 = vunpack.c.l.b16 %v855
        %v888 = vunpack.c.l.b16 %v856
        %v889 = vunpack.c.l.b16 %v857
        %v890 = vunpack.c.l.b16 %v858
        %v891 = vunpack.c.l.b16 %v859
        %v892 = vunpack.c.l.b16 %v860
        %v893 = vunpack.c.l.b16 %v861
        %v894 = vunpack.c.l.b16 %v862
        %v895 = vunpack.c.l.b16 %v863
        %v896 = vunpack.c.l.b16 %v864
        %v897 = vpack.c.b16 %v882, %v881
        %v898 = vpack.c.b16 %v884, %v883
        %v899 = vpack.c.b16 %v886, %v885
        %v900 = vpack.c.b16 %v888, %v887
        %v901 = vpack.c.b16 %v890, %v889
        %v902 = vpack.c.b16 %v892, %v891
        %v903 = vpack.c.b16 %v894, %v893
        %v904 = vpack.c.b16 %v896, %v895
        %913 = vmatprep.subr.bf16.mxu0 0
        %914 = vmatpush1.bf16.msra.mxu0 %v897
        %915 = vmatprep.subr.bf16.mxu0 0
        %916 = vmatpush1.bf16.msra.mxu0 %v898
        %917 = vmatprep.subr.bf16.mxu0 0
        %918 = vmatpush1.bf16.msra.mxu0 %v899
        %919 = vmatprep.subr.bf16.mxu0 0
        %920 = vmatpush1.bf16.msra.mxu0 %v900
        %921 = vmatprep.subr.bf16.mxu0 0
        %922 = vmatpush1.bf16.msra.mxu0 %v901
        %923 = vmatprep.subr.bf16.mxu0 0
        %924 = vmatpush1.bf16.msra.mxu0 %v902
        %925 = vmatprep.subr.bf16.mxu0 0
        %926 = vmatpush1.bf16.msra.mxu0 %v903
        %927 = vmatprep.subr.bf16.mxu0 0
        %928 = vmatpush1.bf16.msra.mxu0 %v904
        %929 = vmatprep.subr.bf16.mxu0 0
        %930 = vmatpush1.bf16.msra.mxu0 0
        %931 = vmatprep.subr.bf16.mxu0 0
        %932 = vmatpush1.bf16.msra.mxu0 0
        %933 = vmatprep.subr.bf16.mxu0 0
        %934 = vmatpush1.bf16.msra.mxu0 0
        %935 = vmatprep.subr.bf16.mxu0 0
        %936 = vmatpush1.bf16.msra.mxu0 0
        %937 = vmatprep.subr.bf16.mxu0 0
        %938 = vmatpush1.bf16.msra.mxu0 0
        %939 = vmatprep.subr.bf16.mxu0 0
        %940 = vmatpush1.bf16.msra.mxu0 0
        %941 = vmatprep.subr.bf16.mxu0 0
        %942 = vmatpush1.bf16.msra.mxu0 0
        %943 = vmatprep.subr.bf16.mxu0 0
        %944 = vmatpush1.bf16.msra.mxu0 0
        %945 = vmatprep.mubr.bf16.mxu0 0
        %946 = vmatmul.mubr.bf16.gmra.mrb[0].mxu0 %v715
        %v947 = vpop.f32.mrb[0].mxu0
        %v948 = vadd.f32 0.0, %v947
        %v949 = vpop.f32.mrb[0].mxu0
        %v950 = vpop.f32.mrb[0].mxu0
        %v951 = vadd.f32 0.0, %v950
        %v952 = vpop.f32.mrb[0].mxu0
        %953 = vdwg.mxu0
        %v954 = vpack.c.bf16 %v951, %v948
        %v955 = vld [vmem:[%s11] sm:$0xf]
        %v956 = vld [vmem:[%s11 + $0x4] sm:$0xf]
        %v957 = vld [vmem:[%s11 + $0x8] sm:$0xf]
        %v958 = vld [vmem:[%s11 + $0xc] sm:$0xf]
        %v959 = vld [vmem:[%s11 + $0x10] sm:$0xf]
        %v960 = vld [vmem:[%s11 + $0x14] sm:$0xf]
        %v961 = vld [vmem:[%s11 + $0x18] sm:$0xf]
        %v962 = vld [vmem:[%s11 + $0x1c] sm:$0xf]
        %v963 = vld [vmem:[%s11 + $0x20] sm:$0xf]
        %v964 = vld [vmem:[%s11 + $0x24] sm:$0xf]
        %v965 = vld [vmem:[%s11 + $0x28] sm:$0xf]
        %v966 = vld [vmem:[%s11 + $0x2c] sm:$0xf]
        %v967 = vld [vmem:[%s11 + $0x30] sm:$0xf]
        %v968 = vld [vmem:[%s11 + $0x34] sm:$0xf]
        %v969 = vld [vmem:[%s11 + $0x38] sm:$0xf]
        %v970 = vld [vmem:[%s11 + $0x3c] sm:$0xf]
        %v987 = vunpack.c.l.b16 %v955
        %v988 = vunpack.c.l.b16 %v956
        %v989 = vunpack.c.l.b16 %v957
        %v990 = vunpack.c.l.b16 %v958
        %v991 = vunpack.c.l.b16 %v959
        %v992 = vunpack.c.l.b16 %v960
        %v993 = vunpack.c.l.b16 %v961
        %v994 = vunpack.c.l.b16 %v962
        %v995 = vunpack.c.l.b16 %v963
        %v996 = vunpack.c.l.b16 %v964
        %v997 = vunpack.c.l.b16 %v965
        %v998 = vunpack.c.l.b16 %v966
        %v999 = vunpack.c.l.b16 %v967
        %v1000 = vunpack.c.l.b16 %v968
        %v1001 = vunpack.c.l.b16 %v969
        %v1002 = vunpack.c.l.b16 %v970
        %v1003 = vpack.c.b16 %v988, %v987
        %v1004 = vpack.c.b16 %v990, %v989
        %v1005 = vpack.c.b16 %v992, %v991
        %v1006 = vpack.c.b16 %v994, %v993
        %v1007 = vpack.c.b16 %v996, %v995
        %v1008 = vpack.c.b16 %v998, %v997
        %v1009 = vpack.c.b16 %v1000, %v999
        %v1010 = vpack.c.b16 %v1002, %v1001
        %1019 = vmatprep.subr.bf16.mxu0 0
        %1020 = vmatpush1.bf16.msra.mxu0 %v1003
        %1021 = vmatprep.subr.bf16.mxu0 0
        %1022 = vmatpush1.bf16.msra.mxu0 %v1004
        %1023 = vmatprep.subr.bf16.mxu0 0
        %1024 = vmatpush1.bf16.msra.mxu0 %v1005
        %1025 = vmatprep.subr.bf16.mxu0 0
        %1026 = vmatpush1.bf16.msra.mxu0 %v1006
        %1027 = vmatprep.subr.bf16.mxu0 0
        %1028 = vmatpush1.bf16.msra.mxu0 %v1007
        %1029 = vmatprep.subr.bf16.mxu0 0
        %1030 = vmatpush1.bf16.msra.mxu0 %v1008
        %1031 = vmatprep.subr.bf16.mxu0 0
        %1032 = vmatpush1.bf16.msra.mxu0 %v1009
        %1033 = vmatprep.subr.bf16.mxu0 0
        %1034 = vmatpush1.bf16.msra.mxu0 %v1010
        %1035 = vmatprep.subr.bf16.mxu0 0
        %1036 = vmatpush1.bf16.msra.mxu0 0
        %1037 = vmatprep.subr.bf16.mxu0 0
        %1038 = vmatpush1.bf16.msra.mxu0 0
        %1039 = vmatprep.subr.bf16.mxu0 0
        %1040 = vmatpush1.bf16.msra.mxu0 0
        %1041 = vmatprep.subr.bf16.mxu0 0
        %1042 = vmatpush1.bf16.msra.mxu0 0
        %1043 = vmatprep.subr.bf16.mxu0 0
        %1044 = vmatpush1.bf16.msra.mxu0 0
        %1045 = vmatprep.subr.bf16.mxu0 0
        %1046 = vmatpush1.bf16.msra.mxu0 0
        %1047 = vmatprep.subr.bf16.mxu0 0
        %1048 = vmatpush1.bf16.msra.mxu0 0
        %1049 = vmatprep.subr.bf16.mxu0 0
        %1050 = vmatpush1.bf16.msra.mxu0 0
        %1051 = vmatprep.mubr.bf16.mxu0 0
        %1052 = vmatmul.mubr.bf16.gmra.mrb[0].mxu0 %v715
        %v1053 = vpop.f32.mrb[0].mxu0
        %v1054 = vadd.f32 0.0, %v1053
        %v1055 = vpop.f32.mrb[0].mxu0
        %v1056 = vpop.f32.mrb[0].mxu0
        %v1057 = vadd.f32 0.0, %v1056
        %v1058 = vpop.f32.mrb[0].mxu0
        %1059 = vdwg.mxu0
        %v1060 = vpack.c.bf16 %v1057, %v1054
        %vm1061 = vcmask 523264
        %v1063 = vsel %vm1061, %v848, 0
        %v1066 = vsel %vm1061, %v954, 0
        %1068 = vmatprep.subr.bf16.mxu0 0
        %1069 = vmatpush1.bf16.xpose.msra.mxu0 %v1066
        %1070 = vmatprep.subr.bf16.mxu0 0
        %1071 = vmatpush1.bf16.xpose.msra.mxu0 0
        %1072 = vmatprep.subr.bf16.mxu0 0
        %1073 = vmatpush1.bf16.xpose.msra.mxu0 0
        %1074 = vmatprep.subr.bf16.mxu0 0
        %1075 = vmatpush1.bf16.xpose.msra.mxu0 0
        %1076 = vmatprep.subr.bf16.mxu0 0
        %1077 = vmatpush1.bf16.xpose.msra.mxu0 0
        %1078 = vmatprep.subr.bf16.mxu0 0
        %1079 = vmatpush1.bf16.xpose.msra.mxu0 0
        %1080 = vmatprep.subr.bf16.mxu0 0
        %1081 = vmatpush1.bf16.xpose.msra.mxu0 0
        %1082 = vmatprep.subr.bf16.mxu0 0
        %1083 = vmatpush1.bf16.xpose.msra.mxu0 0
        %1084 = vmatprep.subr.bf16.mxu0 0
        %1085 = vmatpush1.bf16.xpose.msra.mxu0 0
        %1086 = vmatprep.subr.bf16.mxu0 0
        %1087 = vmatpush1.bf16.xpose.msra.mxu0 0
        %1088 = vmatprep.subr.bf16.mxu0 0
        %1089 = vmatpush1.bf16.xpose.msra.mxu0 0
        %1090 = vmatprep.subr.bf16.mxu0 0
        %1091 = vmatpush1.bf16.xpose.msra.mxu0 0
        %1092 = vmatprep.subr.bf16.mxu0 0
        %1093 = vmatpush1.bf16.xpose.msra.mxu0 0
        %1094 = vmatprep.subr.bf16.mxu0 0
        %1095 = vmatpush1.bf16.xpose.msra.mxu0 0
        %1096 = vmatprep.subr.bf16.mxu0 0
        %1097 = vmatpush1.bf16.xpose.msra.mxu0 0
        %1098 = vmatprep.subr.bf16.mxu0 0
        %1099 = vmatpush1.bf16.xpose.msra.mxu0 0
        %1100 = vmatprep.mubr.bf16.mxu0 0
        %1101 = vmatmul.mubr.bf16.gmra.mrb[0].mxu0 %v1063
        %v1102 = vpop.f32.mrb[0].mxu0
        %v1103 = vadd.f32 0.0, %v1102
        %v1104 = vpop.f32.mrb[0].mxu0
        %v1105 = vpop.f32.mrb[0].mxu0
        %v1106 = vpop.f32.mrb[0].mxu0
        %1107 = vdwg.mxu0
        %vm1108 = vcmask 130048
        %v1109 = vsel %vm1108, %v1103, -inf
        %1110 = vmax.xlane.f32.xlu0 %v1109
        %v1111 = vpop.xlane.xlu0 %1110
        %v1112 = vsub.f32 %v1103, %v1111
        %v1113 = vmul.f32 %v1112, 1.442695
        %v1114 = vpow.pop %v1113
        %v1115 = vsel %vm1108, %v1114, 0.0
        %1116 = vadd.xlane.f32.xlu0 %v1115
        %v1117 = vpop.xlane.xlu0 %1116
        %v1118 = vrcp.pop %v1117
        %v1119 = vmul.f32 %v1114, %v1118
        %v1120 = vpack.c.bf16 %v1119, %v1119
        %v1122 = vsel %vm1108, %v1120, 0
        %1124 = vmatprep.subr.bf16.mxu0 0
        %1125 = vmatpush1.bf16.msra.mxu0 %v1060
        %1126 = vmatprep.subr.bf16.mxu0 0
        %1127 = vmatpush1.bf16.msra.mxu0 0
        %1128 = vmatprep.subr.bf16.mxu0 0
        %1129 = vmatpush1.bf16.msra.mxu0 0
        %1130 = vmatprep.subr.bf16.mxu0 0
        %1131 = vmatpush1.bf16.msra.mxu0 0
        %1132 = vmatprep.subr.bf16.mxu0 0
        %1133 = vmatpush1.bf16.msra.mxu0 0
        %1134 = vmatprep.subr.bf16.mxu0 0
        %1135 = vmatpush1.bf16.msra.mxu0 0
        %1136 = vmatprep.subr.bf16.mxu0 0
        %1137 = vmatpush1.bf16.msra.mxu0 0
        %1138 = vmatprep.subr.bf16.mxu0 0
        %1139 = vmatpush1.bf16.msra.mxu0 0
        %1140 = vmatprep.subr.bf16.mxu0 0
        %1141 = vmatpush1.bf16.msra.mxu0 0
        %1142 = vmatprep.subr.bf16.mxu0 0
        %1143 = vmatpush1.bf16.msra.mxu0 0
        %1144 = vmatprep.subr.bf16.mxu0 0
        %1145 = vmatpush1.bf16.msra.mxu0 0
        %1146 = vmatprep.subr.bf16.mxu0 0
        %1147 = vmatpush1.bf16.msra.mxu0 0
        %1148 = vmatprep.subr.bf16.mxu0 0
        %1149 = vmatpush1.bf16.msra.mxu0 0
        %1150 = vmatprep.subr.bf16.mxu0 0
        %1151 = vmatpush1.bf16.msra.mxu0 0
        %1152 = vmatprep.subr.bf16.mxu0 0
        %1153 = vmatpush1.bf16.msra.mxu0 0
        %1154 = vmatprep.subr.bf16.mxu0 0
        %1155 = vmatpush1.bf16.msra.mxu0 0
        %1156 = vmatprep.mubr.bf16.mxu0 0
        %1157 = vmatmul.mubr.bf16.gmra.mrb[0].mxu0 %v1122
        %v1158 = vpop.f32.mrb[0].mxu0
        %v1159 = vadd.f32 0.0, %v1158
        %v1160 = vpop.f32.mrb[0].mxu0
        %v1161 = vpop.f32.mrb[0].mxu0
        %v1162 = vpop.f32.mrb[0].mxu0
        %1163 = vdwg.mxu0
        %v1164 = vpack.c.bf16 %v1159, %v1159
        %v1165 = vld [vmem:[#allocation10] sm:$0xf]
        %v1166 = vld [vmem:[#allocation10 + $0x4] sm:$0xf]
        %v1167 = vld [vmem:[#allocation10 + $0x8] sm:$0xf]
        %v1168 = vld [vmem:[#allocation10 + $0xc] sm:$0xf]
        %v1169 = vld [vmem:[#allocation10 + $0x10] sm:$0xf]
        %v1170 = vld [vmem:[#allocation10 + $0x14] sm:$0xf]
        %v1171 = vld [vmem:[#allocation10 + $0x18] sm:$0xf]
        %v1172 = vld [vmem:[#allocation10 + $0x1c] sm:$0xf]
        %s1173 = scalar_lea.vmem %s9, 64
        %v1174 = vld [vmem:[%s1173] sm:$0xf]
        %v1175 = vld [vmem:[%s1173 + $0x4] sm:$0xf]
        %v1176 = vld [vmem:[%s1173 + $0x8] sm:$0xf]
        %v1177 = vld [vmem:[%s1173 + $0xc] sm:$0xf]
        %v1178 = vld [vmem:[%s1173 + $0x10] sm:$0xf]
        %v1179 = vld [vmem:[%s1173 + $0x14] sm:$0xf]
        %v1180 = vld [vmem:[%s1173 + $0x18] sm:$0xf]
        %v1181 = vld [vmem:[%s1173 + $0x1c] sm:$0xf]
        %v1182 = vld [vmem:[%s1173 + $0x20] sm:$0xf]
        %v1183 = vld [vmem:[%s1173 + $0x24] sm:$0xf]
        %v1184 = vld [vmem:[%s1173 + $0x28] sm:$0xf]
        %v1185 = vld [vmem:[%s1173 + $0x2c] sm:$0xf]
        %v1186 = vld [vmem:[%s1173 + $0x30] sm:$0xf]
        %v1187 = vld [vmem:[%s1173 + $0x34] sm:$0xf]
        %v1188 = vld [vmem:[%s1173 + $0x38] sm:$0xf]
        %v1189 = vld [vmem:[%s1173 + $0x3c] sm:$0xf]
        %v1206 = vunpack.c.l.b16 %v1174
        %v1207 = vunpack.c.l.b16 %v1175
        %v1208 = vunpack.c.l.b16 %v1176
        %v1209 = vunpack.c.l.b16 %v1177
        %v1210 = vunpack.c.l.b16 %v1178
        %v1211 = vunpack.c.l.b16 %v1179
        %v1212 = vunpack.c.l.b16 %v1180
        %v1213 = vunpack.c.l.b16 %v1181
        %v1214 = vunpack.c.l.b16 %v1182
        %v1215 = vunpack.c.l.b16 %v1183
        %v1216 = vunpack.c.l.b16 %v1184
        %v1217 = vunpack.c.l.b16 %v1185
        %v1218 = vunpack.c.l.b16 %v1186
        %v1219 = vunpack.c.l.b16 %v1187
        %v1220 = vunpack.c.l.b16 %v1188
        %v1221 = vunpack.c.l.b16 %v1189
        %v1222 = vpack.c.b16 %v1207, %v1206
        %v1223 = vpack.c.b16 %v1209, %v1208
        %v1224 = vpack.c.b16 %v1211, %v1210
        %v1225 = vpack.c.b16 %v1213, %v1212
        %v1226 = vpack.c.b16 %v1215, %v1214
        %v1227 = vpack.c.b16 %v1217, %v1216
        %v1228 = vpack.c.b16 %v1219, %v1218
        %v1229 = vpack.c.b16 %v1221, %v1220
        %1238 = vmatprep.subr.bf16.mxu0 0
        %1239 = vmatpush1.bf16.msra.mxu0 %v1222
        %1240 = vmatprep.subr.bf16.mxu0 0
        %1241 = vmatpush1.bf16.msra.mxu0 %v1223
        %1242 = vmatprep.subr.bf16.mxu0 0
        %1243 = vmatpush1.bf16.msra.mxu0 %v1224
        %1244 = vmatprep.subr.bf16.mxu0 0
        %1245 = vmatpush1.bf16.msra.mxu0 %v1225
        %1246 = vmatprep.subr.bf16.mxu0 0
        %1247 = vmatpush1.bf16.msra.mxu0 %v1226
        %1248 = vmatprep.subr.bf16.mxu0 0
        %1249 = vmatpush1.bf16.msra.mxu0 %v1227
        %1250 = vmatprep.subr.bf16.mxu0 0
        %1251 = vmatpush1.bf16.msra.mxu0 %v1228
        %1252 = vmatprep.subr.bf16.mxu0 0
        %1253 = vmatpush1.bf16.msra.mxu0 %v1229
        %1254 = vmatprep.subr.bf16.mxu0 0
        %1255 = vmatpush1.bf16.msra.mxu0 0
        %1256 = vmatprep.subr.bf16.mxu0 0
        %1257 = vmatpush1.bf16.msra.mxu0 0
        %1258 = vmatprep.subr.bf16.mxu0 0
        %1259 = vmatpush1.bf16.msra.mxu0 0
        %1260 = vmatprep.subr.bf16.mxu0 0
        %1261 = vmatpush1.bf16.msra.mxu0 0
        %1262 = vmatprep.subr.bf16.mxu0 0
        %1263 = vmatpush1.bf16.msra.mxu0 0
        %1264 = vmatprep.subr.bf16.mxu0 0
        %1265 = vmatpush1.bf16.msra.mxu0 0
        %1266 = vmatprep.subr.bf16.mxu0 0
        %1267 = vmatpush1.bf16.msra.mxu0 0
        %1268 = vmatprep.subr.bf16.mxu0 0
        %1269 = vmatpush1.bf16.msra.mxu0 0
        %1270 = vmatprep.mubr.bf16.mxu0 0
        %1271 = vmatmul.mubr.bf16.gmra.mrb[0].mxu0 %v743
        %v1272 = vpop.f32.mrb[0].mxu0
        %v1273 = vadd.f32 0.0, %v1272
        %v1274 = vpop.f32.mrb[0].mxu0
        %v1275 = vpop.f32.mrb[0].mxu0
        %v1276 = vpop.f32.mrb[0].mxu0
        %1277 = vdwg.mxu0
        %v1278 = vpack.c.bf16 %v1273, %v1273
        %s1279 = scalar_lea.vmem %s10, 64
        %v1280 = vld [vmem:[%s1279] sm:$0xf]
        %v1281 = vld [vmem:[%s1279 + $0x4] sm:$0xf]
        %v1282 = vld [vmem:[%s1279 + $0x8] sm:$0xf]
        %v1283 = vld [vmem:[%s1279 + $0xc] sm:$0xf]
        %v1284 = vld [vmem:[%s1279 + $0x10] sm:$0xf]
        %v1285 = vld [vmem:[%s1279 + $0x14] sm:$0xf]
        %v1286 = vld [vmem:[%s1279 + $0x18] sm:$0xf]
        %v1287 = vld [vmem:[%s1279 + $0x1c] sm:$0xf]
        %v1288 = vld [vmem:[%s1279 + $0x20] sm:$0xf]
        %v1289 = vld [vmem:[%s1279 + $0x24] sm:$0xf]
        %v1290 = vld [vmem:[%s1279 + $0x28] sm:$0xf]
        %v1291 = vld [vmem:[%s1279 + $0x2c] sm:$0xf]
        %v1292 = vld [vmem:[%s1279 + $0x30] sm:$0xf]
        %v1293 = vld [vmem:[%s1279 + $0x34] sm:$0xf]
        %v1294 = vld [vmem:[%s1279 + $0x38] sm:$0xf]
        %v1295 = vld [vmem:[%s1279 + $0x3c] sm:$0xf]
        %v1312 = vunpack.c.l.b16 %v1280
        %v1313 = vunpack.c.l.b16 %v1281
        %v1314 = vunpack.c.l.b16 %v1282
        %v1315 = vunpack.c.l.b16 %v1283
        %v1316 = vunpack.c.l.b16 %v1284
        %v1317 = vunpack.c.l.b16 %v1285
        %v1318 = vunpack.c.l.b16 %v1286
        %v1319 = vunpack.c.l.b16 %v1287
        %v1320 = vunpack.c.l.b16 %v1288
        %v1321 = vunpack.c.l.b16 %v1289
        %v1322 = vunpack.c.l.b16 %v1290
        %v1323 = vunpack.c.l.b16 %v1291
        %v1324 = vunpack.c.l.b16 %v1292
        %v1325 = vunpack.c.l.b16 %v1293
        %v1326 = vunpack.c.l.b16 %v1294
        %v1327 = vunpack.c.l.b16 %v1295
        %v1328 = vpack.c.b16 %v1313, %v1312
        %v1329 = vpack.c.b16 %v1315, %v1314
        %v1330 = vpack.c.b16 %v1317, %v1316
        %v1331 = vpack.c.b16 %v1319, %v1318
        %v1332 = vpack.c.b16 %v1321, %v1320
        %v1333 = vpack.c.b16 %v1323, %v1322
        %v1334 = vpack.c.b16 %v1325, %v1324
        %v1335 = vpack.c.b16 %v1327, %v1326
        %1344 = vmatprep.subr.bf16.mxu0 0
        %1345 = vmatpush1.bf16.msra.mxu0 %v1328
        %1346 = vmatprep.subr.bf16.mxu0 0
        %1347 = vmatpush1.bf16.msra.mxu0 %v1329
        %1348 = vmatprep.subr.bf16.mxu0 0
        %1349 = vmatpush1.bf16.msra.mxu0 %v1330
        %1350 = vmatprep.subr.bf16.mxu0 0
        %1351 = vmatpush1.bf16.msra.mxu0 %v1331
        %1352 = vmatprep.subr.bf16.mxu0 0
        %1353 = vmatpush1.bf16.msra.mxu0 %v1332
        %1354 = vmatprep.subr.bf16.mxu0 0
        %1355 = vmatpush1.bf16.msra.mxu0 %v1333
        %1356 = vmatprep.subr.bf16.mxu0 0
        %1357 = vmatpush1.bf16.msra.mxu0 %v1334
        %1358 = vmatprep.subr.bf16.mxu0 0
        %1359 = vmatpush1.bf16.msra.mxu0 %v1335
        %1360 = vmatprep.subr.bf16.mxu0 0
        %1361 = vmatpush1.bf16.msra.mxu0 0
        %1362 = vmatprep.subr.bf16.mxu0 0
        %1363 = vmatpush1.bf16.msra.mxu0 0
        %1364 = vmatprep.subr.bf16.mxu0 0
        %1365 = vmatpush1.bf16.msra.mxu0 0
        %1366 = vmatprep.subr.bf16.mxu0 0
        %1367 = vmatpush1.bf16.msra.mxu0 0
        %1368 = vmatprep.subr.bf16.mxu0 0
        %1369 = vmatpush1.bf16.msra.mxu0 0
        %1370 = vmatprep.subr.bf16.mxu0 0
        %1371 = vmatpush1.bf16.msra.mxu0 0
        %1372 = vmatprep.subr.bf16.mxu0 0
        %1373 = vmatpush1.bf16.msra.mxu0 0
        %1374 = vmatprep.subr.bf16.mxu0 0
        %1375 = vmatpush1.bf16.msra.mxu0 0
        %1376 = vmatprep.mubr.bf16.mxu0 0
        %1377 = vmatmul.mubr.bf16.gmra.mrb[0].mxu0 %v715
        %v1378 = vpop.f32.mrb[0].mxu0
        %v1379 = vadd.f32 0.0, %v1378
        %v1380 = vpop.f32.mrb[0].mxu0
        %v1381 = vpop.f32.mrb[0].mxu0
        %v1382 = vadd.f32 0.0, %v1381
        %v1383 = vpop.f32.mrb[0].mxu0
        %1384 = vdwg.mxu0
        %v1385 = vpack.c.bf16 %v1382, %v1379
        %s1386 = scalar_lea.vmem %s11, 64
        %v1387 = vld [vmem:[%s1386] sm:$0xf]
        %v1388 = vld [vmem:[%s1386 + $0x4] sm:$0xf]
        %v1389 = vld [vmem:[%s1386 + $0x8] sm:$0xf]
        %v1390 = vld [vmem:[%s1386 + $0xc] sm:$0xf]
        %v1391 = vld [vmem:[%s1386 + $0x10] sm:$0xf]
        %v1392 = vld [vmem:[%s1386 + $0x14] sm:$0xf]
        %v1393 = vld [vmem:[%s1386 + $0x18] sm:$0xf]
        %v1394 = vld [vmem:[%s1386 + $0x1c] sm:$0xf]
        %v1395 = vld [vmem:[%s1386 + $0x20] sm:$0xf]
        %v1396 = vld [vmem:[%s1386 + $0x24] sm:$0xf]
        %v1397 = vld [vmem:[%s1386 + $0x28] sm:$0xf]
        %v1398 = vld [vmem:[%s1386 + $0x2c] sm:$0xf]
        %v1399 = vld [vmem:[%s1386 + $0x30] sm:$0xf]
        %v1400 = vld [vmem:[%s1386 + $0x34] sm:$0xf]
        %v1401 = vld [vmem:[%s1386 + $0x38] sm:$0xf]
        %v1402 = vld [vmem:[%s1386 + $0x3c] sm:$0xf]
        %v1419 = vunpack.c.l.b16 %v1387
        %v1420 = vunpack.c.l.b16 %v1388
        %v1421 = vunpack.c.l.b16 %v1389
        %v1422 = vunpack.c.l.b16 %v1390
        %v1423 = vunpack.c.l.b16 %v1391
        %v1424 = vunpack.c.l.b16 %v1392
        %v1425 = vunpack.c.l.b16 %v1393
        %v1426 = vunpack.c.l.b16 %v1394
        %v1427 = vunpack.c.l.b16 %v1395
        %v1428 = vunpack.c.l.b16 %v1396
        %v1429 = vunpack.c.l.b16 %v1397
        %v1430 = vunpack.c.l.b16 %v1398
        %v1431 = vunpack.c.l.b16 %v1399
        %v1432 = vunpack.c.l.b16 %v1400
        %v1433 = vunpack.c.l.b16 %v1401
        %v1434 = vunpack.c.l.b16 %v1402
        %v1435 = vpack.c.b16 %v1420, %v1419
        %v1436 = vpack.c.b16 %v1422, %v1421
        %v1437 = vpack.c.b16 %v1424, %v1423
        %v1438 = vpack.c.b16 %v1426, %v1425
        %v1439 = vpack.c.b16 %v1428, %v1427
        %v1440 = vpack.c.b16 %v1430, %v1429
        %v1441 = vpack.c.b16 %v1432, %v1431
        %v1442 = vpack.c.b16 %v1434, %v1433
        %1451 = vmatprep.subr.bf16.mxu0 0
        %1452 = vmatpush1.bf16.msra.mxu0 %v1435
        %1453 = vmatprep.subr.bf16.mxu0 0
        %1454 = vmatpush1.bf16.msra.mxu0 %v1436
        %1455 = vmatprep.subr.bf16.mxu0 0
        %1456 = vmatpush1.bf16.msra.mxu0 %v1437
        %1457 = vmatprep.subr.bf16.mxu0 0
        %1458 = vmatpush1.bf16.msra.mxu0 %v1438
        %1459 = vmatprep.subr.bf16.mxu0 0
        %1460 = vmatpush1.bf16.msra.mxu0 %v1439
        %1461 = vmatprep.subr.bf16.mxu0 0
        %1462 = vmatpush1.bf16.msra.mxu0 %v1440
        %1463 = vmatprep.subr.bf16.mxu0 0
        %1464 = vmatpush1.bf16.msra.mxu0 %v1441
        %1465 = vmatprep.subr.bf16.mxu0 0
        %1466 = vmatpush1.bf16.msra.mxu0 %v1442
        %1467 = vmatprep.subr.bf16.mxu0 0
        %1468 = vmatpush1.bf16.msra.mxu0 0
        %1469 = vmatprep.subr.bf16.mxu0 0
        %1470 = vmatpush1.bf16.msra.mxu0 0
        %1471 = vmatprep.subr.bf16.mxu0 0
        %1472 = vmatpush1.bf16.msra.mxu0 0
        %1473 = vmatprep.subr.bf16.mxu0 0
        %1474 = vmatpush1.bf16.msra.mxu0 0
        %1475 = vmatprep.subr.bf16.mxu0 0
        %1476 = vmatpush1.bf16.msra.mxu0 0
        %1477 = vmatprep.subr.bf16.mxu0 0
        %1478 = vmatpush1.bf16.msra.mxu0 0
        %1479 = vmatprep.subr.bf16.mxu0 0
        %1480 = vmatpush1.bf16.msra.mxu0 0
        %1481 = vmatprep.subr.bf16.mxu0 0
        %1482 = vmatpush1.bf16.msra.mxu0 0
        %1483 = vmatprep.mubr.bf16.mxu0 0
        %1484 = vmatmul.mubr.bf16.gmra.mrb[0].mxu0 %v715
        %v1485 = vpop.f32.mrb[0].mxu0
        %v1486 = vadd.f32 0.0, %v1485
        %v1487 = vpop.f32.mrb[0].mxu0
        %v1488 = vpop.f32.mrb[0].mxu0
        %v1489 = vadd.f32 0.0, %v1488
        %v1490 = vpop.f32.mrb[0].mxu0
        %1491 = vdwg.mxu0
        %v1492 = vpack.c.bf16 %v1489, %v1486
        %v1494 = vsel %vm1061, %v1278, 0
        %v1497 = vsel %vm1061, %v1385, 0
        %1499 = vmatprep.subr.bf16.mxu0 0
        %1500 = vmatpush1.bf16.xpose.msra.mxu0 %v1497
        %1501 = vmatprep.subr.bf16.mxu0 0
        %1502 = vmatpush1.bf16.xpose.msra.mxu0 0
        %1503 = vmatprep.subr.bf16.mxu0 0
        %1504 = vmatpush1.bf16.xpose.msra.mxu0 0
        %1505 = vmatprep.subr.bf16.mxu0 0
        %1506 = vmatpush1.bf16.xpose.msra.mxu0 0
        %1507 = vmatprep.subr.bf16.mxu0 0
        %1508 = vmatpush1.bf16.xpose.msra.mxu0 0
        %1509 = vmatprep.subr.bf16.mxu0 0
        %1510 = vmatpush1.bf16.xpose.msra.mxu0 0
        %1511 = vmatprep.subr.bf16.mxu0 0
        %1512 = vmatpush1.bf16.xpose.msra.mxu0 0
        %1513 = vmatprep.subr.bf16.mxu0 0
        %1514 = vmatpush1.bf16.xpose.msra.mxu0 0
        %1515 = vmatprep.subr.bf16.mxu0 0
        %1516 = vmatpush1.bf16.xpose.msra.mxu0 0
        %1517 = vmatprep.subr.bf16.mxu0 0
        %1518 = vmatpush1.bf16.xpose.msra.mxu0 0
        %1519 = vmatprep.subr.bf16.mxu0 0
        %1520 = vmatpush1.bf16.xpose.msra.mxu0 0
        %1521 = vmatprep.subr.bf16.mxu0 0
        %1522 = vmatpush1.bf16.xpose.msra.mxu0 0
        %1523 = vmatprep.subr.bf16.mxu0 0
        %1524 = vmatpush1.bf16.xpose.msra.mxu0 0
        %1525 = vmatprep.subr.bf16.mxu0 0
        %1526 = vmatpush1.bf16.xpose.msra.mxu0 0
        %1527 = vmatprep.subr.bf16.mxu0 0
        %1528 = vmatpush1.bf16.xpose.msra.mxu0 0
        %1529 = vmatprep.subr.bf16.mxu0 0
        %1530 = vmatpush1.bf16.xpose.msra.mxu0 0
        %1531 = vmatprep.mubr.bf16.mxu0 0
        %1532 = vmatmul.mubr.bf16.gmra.mrb[0].mxu0 %v1494
        %v1533 = vpop.f32.mrb[0].mxu0
        %v1534 = vadd.f32 0.0, %v1533
        %v1535 = vpop.f32.mrb[0].mxu0
        %v1536 = vpop.f32.mrb[0].mxu0
        %v1537 = vpop.f32.mrb[0].mxu0
        %1538 = vdwg.mxu0
        %v1539 = vsel %vm1108, %v1534, -inf
        %1540 = vmax.xlane.f32.xlu0 %v1539
        %v1541 = vpop.xlane.xlu0 %1540
        %v1542 = vsub.f32 %v1534, %v1541
        %v1543 = vmul.f32 %v1542, 1.442695
        %v1544 = vpow.pop %v1543
        %v1545 = vsel %vm1108, %v1544, 0.0
        %1546 = vadd.xlane.f32.xlu0 %v1545
        %v1547 = vpop.xlane.xlu0 %1546
        %v1548 = vrcp.pop %v1547
        %v1549 = vmul.f32 %v1544, %v1548
        %v1550 = vpack.c.bf16 %v1549, %v1549
        %v1552 = vsel %vm1108, %v1550, 0
        %1554 = vmatprep.subr.bf16.mxu0 0
        %1555 = vmatpush1.bf16.msra.mxu0 %v1492
        %1556 = vmatprep.subr.bf16.mxu0 0
        %1557 = vmatpush1.bf16.msra.mxu0 0
        %1558 = vmatprep.subr.bf16.mxu0 0
        %1559 = vmatpush1.bf16.msra.mxu0 0
        %1560 = vmatprep.subr.bf16.mxu0 0
        %1561 = vmatpush1.bf16.msra.mxu0 0
        %1562 = vmatprep.subr.bf16.mxu0 0
        %1563 = vmatpush1.bf16.msra.mxu0 0
        %1564 = vmatprep.subr.bf16.mxu0 0
        %1565 = vmatpush1.bf16.msra.mxu0 0
        %1566 = vmatprep.subr.bf16.mxu0 0
        %1567 = vmatpush1.bf16.msra.mxu0 0
        %1568 = vmatprep.subr.bf16.mxu0 0
        %1569 = vmatpush1.bf16.msra.mxu0 0
        %1570 = vmatprep.subr.bf16.mxu0 0
        %1571 = vmatpush1.bf16.msra.mxu0 0
        %1572 = vmatprep.subr.bf16.mxu0 0
        %1573 = vmatpush1.bf16.msra.mxu0 0
        %1574 = vmatprep.subr.bf16.mxu0 0
        %1575 = vmatpush1.bf16.msra.mxu0 0
        %1576 = vmatprep.subr.bf16.mxu0 0
        %1577 = vmatpush1.bf16.msra.mxu0 0
        %1578 = vmatprep.subr.bf16.mxu0 0
        %1579 = vmatpush1.bf16.msra.mxu0 0
        %1580 = vmatprep.subr.bf16.mxu0 0
        %1581 = vmatpush1.bf16.msra.mxu0 0
        %1582 = vmatprep.subr.bf16.mxu0 0
        %1583 = vmatpush1.bf16.msra.mxu0 0
        %1584 = vmatprep.subr.bf16.mxu0 0
        %1585 = vmatpush1.bf16.msra.mxu0 0
        %1586 = vmatprep.mubr.bf16.mxu0 0
        %1587 = vmatmul.mubr.bf16.gmra.mrb[0].mxu0 %v1552
        %v1588 = vpop.f32.mrb[0].mxu0
        %v1589 = vadd.f32 0.0, %v1588
        %v1590 = vpop.f32.mrb[0].mxu0
        %v1591 = vpop.f32.mrb[0].mxu0
        %v1592 = vpop.f32.mrb[0].mxu0
        %1593 = vdwg.mxu0
        %v1594 = vpack.c.bf16 %v1589, %v1589
        %s1595 = scalar_lea.vmem [#allocation10], 32
        %v1596 = vld [vmem:[%s1595] sm:$0xf]
        %v1597 = vld [vmem:[%s1595 + $0x4] sm:$0xf]
        %v1598 = vld [vmem:[%s1595 + $0x8] sm:$0xf]
        %v1599 = vld [vmem:[%s1595 + $0xc] sm:$0xf]
        %v1600 = vld [vmem:[%s1595 + $0x10] sm:$0xf]
        %v1601 = vld [vmem:[%s1595 + $0x14] sm:$0xf]
        %v1602 = vld [vmem:[%s1595 + $0x18] sm:$0xf]
        %v1603 = vld [vmem:[%s1595 + $0x1c] sm:$0xf]
        %v1612 = vunpack.c.l.b16 %v1596
        %v1613 = vunpack.c.l.b16 %v1597
        %v1614 = vunpack.c.l.b16 %v1598
        %v1615 = vunpack.c.l.b16 %v1599
        %v1616 = vunpack.c.l.b16 %v1600
        %v1617 = vunpack.c.l.b16 %v1601
        %v1618 = vunpack.c.l.b16 %v1602
        %v1619 = vunpack.c.l.b16 %v1603
        %v1620 = vpack.c.b16 %v1613, %v1612
        %v1621 = vpack.c.b16 %v1615, %v1614
        %v1622 = vpack.c.b16 %v1617, %v1616
        %v1623 = vpack.c.b16 %v1619, %v1618
        %v1629 = vsel %vm1061, %v1594, 0
        %1631 = vmatprep.subr.bf16.mxu0 0
        %1632 = vmatpush1.bf16.msra.mxu0 %v1620
        %1633 = vmatprep.subr.bf16.mxu0 0
        %1634 = vmatpush1.bf16.msra.mxu0 %v1621
        %1635 = vmatprep.subr.bf16.mxu0 0
        %1636 = vmatpush1.bf16.msra.mxu0 %v1622
        %1637 = vmatprep.subr.bf16.mxu0 0
        %1638 = vmatpush1.bf16.msra.mxu0 %v1623
        %1639 = vmatprep.subr.bf16.mxu0 0
        %1640 = vmatpush1.bf16.msra.mxu0 0
        %1641 = vmatprep.subr.bf16.mxu0 0
        %1642 = vmatpush1.bf16.msra.mxu0 0
        %1643 = vmatprep.subr.bf16.mxu0 0
        %1644 = vmatpush1.bf16.msra.mxu0 0
        %1645 = vmatprep.subr.bf16.mxu0 0
        %1646 = vmatpush1.bf16.msra.mxu0 0
        %1647 = vmatprep.subr.bf16.mxu0 0
        %1648 = vmatpush1.bf16.msra.mxu0 0
        %1649 = vmatprep.subr.bf16.mxu0 0
        %1650 = vmatpush1.bf16.msra.mxu0 0
        %1651 = vmatprep.subr.bf16.mxu0 0
        %1652 = vmatpush1.bf16.msra.mxu0 0
        %1653 = vmatprep.subr.bf16.mxu0 0
        %1654 = vmatpush1.bf16.msra.mxu0 0
        %1655 = vmatprep.subr.bf16.mxu0 0
        %1656 = vmatpush1.bf16.msra.mxu0 0
        %1657 = vmatprep.subr.bf16.mxu0 0
        %1658 = vmatpush1.bf16.msra.mxu0 0
        %1659 = vmatprep.subr.bf16.mxu0 0
        %1660 = vmatpush1.bf16.msra.mxu0 0
        %1661 = vmatprep.subr.bf16.mxu0 0
        %1662 = vmatpush1.bf16.msra.mxu0 0
        %1663 = vmatprep.mubr.bf16.mxu0 0
        %1664 = vmatmul.mubr.bf16.gmra.mrb[0].mxu0 %v1629
        %v1665 = vpop.f32.mrb[0].mxu0
        %v1666 = vadd.f32 0.0, %v1665
        %v1667 = vpop.f32.mrb[0].mxu0
        %v1668 = vpop.f32.mrb[0].mxu0
        %v1669 = vpop.f32.mrb[0].mxu0
        %1670 = vdwg.mxu0
        %v1679 = vunpack.c.l.b16 %v1165
        %v1680 = vunpack.c.l.b16 %v1166
        %v1681 = vunpack.c.l.b16 %v1167
        %v1682 = vunpack.c.l.b16 %v1168
        %v1683 = vunpack.c.l.b16 %v1169
        %v1684 = vunpack.c.l.b16 %v1170
        %v1685 = vunpack.c.l.b16 %v1171
        %v1686 = vunpack.c.l.b16 %v1172
        %v1687 = vpack.c.b16 %v1680, %v1679
        %v1688 = vpack.c.b16 %v1682, %v1681
        %v1689 = vpack.c.b16 %v1684, %v1683
        %v1690 = vpack.c.b16 %v1686, %v1685
        %v1696 = vsel %vm1061, %v1164, 0
        %1698 = vmatprep.subr.bf16.mxu0 0
        %1699 = vmatpush1.bf16.msra.mxu0 %v1687
        %1700 = vmatprep.subr.bf16.mxu0 0
        %1701 = vmatpush1.bf16.msra.mxu0 %v1688
        %1702 = vmatprep.subr.bf16.mxu0 0
        %1703 = vmatpush1.bf16.msra.mxu0 %v1689
        %1704 = vmatprep.subr.bf16.mxu0 0
        %1705 = vmatpush1.bf16.msra.mxu0 %v1690
        %1706 = vmatprep.subr.bf16.mxu0 0
        %1707 = vmatpush1.bf16.msra.mxu0 0
        %1708 = vmatprep.subr.bf16.mxu0 0
        %1709 = vmatpush1.bf16.msra.mxu0 0
        %1710 = vmatprep.subr.bf16.mxu0 0
        %1711 = vmatpush1.bf16.msra.mxu0 0
        %1712 = vmatprep.subr.bf16.mxu0 0
        %1713 = vmatpush1.bf16.msra.mxu0 0
        %1714 = vmatprep.subr.bf16.mxu0 0
        %1715 = vmatpush1.bf16.msra.mxu0 0
        %1716 = vmatprep.subr.bf16.mxu0 0
        %1717 = vmatpush1.bf16.msra.mxu0 0
        %1718 = vmatprep.subr.bf16.mxu0 0
        %1719 = vmatpush1.bf16.msra.mxu0 0
        %1720 = vmatprep.subr.bf16.mxu0 0
        %1721 = vmatpush1.bf16.msra.mxu0 0
        %1722 = vmatprep.subr.bf16.mxu0 0
        %1723 = vmatpush1.bf16.msra.mxu0 0
        %1724 = vmatprep.subr.bf16.mxu0 0
        %1725 = vmatpush1.bf16.msra.mxu0 0
        %1726 = vmatprep.subr.bf16.mxu0 0
        %1727 = vmatpush1.bf16.msra.mxu0 0
        %1728 = vmatprep.subr.bf16.mxu0 0
        %1729 = vmatpush1.bf16.msra.mxu0 0
        %1730 = vmatprep.mubr.bf16.mxu0 0
        %1731 = vmatmul.mubr.bf16.gmra.mrb[0].mxu0 %v1696
        %v1732 = vpop.f32.mrb[0].mxu0
        %v1733 = vadd.f32 %v1666, %v1732
        %v1734 = vpop.f32.mrb[0].mxu0
        %v1735 = vpop.f32.mrb[0].mxu0
        %v1736 = vpop.f32.mrb[0].mxu0
        %1737 = vdwg.mxu0
        %v1738 = vadd.f32 %v671, %v1733
        %v1739 = vld [vmem:[%s13] sm:$0x1]
        %v1741 = vlaneseq
        %v1742 = vshrl.u32 %v1741, 7
        %v1743 = vsub.s32 0, %v1742
        %v1744 = vrot.slane %v1739, %v1743
        %v1746 = vadd.f32 %v1738, %v1744
        %v1747 = vld [vmem:[%s7] sm:$0x1]
        %v1748 = vld [vmem:[%s8] sm:$0x1]
        %1749 = vadd.xlane.f32.xlu0 %v1746
        %v1750 = vpop.xlane.xlu0 %1749
        %v1751 = vmul.f32 %v1750, %v680
        %v1752 = vsub.f32 %v1746, %v1751
        %v1753 = vmul.f32 %v1752, %v1752
        %1754 = vadd.xlane.f32.xlu0 %v1753
        %v1755 = vpop.xlane.xlu0 %1754
        %v1756 = vmul.f32 %v1755, %v680
        %v1757 = vadd.f32 %v1756, 1e-05
        %v1758 = vrsqrt.pop %v1757
        %v1759 = vmul.f32 %v1752, %v1758
        %v1761 = vlaneseq
        %v1762 = vshrl.u32 %v1761, 7
        %v1763 = vsub.s32 0, %v1762
        %v1764 = vrot.slane %v1747, %v1763
        %v1766 = vmul.f32 %v1759, %v1764
        %v1768 = vlaneseq
        %v1769 = vshrl.u32 %v1768, 7
        %v1770 = vsub.s32 0, %v1769
        %v1771 = vrot.slane %v1748, %v1770
        %v1773 = vadd.f32 %v1766, %v1771
        %v1774 = vpack.c.bf16 %v1773, %v1773
        %v1775 = vld [vmem:[%s14] sm:$0xff]
        %v1776 = vld [vmem:[%s14 + $0x8] sm:$0xff]
        %v1777 = vld [vmem:[%s14 + $0x10] sm:$0xff]
        %v1778 = vld [vmem:[%s14 + $0x18] sm:$0xff]
        %v1779 = vld [vmem:[%s14 + $0x20] sm:$0xff]
        %v1780 = vld [vmem:[%s14 + $0x28] sm:$0xff]
        %v1781 = vld [vmem:[%s14 + $0x30] sm:$0xff]
        %v1782 = vld [vmem:[%s14 + $0x38] sm:$0xff]
        %v1783 = vld [vmem:[%s14 + $0x40] sm:$0xff]
        %v1784 = vld [vmem:[%s14 + $0x48] sm:$0xff]
        %v1785 = vld [vmem:[%s14 + $0x50] sm:$0xff]
        %v1786 = vld [vmem:[%s14 + $0x58] sm:$0xff]
        %v1787 = vld [vmem:[%s14 + $0x60] sm:$0xff]
        %v1788 = vld [vmem:[%s14 + $0x68] sm:$0xff]
        %v1789 = vld [vmem:[%s14 + $0x70] sm:$0xff]
        %v1790 = vld [vmem:[%s14 + $0x78] sm:$0xff]
        %v1791 = vld [vmem:[%s14 + $0x80] sm:$0xff]
        %v1792 = vld [vmem:[%s14 + $0x88] sm:$0xff]
        %v1793 = vld [vmem:[%s14 + $0x90] sm:$0xff]
        %v1794 = vld [vmem:[%s14 + $0x98] sm:$0xff]
        %v1795 = vld [vmem:[%s14 + $0xa0] sm:$0xff]
        %v1796 = vld [vmem:[%s14 + $0xa8] sm:$0xff]
        %v1797 = vld [vmem:[%s14 + $0xb0] sm:$0xff]
        %v1798 = vld [vmem:[%s14 + $0xb8] sm:$0xff]
        %v1799 = vld [vmem:[%s14 + $0xc0] sm:$0xff]
        %v1800 = vld [vmem:[%s14 + $0xc8] sm:$0xff]
        %v1801 = vld [vmem:[%s14 + $0xd0] sm:$0xff]
        %v1802 = vld [vmem:[%s14 + $0xd8] sm:$0xff]
        %v1803 = vld [vmem:[%s14 + $0xe0] sm:$0xff]
        %v1804 = vld [vmem:[%s14 + $0xe8] sm:$0xff]
        %v1805 = vld [vmem:[%s14 + $0xf0] sm:$0xff]
        %v1806 = vld [vmem:[%s14 + $0xf8] sm:$0xff]
        %v1807 = vld [vmem:[%s15] sm:$0xf]
        %v1809 = vlaneseq
        %v1810 = vshrl.u32 %v1809, 7
        %v1811 = vsub.s32 0, %v1810
        %v1812 = vrot.slane %v1807, %v1811
        %v1813 = vlaneseq
        %v1814 = vshrl.u32 %v1813, 7
        %v1815 = vsub.s32 1, %v1814
        %v1816 = vrot.slane %v1807, %v1815
        %v1817 = vlaneseq
        %v1818 = vshrl.u32 %v1817, 7
        %v1819 = vsub.s32 2, %v1818
        %v1820 = vrot.slane %v1807, %v1819
        %v1821 = vlaneseq
        %v1822 = vshrl.u32 %v1821, 7
        %v1823 = vsub.s32 3, %v1822
        %v1824 = vrot.slane %v1807, %v1823
        %v1861 = vunpack.c.l.b16 %v1775
        %v1862 = vunpack.c.h.b16 %v1775
        %v1863 = vunpack.c.l.b16 %v1776
        %v1864 = vunpack.c.h.b16 %v1776
        %v1865 = vunpack.c.l.b16 %v1777
        %v1866 = vunpack.c.h.b16 %v1777
        %v1867 = vunpack.c.l.b16 %v1778
        %v1868 = vunpack.c.h.b16 %v1778
        %v1869 = vunpack.c.l.b16 %v1779
        %v1870 = vunpack.c.h.b16 %v1779
        %v1871 = vunpack.c.l.b16 %v1780
        %v1872 = vunpack.c.h.b16 %v1780
        %v1873 = vunpack.c.l.b16 %v1781
        %v1874 = vunpack.c.h.b16 %v1781
        %v1875 = vunpack.c.l.b16 %v1782
        %v1876 = vunpack.c.h.b16 %v1782
        %v1877 = vunpack.c.l.b16 %v1783
        %v1878 = vunpack.c.h.b16 %v1783
        %v1879 = vunpack.c.l.b16 %v1784
        %v1880 = vunpack.c.h.b16 %v1784
        %v1881 = vunpack.c.l.b16 %v1785
        %v1882 = vunpack.c.h.b16 %v1785
        %v1883 = vunpack.c.l.b16 %v1786
        %v1884 = vunpack.c.h.b16 %v1786
        %v1885 = vunpack.c.l.b16 %v1787
        %v1886 = vunpack.c.h.b16 %v1787
        %v1887 = vunpack.c.l.b16 %v1788
        %v1888 = vunpack.c.h.b16 %v1788
        %v1889 = vunpack.c.l.b16 %v1789
        %v1890 = vunpack.c.h.b16 %v1789
        %v1891 = vunpack.c.l.b16 %v1790
        %v1892 = vunpack.c.h.b16 %v1790
        %v1893 = vunpack.c.l.b16 %v1791
        %v1894 = vunpack.c.h.b16 %v1791
        %v1895 = vunpack.c.l.b16 %v1792
        %v1896 = vunpack.c.h.b16 %v1792
        %v1897 = vunpack.c.l.b16 %v1793
        %v1898 = vunpack.c.h.b16 %v1793
        %v1899 = vunpack.c.l.b16 %v1794
        %v1900 = vunpack.c.h.b16 %v1794
        %v1901 = vunpack.c.l.b16 %v1795
        %v1902 = vunpack.c.h.b16 %v1795
        %v1903 = vunpack.c.l.b16 %v1796
        %v1904 = vunpack.c.h.b16 %v1796
        %v1905 = vunpack.c.l.b16 %v1797
        %v1906 = vunpack.c.h.b16 %v1797
        %v1907 = vunpack.c.l.b16 %v1798
        %v1908 = vunpack.c.h.b16 %v1798
        %v1909 = vunpack.c.l.b16 %v1799
        %v1910 = vunpack.c.h.b16 %v1799
        %v1911 = vunpack.c.l.b16 %v1800
        %v1912 = vunpack.c.h.b16 %v1800
        %v1913 = vunpack.c.l.b16 %v1801
        %v1914 = vunpack.c.h.b16 %v1801
        %v1915 = vunpack.c.l.b16 %v1802
        %v1916 = vunpack.c.h.b16 %v1802
        %v1917 = vunpack.c.l.b16 %v1803
        %v1918 = vunpack.c.h.b16 %v1803
        %v1919 = vunpack.c.l.b16 %v1804
        %v1920 = vunpack.c.h.b16 %v1804
        %v1921 = vunpack.c.l.b16 %v1805
        %v1922 = vunpack.c.h.b16 %v1805
        %v1923 = vunpack.c.l.b16 %v1806
        %v1924 = vunpack.c.h.b16 %v1806
        %v1925 = vpack.c.b16 %v1865, %v1861
        %v1926 = vpack.c.b16 %v1866, %v1862
        %v1927 = vpack.c.b16 %v1867, %v1863
        %v1928 = vpack.c.b16 %v1868, %v1864
        %v1929 = vpack.c.b16 %v1873, %v1869
        %v1930 = vpack.c.b16 %v1874, %v1870
        %v1931 = vpack.c.b16 %v1875, %v1871
        %v1932 = vpack.c.b16 %v1876, %v1872
        %v1933 = vpack.c.b16 %v1881, %v1877
        %v1934 = vpack.c.b16 %v1882, %v1878
        %v1935 = vpack.c.b16 %v1883, %v1879
        %v1936 = vpack.c.b16 %v1884, %v1880
        %v1937 = vpack.c.b16 %v1889, %v1885
        %v1938 = vpack.c.b16 %v1890, %v1886
        %v1939 = vpack.c.b16 %v1891, %v1887
        %v1940 = vpack.c.b16 %v1892, %v1888
        %v1941 = vpack.c.b16 %v1897, %v1893
        %v1942 = vpack.c.b16 %v1898, %v1894
        %v1943 = vpack.c.b16 %v1899, %v1895
        %v1944 = vpack.c.b16 %v1900, %v1896
        %v1945 = vpack.c.b16 %v1905, %v1901
        %v1946 = vpack.c.b16 %v1906, %v1902
        %v1947 = vpack.c.b16 %v1907, %v1903
        %v1948 = vpack.c.b16 %v1908, %v1904
        %v1949 = vpack.c.b16 %v1913, %v1909
        %v1950 = vpack.c.b16 %v1914, %v1910
        %v1951 = vpack.c.b16 %v1915, %v1911
        %v1952 = vpack.c.b16 %v1916, %v1912
        %v1953 = vpack.c.b16 %v1921, %v1917
        %v1954 = vpack.c.b16 %v1922, %v1918
        %v1955 = vpack.c.b16 %v1923, %v1919
        %v1956 = vpack.c.b16 %v1924, %v1920
        %1989 = vmatprep.subr.bf16.mxu0 %v1926
        %1990 = vmatpush1.bf16.msra.mxu0 %v1925
        %1991 = vmatprep.subr.bf16.mxu0 %v1930
        %1992 = vmatpush1.bf16.msra.mxu0 %v1929
        %1993 = vmatprep.subr.bf16.mxu0 %v1934
        %1994 = vmatpush1.bf16.msra.mxu0 %v1933
        %1995 = vmatprep.subr.bf16.mxu0 %v1938
        %1996 = vmatpush1.bf16.msra.mxu0 %v1937
        %1997 = vmatprep.subr.bf16.mxu0 %v1942
        %1998 = vmatpush1.bf16.msra.mxu0 %v1941
        %1999 = vmatprep.subr.bf16.mxu0 %v1946
        %2000 = vmatpush1.bf16.msra.mxu0 %v1945
        %2001 = vmatprep.subr.bf16.mxu0 %v1950
        %2002 = vmatpush1.bf16.msra.mxu0 %v1949
        %2003 = vmatprep.subr.bf16.mxu0 %v1954
        %2004 = vmatpush1.bf16.msra.mxu0 %v1953
        %2005 = vmatprep.subr.bf16.mxu0 0
        %2006 = vmatpush1.bf16.msra.mxu0 0
        %2007 = vmatprep.subr.bf16.mxu0 0
        %2008 = vmatpush1.bf16.msra.mxu0 0
        %2009 = vmatprep.subr.bf16.mxu0 0
        %2010 = vmatpush1.bf16.msra.mxu0 0
        %2011 = vmatprep.subr.bf16.mxu0 0
        %2012 = vmatpush1.bf16.msra.mxu0 0
        %2013 = vmatprep.subr.bf16.mxu0 0
        %2014 = vmatpush1.bf16.msra.mxu0 0
        %2015 = vmatprep.subr.bf16.mxu0 0
        %2016 = vmatpush1.bf16.msra.mxu0 0
        %2017 = vmatprep.subr.bf16.mxu0 0
        %2018 = vmatpush1.bf16.msra.mxu0 0
        %2019 = vmatprep.subr.bf16.mxu0 0
        %2020 = vmatpush1.bf16.msra.mxu0 0
        %2021 = vmatprep.mubr.bf16.mxu0 0
        %2022 = vmatmul.mubr.bf16.gmra.mrb[0].mxu0 %v1774
        %v2023 = vpop.f32.mrb[0].mxu0
        %v2024 = vadd.f32 %v1812, %v2023
        %v2025 = vpop.f32.mrb[0].mxu0
        %v2026 = vadd.f32 %v1816, %v2025
        %v2027 = vpop.f32.mrb[0].mxu0
        %v2028 = vpop.f32.mrb[0].mxu0
        %2029 = vdwg.mxu0
        %2030 = vmatprep.subr.bf16.mxu0 %v1928
        %2031 = vmatpush1.bf16.msra.mxu0 %v1927
        %2032 = vmatprep.subr.bf16.mxu0 %v1932
        %2033 = vmatpush1.bf16.msra.mxu0 %v1931
        %2034 = vmatprep.subr.bf16.mxu0 %v1936
        %2035 = vmatpush1.bf16.msra.mxu0 %v1935
        %2036 = vmatprep.subr.bf16.mxu0 %v1940
        %2037 = vmatpush1.bf16.msra.mxu0 %v1939
        %2038 = vmatprep.subr.bf16.mxu0 %v1944
        %2039 = vmatpush1.bf16.msra.mxu0 %v1943
        %2040 = vmatprep.subr.bf16.mxu0 %v1948
        %2041 = vmatpush1.bf16.msra.mxu0 %v1947
        %2042 = vmatprep.subr.bf16.mxu0 %v1952
        %2043 = vmatpush1.bf16.msra.mxu0 %v1951
        %2044 = vmatprep.subr.bf16.mxu0 %v1956
        %2045 = vmatpush1.bf16.msra.mxu0 %v1955
        %2046 = vmatprep.subr.bf16.mxu0 0
        %2047 = vmatpush1.bf16.msra.mxu0 0
        %2048 = vmatprep.subr.bf16.mxu0 0
        %2049 = vmatpush1.bf16.msra.mxu0 0
        %2050 = vmatprep.subr.bf16.mxu0 0
        %2051 = vmatpush1.bf16.msra.mxu0 0
        %2052 = vmatprep.subr.bf16.mxu0 0
        %2053 = vmatpush1.bf16.msra.mxu0 0
        %2054 = vmatprep.subr.bf16.mxu0 0
        %2055 = vmatpush1.bf16.msra.mxu0 0
        %2056 = vmatprep.subr.bf16.mxu0 0
        %2057 = vmatpush1.bf16.msra.mxu0 0
        %2058 = vmatprep.subr.bf16.mxu0 0
        %2059 = vmatpush1.bf16.msra.mxu0 0
        %2060 = vmatprep.subr.bf16.mxu0 0
        %2061 = vmatpush1.bf16.msra.mxu0 0
        %2062 = vmatprep.mubr.bf16.mxu0 0
        %2063 = vmatmul.mubr.bf16.gmra.mrb[0].mxu0 %v1774
        %v2064 = vpop.f32.mrb[0].mxu0
        %v2065 = vadd.f32 %v1820, %v2064
        %v2066 = vpop.f32.mrb[0].mxu0
        %v2067 = vadd.f32 %v1824, %v2066
        %v2068 = vpop.f32.mrb[0].mxu0
        %v2069 = vpop.f32.mrb[0].mxu0
        %2070 = vdwg.mxu0
        %v2071 = vmul.f32 %v2024, 1.702
        %v2072 = vmul.f32 %v2026, 1.702
        %v2073 = vmul.f32 %v2065, 1.702
        %v2074 = vmul.f32 %v2067, 1.702
        %v2075 = vxor.u32 %v2071, 2147483648
        %v2076 = vxor.u32 %v2072, 2147483648
        %v2077 = vxor.u32 %v2073, 2147483648
        %v2078 = vxor.u32 %v2074, 2147483648
        %v2079 = vmul.f32 %v2075, 1.442695
        %v2080 = vpow.pop %v2079
        %v2081 = vmul.f32 %v2076, 1.442695
        %v2082 = vpow.pop %v2081
        %v2083 = vmul.f32 %v2077, 1.442695
        %v2084 = vpow.pop %v2083
        %v2085 = vmul.f32 %v2078, 1.442695
        %v2086 = vpow.pop %v2085
        %v2087 = vadd.f32 %v2080, 1.0
        %v2088 = vadd.f32 %v2082, 1.0
        %v2089 = vadd.f32 %v2084, 1.0
        %v2090 = vadd.f32 %v2086, 1.0
        %v2091 = vrcp.pop %v2087
        %v2092 = vmul.f32 1.0, %v2091
        %v2093 = vrcp.pop %v2088
        %v2094 = vmul.f32 1.0, %v2093
        %v2095 = vrcp.pop %v2089
        %v2096 = vmul.f32 1.0, %v2095
        %v2097 = vrcp.pop %v2090
        %v2098 = vmul.f32 1.0, %v2097
        %v2099 = vmul.f32 %v2024, %v2092
        %v2100 = vmul.f32 %v2026, %v2094
        %v2101 = vmul.f32 %v2065, %v2096
        %v2102 = vmul.f32 %v2067, %v2098
        %v2103 = vpack.c.bf16 %v2099, %v2099
        %v2104 = vpack.c.bf16 %v2100, %v2100
        %v2105 = vpack.c.bf16 %v2101, %v2101
        %v2106 = vpack.c.bf16 %v2102, %v2102
        %v2107 = vld [vmem:[%s16] sm:$0xf]
        %v2108 = vld [vmem:[%s16 + $0x4] sm:$0xf]
        %v2109 = vld [vmem:[%s16 + $0x8] sm:$0xf]
        %v2110 = vld [vmem:[%s16 + $0xc] sm:$0xf]
        %v2111 = vld [vmem:[%s16 + $0x10] sm:$0xf]
        %v2112 = vld [vmem:[%s16 + $0x14] sm:$0xf]
        %v2113 = vld [vmem:[%s16 + $0x18] sm:$0xf]
        %v2114 = vld [vmem:[%s16 + $0x1c] sm:$0xf]
        %v2115 = vld [vmem:[%s16 + $0x20] sm:$0xf]
        %v2116 = vld [vmem:[%s16 + $0x24] sm:$0xf]
        %v2117 = vld [vmem:[%s16 + $0x28] sm:$0xf]
        %v2118 = vld [vmem:[%s16 + $0x2c] sm:$0xf]
        %v2119 = vld [vmem:[%s16 + $0x30] sm:$0xf]
        %v2120 = vld [vmem:[%s16 + $0x34] sm:$0xf]
        %v2121 = vld [vmem:[%s16 + $0x38] sm:$0xf]
        %v2122 = vld [vmem:[%s16 + $0x3c] sm:$0xf]
        %v2123 = vld [vmem:[%s16 + $0x40] sm:$0xf]
        %v2124 = vld [vmem:[%s16 + $0x44] sm:$0xf]
        %v2125 = vld [vmem:[%s16 + $0x48] sm:$0xf]
        %v2126 = vld [vmem:[%s16 + $0x4c] sm:$0xf]
        %v2127 = vld [vmem:[%s16 + $0x50] sm:$0xf]
        %v2128 = vld [vmem:[%s16 + $0x54] sm:$0xf]
        %v2129 = vld [vmem:[%s16 + $0x58] sm:$0xf]
        %v2130 = vld [vmem:[%s16 + $0x5c] sm:$0xf]
        %v2131 = vld [vmem:[%s16 + $0x60] sm:$0xf]
        %v2132 = vld [vmem:[%s16 + $0x64] sm:$0xf]
        %v2133 = vld [vmem:[%s16 + $0x68] sm:$0xf]
        %v2134 = vld [vmem:[%s16 + $0x6c] sm:$0xf]
        %v2135 = vld [vmem:[%s16 + $0x70] sm:$0xf]
        %v2136 = vld [vmem:[%s16 + $0x74] sm:$0xf]
        %v2137 = vld [vmem:[%s16 + $0x78] sm:$0xf]
        %v2138 = vld [vmem:[%s16 + $0x7c] sm:$0xf]
        %v2139 = vld [vmem:[%s16 + $0x80] sm:$0xf]
        %v2140 = vld [vmem:[%s16 + $0x84] sm:$0xf]
        %v2141 = vld [vmem:[%s16 + $0x88] sm:$0xf]
        %v2142 = vld [vmem:[%s16 + $0x8c] sm:$0xf]
        %v2143 = vld [vmem:[%s16 + $0x90] sm:$0xf]
        %v2144 = vld [vmem:[%s16 + $0x94] sm:$0xf]
        %v2145 = vld [vmem:[%s16 + $0x98] sm:$0xf]
        %v2146 = vld [vmem:[%s16 + $0x9c] sm:$0xf]
        %v2147 = vld [vmem:[%s16 + $0xa0] sm:$0xf]
        %v2148 = vld [vmem:[%s16 + $0xa4] sm:$0xf]
        %v2149 = vld [vmem:[%s16 + $0xa8] sm:$0xf]
        %v2150 = vld [vmem:[%s16 + $0xac] sm:$0xf]
        %v2151 = vld [vmem:[%s16 + $0xb0] sm:$0xf]
        %v2152 = vld [vmem:[%s16 + $0xb4] sm:$0xf]
        %v2153 = vld [vmem:[%s16 + $0xb8] sm:$0xf]
        %v2154 = vld [vmem:[%s16 + $0xbc] sm:$0xf]
        %v2155 = vld [vmem:[%s16 + $0xc0] sm:$0xf]
        %v2156 = vld [vmem:[%s16 + $0xc4] sm:$0xf]
        %v2157 = vld [vmem:[%s16 + $0xc8] sm:$0xf]
        %v2158 = vld [vmem:[%s16 + $0xcc] sm:$0xf]
        %v2159 = vld [vmem:[%s16 + $0xd0] sm:$0xf]
        %v2160 = vld [vmem:[%s16 + $0xd4] sm:$0xf]
        %v2161 = vld [vmem:[%s16 + $0xd8] sm:$0xf]
        %v2162 = vld [vmem:[%s16 + $0xdc] sm:$0xf]
        %v2163 = vld [vmem:[%s16 + $0xe0] sm:$0xf]
        %v2164 = vld [vmem:[%s16 + $0xe4] sm:$0xf]
        %v2165 = vld [vmem:[%s16 + $0xe8] sm:$0xf]
        %v2166 = vld [vmem:[%s16 + $0xec] sm:$0xf]
        %v2167 = vld [vmem:[%s16 + $0xf0] sm:$0xf]
        %v2168 = vld [vmem:[%s16 + $0xf4] sm:$0xf]
        %v2169 = vld [vmem:[%s16 + $0xf8] sm:$0xf]
        %v2170 = vld [vmem:[%s16 + $0xfc] sm:$0xf]
        %v2171 = vld [vmem:[%s17] sm:$0x1]
        %v2173 = vlaneseq
        %v2174 = vshrl.u32 %v2173, 7
        %v2175 = vsub.s32 0, %v2174
        %v2176 = vrot.slane %v2171, %v2175
        %v2242 = vunpack.c.l.b16 %v2107
        %v2243 = vunpack.c.l.b16 %v2108
        %v2244 = vunpack.c.l.b16 %v2109
        %v2245 = vunpack.c.l.b16 %v2110
        %v2246 = vunpack.c.l.b16 %v2111
        %v2247 = vunpack.c.l.b16 %v2112
        %v2248 = vunpack.c.l.b16 %v2113
        %v2249 = vunpack.c.l.b16 %v2114
        %v2250 = vunpack.c.l.b16 %v2115
        %v2251 = vunpack.c.l.b16 %v2116
        %v2252 = vunpack.c.l.b16 %v2117
        %v2253 = vunpack.c.l.b16 %v2118
        %v2254 = vunpack.c.l.b16 %v2119
        %v2255 = vunpack.c.l.b16 %v2120
        %v2256 = vunpack.c.l.b16 %v2121
        %v2257 = vunpack.c.l.b16 %v2122
        %v2258 = vunpack.c.l.b16 %v2123
        %v2259 = vunpack.c.l.b16 %v2124
        %v2260 = vunpack.c.l.b16 %v2125
        %v2261 = vunpack.c.l.b16 %v2126
        %v2262 = vunpack.c.l.b16 %v2127
        %v2263 = vunpack.c.l.b16 %v2128
        %v2264 = vunpack.c.l.b16 %v2129
        %v2265 = vunpack.c.l.b16 %v2130
        %v2266 = vunpack.c.l.b16 %v2131
        %v2267 = vunpack.c.l.b16 %v2132
        %v2268 = vunpack.c.l.b16 %v2133
        %v2269 = vunpack.c.l.b16 %v2134
        %v2270 = vunpack.c.l.b16 %v2135
        %v2271 = vunpack.c.l.b16 %v2136
        %v2272 = vunpack.c.l.b16 %v2137
        %v2273 = vunpack.c.l.b16 %v2138
        %v2274 = vunpack.c.l.b16 %v2139
        %v2275 = vunpack.c.l.b16 %v2140
        %v2276 = vunpack.c.l.b16 %v2141
        %v2277 = vunpack.c.l.b16 %v2142
        %v2278 = vunpack.c.l.b16 %v2143
        %v2279 = vunpack.c.l.b16 %v2144
        %v2280 = vunpack.c.l.b16 %v2145
        %v2281 = vunpack.c.l.b16 %v2146
        %v2282 = vunpack.c.l.b16 %v2147
        %v2283 = vunpack.c.l.b16 %v2148
        %v2284 = vunpack.c.l.b16 %v2149
        %v2285 = vunpack.c.l.b16 %v2150
        %v2286 = vunpack.c.l.b16 %v2151
        %v2287 = vunpack.c.l.b16 %v2152
        %v2288 = vunpack.c.l.b16 %v2153
        %v2289 = vunpack.c.l.b16 %v2154
        %v2290 = vunpack.c.l.b16 %v2155
        %v2291 = vunpack.c.l.b16 %v2156
        %v2292 = vunpack.c.l.b16 %v2157
        %v2293 = vunpack.c.l.b16 %v2158
        %v2294 = vunpack.c.l.b16 %v2159
        %v2295 = vunpack.c.l.b16 %v2160
        %v2296 = vunpack.c.l.b16 %v2161
        %v2297 = vunpack.c.l.b16 %v2162
        %v2298 = vunpack.c.l.b16 %v2163
        %v2299 = vunpack.c.l.b16 %v2164
        %v2300 = vunpack.c.l.b16 %v2165
        %v2301 = vunpack.c.l.b16 %v2166
        %v2302 = vunpack.c.l.b16 %v2167
        %v2303 = vunpack.c.l.b16 %v2168
        %v2304 = vunpack.c.l.b16 %v2169
        %v2305 = vunpack.c.l.b16 %v2170
        %v2306 = vpack.c.b16 %v2243, %v2242
        %v2307 = vpack.c.b16 %v2245, %v2244
        %v2308 = vpack.c.b16 %v2247, %v2246
        %v2309 = vpack.c.b16 %v2249, %v2248
        %v2310 = vpack.c.b16 %v2251, %v2250
        %v2311 = vpack.c.b16 %v2253, %v2252
        %v2312 = vpack.c.b16 %v2255, %v2254
        %v2313 = vpack.c.b16 %v2257, %v2256
        %v2314 = vpack.c.b16 %v2259, %v2258
        %v2315 = vpack.c.b16 %v2261, %v2260
        %v2316 = vpack.c.b16 %v2263, %v2262
        %v2317 = vpack.c.b16 %v2265, %v2264
        %v2318 = vpack.c.b16 %v2267, %v2266
        %v2319 = vpack.c.b16 %v2269, %v2268
        %v2320 = vpack.c.b16 %v2271, %v2270
        %v2321 = vpack.c.b16 %v2273, %v2272
        %v2322 = vpack.c.b16 %v2275, %v2274
        %v2323 = vpack.c.b16 %v2277, %v2276
        %v2324 = vpack.c.b16 %v2279, %v2278
        %v2325 = vpack.c.b16 %v2281, %v2280
        %v2326 = vpack.c.b16 %v2283, %v2282
        %v2327 = vpack.c.b16 %v2285, %v2284
        %v2328 = vpack.c.b16 %v2287, %v2286
        %v2329 = vpack.c.b16 %v2289, %v2288
        %v2330 = vpack.c.b16 %v2291, %v2290
        %v2331 = vpack.c.b16 %v2293, %v2292
        %v2332 = vpack.c.b16 %v2295, %v2294
        %v2333 = vpack.c.b16 %v2297, %v2296
        %v2334 = vpack.c.b16 %v2299, %v2298
        %v2335 = vpack.c.b16 %v2301, %v2300
        %v2336 = vpack.c.b16 %v2303, %v2302
        %v2337 = vpack.c.b16 %v2305, %v2304
        %2370 = vmatprep.subr.bf16.mxu0 0
        %2371 = vmatpush1.bf16.msra.mxu0 %v2306
        %2372 = vmatprep.subr.bf16.mxu0 0
        %2373 = vmatpush1.bf16.msra.mxu0 %v2307
        %2374 = vmatprep.subr.bf16.mxu0 0
        %2375 = vmatpush1.bf16.msra.mxu0 %v2308
        %2376 = vmatprep.subr.bf16.mxu0 0
        %2377 = vmatpush1.bf16.msra.mxu0 %v2309
        %2378 = vmatprep.subr.bf16.mxu0 0
        %2379 = vmatpush1.bf16.msra.mxu0 %v2310
        %2380 = vmatprep.subr.bf16.mxu0 0
        %2381 = vmatpush1.bf16.msra.mxu0 %v2311
        %2382 = vmatprep.subr.bf16.mxu0 0
        %2383 = vmatpush1.bf16.msra.mxu0 %v2312
        %2384 = vmatprep.subr.bf16.mxu0 0
        %2385 = vmatpush1.bf16.msra.mxu0 %v2313
        %2386 = vmatprep.subr.bf16.mxu0 0
        %2387 = vmatpush1.bf16.msra.mxu0 %v2314
        %2388 = vmatprep.subr.bf16.mxu0 0
        %2389 = vmatpush1.bf16.msra.mxu0 %v2315
        %2390 = vmatprep.subr.bf16.mxu0 0
        %2391 = vmatpush1.bf16.msra.mxu0 %v2316
        %2392 = vmatprep.subr.bf16.mxu0 0
        %2393 = vmatpush1.bf16.msra.mxu0 %v2317
        %2394 = vmatprep.subr.bf16.mxu0 0
        %2395 = vmatpush1.bf16.msra.mxu0 %v2318
        %2396 = vmatprep.subr.bf16.mxu0 0
        %2397 = vmatpush1.bf16.msra.mxu0 %v2319
        %2398 = vmatprep.subr.bf16.mxu0 0
        %2399 = vmatpush1.bf16.msra.mxu0 %v2320
        %2400 = vmatprep.subr.bf16.mxu0 0
        %2401 = vmatpush1.bf16.msra.mxu0 %v2321
        %2402 = vmatprep.mubr.bf16.mxu0 %v2104
        %2403 = vmatmul.mubr.bf16.gmra.mrb[0].mxu0 %v2103
        %v2404 = vpop.f32.mrb[0].mxu0
        %v2405 = vadd.f32 %v2176, %v2404
        %v2406 = vpop.f32.mrb[0].mxu0
        %v2407 = vpop.f32.mrb[0].mxu0
        %v2408 = vpop.f32.mrb[0].mxu0
        %2409 = vdwg.mxu0
        %2410 = vmatprep.subr.bf16.mxu0 0
        %2411 = vmatpush1.bf16.msra.mxu0 %v2322
        %2412 = vmatprep.subr.bf16.mxu0 0
        %2413 = vmatpush1.bf16.msra.mxu0 %v2323
        %2414 = vmatprep.subr.bf16.mxu0 0
        %2415 = vmatpush1.bf16.msra.mxu0 %v2324
        %2416 = vmatprep.subr.bf16.mxu0 0
        %2417 = vmatpush1.bf16.msra.mxu0 %v2325
        %2418 = vmatprep.subr.bf16.mxu0 0
        %2419 = vmatpush1.bf16.msra.mxu0 %v2326
        %2420 = vmatprep.subr.bf16.mxu0 0
        %2421 = vmatpush1.bf16.msra.mxu0 %v2327
        %2422 = vmatprep.subr.bf16.mxu0 0
        %2423 = vmatpush1.bf16.msra.mxu0 %v2328
        %2424 = vmatprep.subr.bf16.mxu0 0
        %2425 = vmatpush1.bf16.msra.mxu0 %v2329
        %2426 = vmatprep.subr.bf16.mxu0 0
        %2427 = vmatpush1.bf16.msra.mxu0 %v2330
        %2428 = vmatprep.subr.bf16.mxu0 0
        %2429 = vmatpush1.bf16.msra.mxu0 %v2331
        %2430 = vmatprep.subr.bf16.mxu0 0
        %2431 = vmatpush1.bf16.msra.mxu0 %v2332
        %2432 = vmatprep.subr.bf16.mxu0 0
        %2433 = vmatpush1.bf16.msra.mxu0 %v2333
        %2434 = vmatprep.subr.bf16.mxu0 0
        %2435 = vmatpush1.bf16.msra.mxu0 %v2334
        %2436 = vmatprep.subr.bf16.mxu0 0
        %2437 = vmatpush1.bf16.msra.mxu0 %v2335
        %2438 = vmatprep.subr.bf16.mxu0 0
        %2439 = vmatpush1.bf16.msra.mxu0 %v2336
        %2440 = vmatprep.subr.bf16.mxu0 0
        %2441 = vmatpush1.bf16.msra.mxu0 %v2337
        %2442 = vmatprep.mubr.bf16.mxu0 %v2106
        %2443 = vmatmul.mubr.bf16.gmra.mrb[0].mxu0 %v2105
        %v2444 = vpop.f32.mrb[0].mxu0
        %v2445 = vadd.f32 %v2405, %v2444
        %v2446 = vpop.f32.mrb[0].mxu0
        %v2447 = vpop.f32.mrb[0].mxu0
        %v2448 = vpop.f32.mrb[0].mxu0
        %2449 = vdwg.mxu0
        %v2450 = vadd.f32 %v1746, %v2445
        %s2451 = scalar_lea.vmem %s5, 1
        %v2452 = vld [vmem:[%s2451] sm:$0x1]
        %s2453 = scalar_lea.vmem %s6, 1
        %v2454 = vld [vmem:[%s2453] sm:$0x1]
        %2455 = vadd.xlane.f32.xlu0 %v2450
        %v2456 = vpop.xlane.xlu0 %2455
        %v2457 = vmul.f32 %v2456, %v680
        %v2458 = vsub.f32 %v2450, %v2457
        %v2459 = vmul.f32 %v2458, %v2458
        %2460 = vadd.xlane.f32.xlu0 %v2459
        %v2461 = vpop.xlane.xlu0 %2460
        %v2462 = vmul.f32 %v2461, %v680
        %v2463 = vadd.f32 %v2462, 1e-05
        %v2464 = vrsqrt.pop %v2463
        %v2465 = vmul.f32 %v2458, %v2464
        %v2467 = vlaneseq
        %v2468 = vshrl.u32 %v2467, 7
        %v2469 = vsub.s32 0, %v2468
        %v2470 = vrot.slane %v2452, %v2469
        %v2472 = vmul.f32 %v2465, %v2470
        %v2474 = vlaneseq
        %v2475 = vshrl.u32 %v2474, 7
        %v2476 = vsub.s32 0, %v2475
        %v2477 = vrot.slane %v2454, %v2476
        %v2479 = vadd.f32 %v2472, %v2477
        %v2480 = vpack.c.bf16 %v2479, %v2479
        %s2481 = scalar_lea.vmem %s9, 128
        %v2482 = vld [vmem:[%s2481] sm:$0xf]
        %v2483 = vld [vmem:[%s2481 + $0x4] sm:$0xf]
        %v2484 = vld [vmem:[%s2481 + $0x8] sm:$0xf]
        %v2485 = vld [vmem:[%s2481 + $0xc] sm:$0xf]
        %v2486 = vld [vmem:[%s2481 + $0x10] sm:$0xf]
        %v2487 = vld [vmem:[%s2481 + $0x14] sm:$0xf]
        %v2488 = vld [vmem:[%s2481 + $0x18] sm:$0xf]
        %v2489 = vld [vmem:[%s2481 + $0x1c] sm:$0xf]
        %v2490 = vld [vmem:[%s2481 + $0x20] sm:$0xf]
        %v2491 = vld [vmem:[%s2481 + $0x24] sm:$0xf]
        %v2492 = vld [vmem:[%s2481 + $0x28] sm:$0xf]
        %v2493 = vld [vmem:[%s2481 + $0x2c] sm:$0xf]
        %v2494 = vld [vmem:[%s2481 + $0x30] sm:$0xf]
        %v2495 = vld [vmem:[%s2481 + $0x34] sm:$0xf]
        %v2496 = vld [vmem:[%s2481 + $0x38] sm:$0xf]
        %v2497 = vld [vmem:[%s2481 + $0x3c] sm:$0xf]
        %v2514 = vunpack.c.l.b16 %v2482
        %v2515 = vunpack.c.l.b16 %v2483
        %v2516 = vunpack.c.l.b16 %v2484
        %v2517 = vunpack.c.l.b16 %v2485
        %v2518 = vunpack.c.l.b16 %v2486
        %v2519 = vunpack.c.l.b16 %v2487
        %v2520 = vunpack.c.l.b16 %v2488
        %v2521 = vunpack.c.l.b16 %v2489
        %v2522 = vunpack.c.l.b16 %v2490
        %v2523 = vunpack.c.l.b16 %v2491
        %v2524 = vunpack.c.l.b16 %v2492
        %v2525 = vunpack.c.l.b16 %v2493
        %v2526 = vunpack.c.l.b16 %v2494
        %v2527 = vunpack.c.l.b16 %v2495
        %v2528 = vunpack.c.l.b16 %v2496
        %v2529 = vunpack.c.l.b16 %v2497
        %v2530 = vpack.c.b16 %v2515, %v2514
        %v2531 = vpack.c.b16 %v2517, %v2516
        %v2532 = vpack.c.b16 %v2519, %v2518
        %v2533 = vpack.c.b16 %v2521, %v2520
        %v2534 = vpack.c.b16 %v2523, %v2522
        %v2535 = vpack.c.b16 %v2525, %v2524
        %v2536 = vpack.c.b16 %v2527, %v2526
        %v2537 = vpack.c.b16 %v2529, %v2528
        %2546 = vmatprep.subr.bf16.mxu0 0
        %2547 = vmatpush1.bf16.msra.mxu0 %v2530
        %2548 = vmatprep.subr.bf16.mxu0 0
        %2549 = vmatpush1.bf16.msra.mxu0 %v2531
        %2550 = vmatprep.subr.bf16.mxu0 0
        %2551 = vmatpush1.bf16.msra.mxu0 %v2532
        %2552 = vmatprep.subr.bf16.mxu0 0
        %2553 = vmatpush1.bf16.msra.mxu0 %v2533
        %2554 = vmatprep.subr.bf16.mxu0 0
        %2555 = vmatpush1.bf16.msra.mxu0 %v2534
        %2556 = vmatprep.subr.bf16.mxu0 0
        %2557 = vmatpush1.bf16.msra.mxu0 %v2535
        %2558 = vmatprep.subr.bf16.mxu0 0
        %2559 = vmatpush1.bf16.msra.mxu0 %v2536
        %2560 = vmatprep.subr.bf16.mxu0 0
        %2561 = vmatpush1.bf16.msra.mxu0 %v2537
        %2562 = vmatprep.subr.bf16.mxu0 0
        %2563 = vmatpush1.bf16.msra.mxu0 0
        %2564 = vmatprep.subr.bf16.mxu0 0
        %2565 = vmatpush1.bf16.msra.mxu0 0
        %2566 = vmatprep.subr.bf16.mxu0 0
        %2567 = vmatpush1.bf16.msra.mxu0 0
        %2568 = vmatprep.subr.bf16.mxu0 0
        %2569 = vmatpush1.bf16.msra.mxu0 0
        %2570 = vmatprep.subr.bf16.mxu0 0
        %2571 = vmatpush1.bf16.msra.mxu0 0
        %2572 = vmatprep.subr.bf16.mxu0 0
        %2573 = vmatpush1.bf16.msra.mxu0 0
        %2574 = vmatprep.subr.bf16.mxu0 0
        %2575 = vmatpush1.bf16.msra.mxu0 0
        %2576 = vmatprep.subr.bf16.mxu0 0
        %2577 = vmatpush1.bf16.msra.mxu0 0
        %2578 = vmatprep.mubr.bf16.mxu0 0
        %2579 = vmatmul.mubr.bf16.gmra.mrb[0].mxu0 %v2480
        %v2580 = vpop.f32.mrb[0].mxu0
        %v2581 = vadd.f32 0.0, %v2580
        %v2582 = vpop.f32.mrb[0].mxu0
        %v2583 = vpop.f32.mrb[0].mxu0
        %v2584 = vpop.f32.mrb[0].mxu0
        %2585 = vdwg.mxu0
        %v2586 = vpack.c.bf16 %v2581, %v2581
        %s2587 = scalar_lea.vmem %s10, 128
        %v2588 = vld [vmem:[%s2587] sm:$0xf]
        %v2589 = vld [vmem:[%s2587 + $0x4] sm:$0xf]
        %v2590 = vld [vmem:[%s2587 + $0x8] sm:$0xf]
        %v2591 = vld [vmem:[%s2587 + $0xc] sm:$0xf]
        %v2592 = vld [vmem:[%s2587 + $0x10] sm:$0xf]
        %v2593 = vld [vmem:[%s2587 + $0x14] sm:$0xf]
        %v2594 = vld [vmem:[%s2587 + $0x18] sm:$0xf]
        %v2595 = vld [vmem:[%s2587 + $0x1c] sm:$0xf]
        %v2596 = vld [vmem:[%s2587 + $0x20] sm:$0xf]
        %v2597 = vld [vmem:[%s2587 + $0x24] sm:$0xf]
        %v2598 = vld [vmem:[%s2587 + $0x28] sm:$0xf]
        %v2599 = vld [vmem:[%s2587 + $0x2c] sm:$0xf]
        %v2600 = vld [vmem:[%s2587 + $0x30] sm:$0xf]
        %v2601 = vld [vmem:[%s2587 + $0x34] sm:$0xf]
        %v2602 = vld [vmem:[%s2587 + $0x38] sm:$0xf]
        %v2603 = vld [vmem:[%s2587 + $0x3c] sm:$0xf]
        %v2620 = vunpack.c.l.b16 %v2588
        %v2621 = vunpack.c.l.b16 %v2589
        %v2622 = vunpack.c.l.b16 %v2590
        %v2623 = vunpack.c.l.b16 %v2591
        %v2624 = vunpack.c.l.b16 %v2592
        %v2625 = vunpack.c.l.b16 %v2593
        %v2626 = vunpack.c.l.b16 %v2594
        %v2627 = vunpack.c.l.b16 %v2595
        %v2628 = vunpack.c.l.b16 %v2596
        %v2629 = vunpack.c.l.b16 %v2597
        %v2630 = vunpack.c.l.b16 %v2598
        %v2631 = vunpack.c.l.b16 %v2599
        %v2632 = vunpack.c.l.b16 %v2600
        %v2633 = vunpack.c.l.b16 %v2601
        %v2634 = vunpack.c.l.b16 %v2602
        %v2635 = vunpack.c.l.b16 %v2603
        %v2636 = vpack.c.b16 %v2621, %v2620
        %v2637 = vpack.c.b16 %v2623, %v2622
        %v2638 = vpack.c.b16 %v2625, %v2624
        %v2639 = vpack.c.b16 %v2627, %v2626
        %v2640 = vpack.c.b16 %v2629, %v2628
        %v2641 = vpack.c.b16 %v2631, %v2630
        %v2642 = vpack.c.b16 %v2633, %v2632
        %v2643 = vpack.c.b16 %v2635, %v2634
        %2652 = vmatprep.subr.bf16.mxu0 0
        %2653 = vmatpush1.bf16.msra.mxu0 %v2636
        %2654 = vmatprep.subr.bf16.mxu0 0
        %2655 = vmatpush1.bf16.msra.mxu0 %v2637
        %2656 = vmatprep.subr.bf16.mxu0 0
        %2657 = vmatpush1.bf16.msra.mxu0 %v2638
        %2658 = vmatprep.subr.bf16.mxu0 0
        %2659 = vmatpush1.bf16.msra.mxu0 %v2639
        %2660 = vmatprep.subr.bf16.mxu0 0
        %2661 = vmatpush1.bf16.msra.mxu0 %v2640
        %2662 = vmatprep.subr.bf16.mxu0 0
        %2663 = vmatpush1.bf16.msra.mxu0 %v2641
        %2664 = vmatprep.subr.bf16.mxu0 0
        %2665 = vmatpush1.bf16.msra.mxu0 %v2642
        %2666 = vmatprep.subr.bf16.mxu0 0
        %2667 = vmatpush1.bf16.msra.mxu0 %v2643
        %2668 = vmatprep.subr.bf16.mxu0 0
        %2669 = vmatpush1.bf16.msra.mxu0 0
        %2670 = vmatprep.subr.bf16.mxu0 0
        %2671 = vmatpush1.bf16.msra.mxu0 0
        %2672 = vmatprep.subr.bf16.mxu0 0
        %2673 = vmatpush1.bf16.msra.mxu0 0
        %2674 = vmatprep.subr.bf16.mxu0 0
        %2675 = vmatpush1.bf16.msra.mxu0 0
        %2676 = vmatprep.subr.bf16.mxu0 0
        %2677 = vmatpush1.bf16.msra.mxu0 0
        %2678 = vmatprep.subr.bf16.mxu0 0
        %2679 = vmatpush1.bf16.msra.mxu0 0
        %2680 = vmatprep.subr.bf16.mxu0 0
        %2681 = vmatpush1.bf16.msra.mxu0 0
        %2682 = vmatprep.subr.bf16.mxu0 0
        %2683 = vmatpush1.bf16.msra.mxu0 0
        %2684 = vmatprep.mubr.bf16.mxu0 0
        %2685 = vmatmul.mubr.bf16.gmra.mrb[0].mxu0 %v715
        %v2686 = vpop.f32.mrb[0].mxu0
        %v2687 = vadd.f32 0.0, %v2686
        %v2688 = vpop.f32.mrb[0].mxu0
        %v2689 = vpop.f32.mrb[0].mxu0
        %v2690 = vadd.f32 0.0, %v2689
        %v2691 = vpop.f32.mrb[0].mxu0
        %2692 = vdwg.mxu0
        %v2693 = vpack.c.bf16 %v2690, %v2687
        %s2694 = scalar_lea.vmem %s11, 128
        %v2695 = vld [vmem:[%s2694] sm:$0xf]
        %v2696 = vld [vmem:[%s2694 + $0x4] sm:$0xf]
        %v2697 = vld [vmem:[%s2694 + $0x8] sm:$0xf]
        %v2698 = vld [vmem:[%s2694 + $0xc] sm:$0xf]
        %v2699 = vld [vmem:[%s2694 + $0x10] sm:$0xf]
        %v2700 = vld [vmem:[%s2694 + $0x14] sm:$0xf]
        %v2701 = vld [vmem:[%s2694 + $0x18] sm:$0xf]
        %v2702 = vld [vmem:[%s2694 + $0x1c] sm:$0xf]
        %v2703 = vld [vmem:[%s2694 + $0x20] sm:$0xf]
        %v2704 = vld [vmem:[%s2694 + $0x24] sm:$0xf]
        %v2705 = vld [vmem:[%s2694 + $0x28] sm:$0xf]
        %v2706 = vld [vmem:[%s2694 + $0x2c] sm:$0xf]
        %v2707 = vld [vmem:[%s2694 + $0x30] sm:$0xf]
        %v2708 = vld [vmem:[%s2694 + $0x34] sm:$0xf]
        %v2709 = vld [vmem:[%s2694 + $0x38] sm:$0xf]
        %v2710 = vld [vmem:[%s2694 + $0x3c] sm:$0xf]
        %v2727 = vunpack.c.l.b16 %v2695
        %v2728 = vunpack.c.l.b16 %v2696
        %v2729 = vunpack.c.l.b16 %v2697
        %v2730 = vunpack.c.l.b16 %v2698
        %v2731 = vunpack.c.l.b16 %v2699
        %v2732 = vunpack.c.l.b16 %v2700
        %v2733 = vunpack.c.l.b16 %v2701
        %v2734 = vunpack.c.l.b16 %v2702
        %v2735 = vunpack.c.l.b16 %v2703
        %v2736 = vunpack.c.l.b16 %v2704
        %v2737 = vunpack.c.l.b16 %v2705
        %v2738 = vunpack.c.l.b16 %v2706
        %v2739 = vunpack.c.l.b16 %v2707
        %v2740 = vunpack.c.l.b16 %v2708
        %v2741 = vunpack.c.l.b16 %v2709
        %v2742 = vunpack.c.l.b16 %v2710
        %v2743 = vpack.c.b16 %v2728, %v2727
        %v2744 = vpack.c.b16 %v2730, %v2729
        %v2745 = vpack.c.b16 %v2732, %v2731
        %v2746 = vpack.c.b16 %v2734, %v2733
        %v2747 = vpack.c.b16 %v2736, %v2735
        %v2748 = vpack.c.b16 %v2738, %v2737
        %v2749 = vpack.c.b16 %v2740, %v2739
        %v2750 = vpack.c.b16 %v2742, %v2741
        %2759 = vmatprep.subr.bf16.mxu0 0
        %2760 = vmatpush1.bf16.msra.mxu0 %v2743
        %2761 = vmatprep.subr.bf16.mxu0 0
        %2762 = vmatpush1.bf16.msra.mxu0 %v2744
        %2763 = vmatprep.subr.bf16.mxu0 0
        %2764 = vmatpush1.bf16.msra.mxu0 %v2745
        %2765 = vmatprep.subr.bf16.mxu0 0
        %2766 = vmatpush1.bf16.msra.mxu0 %v2746
        %2767 = vmatprep.subr.bf16.mxu0 0
        %2768 = vmatpush1.bf16.msra.mxu0 %v2747
        %2769 = vmatprep.subr.bf16.mxu0 0
        %2770 = vmatpush1.bf16.msra.mxu0 %v2748
        %2771 = vmatprep.subr.bf16.mxu0 0
        %2772 = vmatpush1.bf16.msra.mxu0 %v2749
        %2773 = vmatprep.subr.bf16.mxu0 0
        %2774 = vmatpush1.bf16.msra.mxu0 %v2750
        %2775 = vmatprep.subr.bf16.mxu0 0
        %2776 = vmatpush1.bf16.msra.mxu0 0
        %2777 = vmatprep.subr.bf16.mxu0 0
        %2778 = vmatpush1.bf16.msra.mxu0 0
        %2779 = vmatprep.subr.bf16.mxu0 0
        %2780 = vmatpush1.bf16.msra.mxu0 0
        %2781 = vmatprep.subr.bf16.mxu0 0
        %2782 = vmatpush1.bf16.msra.mxu0 0
        %2783 = vmatprep.subr.bf16.mxu0 0
        %2784 = vmatpush1.bf16.msra.mxu0 0
        %2785 = vmatprep.subr.bf16.mxu0 0
        %2786 = vmatpush1.bf16.msra.mxu0 0
        %2787 = vmatprep.subr.bf16.mxu0 0
        %2788 = vmatpush1.bf16.msra.mxu0 0
        %2789 = vmatprep.subr.bf16.mxu0 0
        %2790 = vmatpush1.bf16.msra.mxu0 0
        %2791 = vmatprep.mubr.bf16.mxu0 0
        %2792 = vmatmul.mubr.bf16.gmra.mrb[0].mxu0 %v715
        %v2793 = vpop.f32.mrb[0].mxu0
        %v2794 = vadd.f32 0.0, %v2793
        %v2795 = vpop.f32.mrb[0].mxu0
        %v2796 = vpop.f32.mrb[0].mxu0
        %v2797 = vadd.f32 0.0, %v2796
        %v2798 = vpop.f32.mrb[0].mxu0
        %2799 = vdwg.mxu0
        %v2800 = vpack.c.bf16 %v2797, %v2794
        %v2802 = vsel %vm1061, %v2586, 0
        %v2805 = vsel %vm1061, %v2693, 0
        %2807 = vmatprep.subr.bf16.mxu0 0
        %2808 = vmatpush1.bf16.xpose.msra.mxu0 %v2805
        %2809 = vmatprep.subr.bf16.mxu0 0
        %2810 = vmatpush1.bf16.xpose.msra.mxu0 0
        %2811 = vmatprep.subr.bf16.mxu0 0
        %2812 = vmatpush1.bf16.xpose.msra.mxu0 0
        %2813 = vmatprep.subr.bf16.mxu0 0
        %2814 = vmatpush1.bf16.xpose.msra.mxu0 0
        %2815 = vmatprep.subr.bf16.mxu0 0
        %2816 = vmatpush1.bf16.xpose.msra.mxu0 0
        %2817 = vmatprep.subr.bf16.mxu0 0
        %2818 = vmatpush1.bf16.xpose.msra.mxu0 0
        %2819 = vmatprep.subr.bf16.mxu0 0
        %2820 = vmatpush1.bf16.xpose.msra.mxu0 0
        %2821 = vmatprep.subr.bf16.mxu0 0
        %2822 = vmatpush1.bf16.xpose.msra.mxu0 0
        %2823 = vmatprep.subr.bf16.mxu0 0
        %2824 = vmatpush1.bf16.xpose.msra.mxu0 0
        %2825 = vmatprep.subr.bf16.mxu0 0
        %2826 = vmatpush1.bf16.xpose.msra.mxu0 0
        %2827 = vmatprep.subr.bf16.mxu0 0
        %2828 = vmatpush1.bf16.xpose.msra.mxu0 0
        %2829 = vmatprep.subr.bf16.mxu0 0
        %2830 = vmatpush1.bf16.xpose.msra.mxu0 0
        %2831 = vmatprep.subr.bf16.mxu0 0
        %2832 = vmatpush1.bf16.xpose.msra.mxu0 0
        %2833 = vmatprep.subr.bf16.mxu0 0
        %2834 = vmatpush1.bf16.xpose.msra.mxu0 0
        %2835 = vmatprep.subr.bf16.mxu0 0
        %2836 = vmatpush1.bf16.xpose.msra.mxu0 0
        %2837 = vmatprep.subr.bf16.mxu0 0
        %2838 = vmatpush1.bf16.xpose.msra.mxu0 0
        %2839 = vmatprep.mubr.bf16.mxu0 0
        %2840 = vmatmul.mubr.bf16.gmra.mrb[0].mxu0 %v2802
        %v2841 = vpop.f32.mrb[0].mxu0
        %v2842 = vadd.f32 0.0, %v2841
        %v2843 = vpop.f32.mrb[0].mxu0
        %v2844 = vpop.f32.mrb[0].mxu0
        %v2845 = vpop.f32.mrb[0].mxu0
        %2846 = vdwg.mxu0
        %v2847 = vsel %vm1108, %v2842, -inf
        %2848 = vmax.xlane.f32.xlu0 %v2847
        %v2849 = vpop.xlane.xlu0 %2848
        %v2850 = vsub.f32 %v2842, %v2849
        %v2851 = vmul.f32 %v2850, 1.442695
        %v2852 = vpow.pop %v2851
        %v2853 = vsel %vm1108, %v2852, 0.0
        %2854 = vadd.xlane.f32.xlu0 %v2853
        %v2855 = vpop.xlane.xlu0 %2854
        %v2856 = vrcp.pop %v2855
        %v2857 = vmul.f32 %v2852, %v2856
        %v2858 = vpack.c.bf16 %v2857, %v2857
        %v2860 = vsel %vm1108, %v2858, 0
        %2862 = vmatprep.subr.bf16.mxu0 0
        %2863 = vmatpush1.bf16.msra.mxu0 %v2800
        %2864 = vmatprep.subr.bf16.mxu0 0
        %2865 = vmatpush1.bf16.msra.mxu0 0
        %2866 = vmatprep.subr.bf16.mxu0 0
        %2867 = vmatpush1.bf16.msra.mxu0 0
        %2868 = vmatprep.subr.bf16.mxu0 0
        %2869 = vmatpush1.bf16.msra.mxu0 0
        %2870 = vmatprep.subr.bf16.mxu0 0
        %2871 = vmatpush1.bf16.msra.mxu0 0
        %2872 = vmatprep.subr.bf16.mxu0 0
        %2873 = vmatpush1.bf16.msra.mxu0 0
        %2874 = vmatprep.subr.bf16.mxu0 0
        %2875 = vmatpush1.bf16.msra.mxu0 0
        %2876 = vmatprep.subr.bf16.mxu0 0
        %2877 = vmatpush1.bf16.msra.mxu0 0
        %2878 = vmatprep.subr.bf16.mxu0 0
        %2879 = vmatpush1.bf16.msra.mxu0 0
        %2880 = vmatprep.subr.bf16.mxu0 0
        %2881 = vmatpush1.bf16.msra.mxu0 0
        %2882 = vmatprep.subr.bf16.mxu0 0
        %2883 = vmatpush1.bf16.msra.mxu0 0
        %2884 = vmatprep.subr.bf16.mxu0 0
        %2885 = vmatpush1.bf16.msra.mxu0 0
        %2886 = vmatprep.subr.bf16.mxu0 0
        %2887 = vmatpush1.bf16.msra.mxu0 0
        %2888 = vmatprep.subr.bf16.mxu0 0
        %2889 = vmatpush1.bf16.msra.mxu0 0
        %2890 = vmatprep.subr.bf16.mxu0 0
        %2891 = vmatpush1.bf16.msra.mxu0 0
        %2892 = vmatprep.subr.bf16.mxu0 0
        %2893 = vmatpush1.bf16.msra.mxu0 0
        %2894 = vmatprep.mubr.bf16.mxu0 0
        %2895 = vmatmul.mubr.bf16.gmra.mrb[0].mxu0 %v2860
        %v2896 = vpop.f32.mrb[0].mxu0
        %v2897 = vadd.f32 0.0, %v2896
        %v2898 = vpop.f32.mrb[0].mxu0
        %v2899 = vpop.f32.mrb[0].mxu0
        %v2900 = vpop.f32.mrb[0].mxu0
        %2901 = vdwg.mxu0
        %v2902 = vpack.c.bf16 %v2897, %v2897
        %s2903 = scalar_lea.vmem [#allocation10], 64
        %v2904 = vld [vmem:[%s2903] sm:$0xf]
        %v2905 = vld [vmem:[%s2903 + $0x4] sm:$0xf]
        %v2906 = vld [vmem:[%s2903 + $0x8] sm:$0xf]
        %v2907 = vld [vmem:[%s2903 + $0xc] sm:$0xf]
        %v2908 = vld [vmem:[%s2903 + $0x10] sm:$0xf]
        %v2909 = vld [vmem:[%s2903 + $0x14] sm:$0xf]
        %v2910 = vld [vmem:[%s2903 + $0x18] sm:$0xf]
        %v2911 = vld [vmem:[%s2903 + $0x1c] sm:$0xf]
        %s2912 = scalar_lea.vmem %s9, 192
        %v2913 = vld [vmem:[%s2912] sm:$0xf]
        %v2914 = vld [vmem:[%s2912 + $0x4] sm:$0xf]
        %v2915 = vld [vmem:[%s2912 + $0x8] sm:$0xf]
        %v2916 = vld [vmem:[%s2912 + $0xc] sm:$0xf]
        %v2917 = vld [vmem:[%s2912 + $0x10] sm:$0xf]
        %v2918 = vld [vmem:[%s2912 + $0x14] sm:$0xf]
        %v2919 = vld [vmem:[%s2912 + $0x18] sm:$0xf]
        %v2920 = vld [vmem:[%s2912 + $0x1c] sm:$0xf]
        %v2921 = vld [vmem:[%s2912 + $0x20] sm:$0xf]
        %v2922 = vld [vmem:[%s2912 + $0x24] sm:$0xf]
        %v2923 = vld [vmem:[%s2912 + $0x28] sm:$0xf]
        %v2924 = vld [vmem:[%s2912 + $0x2c] sm:$0xf]
        %v2925 = vld [vmem:[%s2912 + $0x30] sm:$0xf]
        %v2926 = vld [vmem:[%s2912 + $0x34] sm:$0xf]
        %v2927 = vld [vmem:[%s2912 + $0x38] sm:$0xf]
        %v2928 = vld [vmem:[%s2912 + $0x3c] sm:$0xf]
        %v2945 = vunpack.c.l.b16 %v2913
        %v2946 = vunpack.c.l.b16 %v2914
        %v2947 = vunpack.c.l.b16 %v2915
        %v2948 = vunpack.c.l.b16 %v2916
        %v2949 = vunpack.c.l.b16 %v2917
        %v2950 = vunpack.c.l.b16 %v2918
        %v2951 = vunpack.c.l.b16 %v2919
        %v2952 = vunpack.c.l.b16 %v2920
        %v2953 = vunpack.c.l.b16 %v2921
        %v2954 = vunpack.c.l.b16 %v2922
        %v2955 = vunpack.c.l.b16 %v2923
        %v2956 = vunpack.c.l.b16 %v2924
        %v2957 = vunpack.c.l.b16 %v2925
        %v2958 = vunpack.c.l.b16 %v2926
        %v2959 = vunpack.c.l.b16 %v2927
        %v2960 = vunpack.c.l.b16 %v2928
        %v2961 = vpack.c.b16 %v2946, %v2945
        %v2962 = vpack.c.b16 %v2948, %v2947
        %v2963 = vpack.c.b16 %v2950, %v2949
        %v2964 = vpack.c.b16 %v2952, %v2951
        %v2965 = vpack.c.b16 %v2954, %v2953
        %v2966 = vpack.c.b16 %v2956, %v2955
        %v2967 = vpack.c.b16 %v2958, %v2957
        %v2968 = vpack.c.b16 %v2960, %v2959
        %2977 = vmatprep.subr.bf16.mxu0 0
        %2978 = vmatpush1.bf16.msra.mxu0 %v2961
        %2979 = vmatprep.subr.bf16.mxu0 0
        %2980 = vmatpush1.bf16.msra.mxu0 %v2962
        %2981 = vmatprep.subr.bf16.mxu0 0
        %2982 = vmatpush1.bf16.msra.mxu0 %v2963
        %2983 = vmatprep.subr.bf16.mxu0 0
        %2984 = vmatpush1.bf16.msra.mxu0 %v2964
        %2985 = vmatprep.subr.bf16.mxu0 0
        %2986 = vmatpush1.bf16.msra.mxu0 %v2965
        %2987 = vmatprep.subr.bf16.mxu0 0
        %2988 = vmatpush1.bf16.msra.mxu0 %v2966
        %2989 = vmatprep.subr.bf16.mxu0 0
        %2990 = vmatpush1.bf16.msra.mxu0 %v2967
        %2991 = vmatprep.subr.bf16.mxu0 0
        %2992 = vmatpush1.bf16.msra.mxu0 %v2968
        %2993 = vmatprep.subr.bf16.mxu0 0
        %2994 = vmatpush1.bf16.msra.mxu0 0
        %2995 = vmatprep.subr.bf16.mxu0 0
        %2996 = vmatpush1.bf16.msra.mxu0 0
        %2997 = vmatprep.subr.bf16.mxu0 0
        %2998 = vmatpush1.bf16.msra.mxu0 0
        %2999 = vmatprep.subr.bf16.mxu0 0
        %3000 = vmatpush1.bf16.msra.mxu0 0
        %3001 = vmatprep.subr.bf16.mxu0 0
        %3002 = vmatpush1.bf16.msra.mxu0 0
        %3003 = vmatprep.subr.bf16.mxu0 0
        %3004 = vmatpush1.bf16.msra.mxu0 0
        %3005 = vmatprep.subr.bf16.mxu0 0
        %3006 = vmatpush1.bf16.msra.mxu0 0
        %3007 = vmatprep.subr.bf16.mxu0 0
        %3008 = vmatpush1.bf16.msra.mxu0 0
        %3009 = vmatprep.mubr.bf16.mxu0 0
        %3010 = vmatmul.mubr.bf16.gmra.mrb[0].mxu0 %v2480
        %v3011 = vpop.f32.mrb[0].mxu0
        %v3012 = vadd.f32 0.0, %v3011
        %v3013 = vpop.f32.mrb[0].mxu0
        %v3014 = vpop.f32.mrb[0].mxu0
        %v3015 = vpop.f32.mrb[0].mxu0
        %3016 = vdwg.mxu0
        %v3017 = vpack.c.bf16 %v3012, %v3012
        %s3018 = scalar_lea.vmem %s10, 192
        %v3019 = vld [vmem:[%s3018] sm:$0xf]
        %v3020 = vld [vmem:[%s3018 + $0x4] sm:$0xf]
        %v3021 = vld [vmem:[%s3018 + $0x8] sm:$0xf]
        %v3022 = vld [vmem:[%s3018 + $0xc] sm:$0xf]
        %v3023 = vld [vmem:[%s3018 + $0x10] sm:$0xf]
        %v3024 = vld [vmem:[%s3018 + $0x14] sm:$0xf]
        %v3025 = vld [vmem:[%s3018 + $0x18] sm:$0xf]
        %v3026 = vld [vmem:[%s3018 + $0x1c] sm:$0xf]
        %v3027 = vld [vmem:[%s3018 + $0x20] sm:$0xf]
        %v3028 = vld [vmem:[%s3018 + $0x24] sm:$0xf]
        %v3029 = vld [vmem:[%s3018 + $0x28] sm:$0xf]
        %v3030 = vld [vmem:[%s3018 + $0x2c] sm:$0xf]
        %v3031 = vld [vmem:[%s3018 + $0x30] sm:$0xf]
        %v3032 = vld [vmem:[%s3018 + $0x34] sm:$0xf]
        %v3033 = vld [vmem:[%s3018 + $0x38] sm:$0xf]
        %v3034 = vld [vmem:[%s3018 + $0x3c] sm:$0xf]
        %v3051 = vunpack.c.l.b16 %v3019
        %v3052 = vunpack.c.l.b16 %v3020
        %v3053 = vunpack.c.l.b16 %v3021
        %v3054 = vunpack.c.l.b16 %v3022
        %v3055 = vunpack.c.l.b16 %v3023
        %v3056 = vunpack.c.l.b16 %v3024
        %v3057 = vunpack.c.l.b16 %v3025
        %v3058 = vunpack.c.l.b16 %v3026
        %v3059 = vunpack.c.l.b16 %v3027
        %v3060 = vunpack.c.l.b16 %v3028
        %v3061 = vunpack.c.l.b16 %v3029
        %v3062 = vunpack.c.l.b16 %v3030
        %v3063 = vunpack.c.l.b16 %v3031
        %v3064 = vunpack.c.l.b16 %v3032
        %v3065 = vunpack.c.l.b16 %v3033
        %v3066 = vunpack.c.l.b16 %v3034
        %v3067 = vpack.c.b16 %v3052, %v3051
        %v3068 = vpack.c.b16 %v3054, %v3053
        %v3069 = vpack.c.b16 %v3056, %v3055
        %v3070 = vpack.c.b16 %v3058, %v3057
        %v3071 = vpack.c.b16 %v3060, %v3059
        %v3072 = vpack.c.b16 %v3062, %v3061
        %v3073 = vpack.c.b16 %v3064, %v3063
        %v3074 = vpack.c.b16 %v3066, %v3065
        %3083 = vmatprep.subr.bf16.mxu0 0
        %3084 = vmatpush1.bf16.msra.mxu0 %v3067
        %3085 = vmatprep.subr.bf16.mxu0 0
        %3086 = vmatpush1.bf16.msra.mxu0 %v3068
        %3087 = vmatprep.subr.bf16.mxu0 0
        %3088 = vmatpush1.bf16.msra.mxu0 %v3069
        %3089 = vmatprep.subr.bf16.mxu0 0
        %3090 = vmatpush1.bf16.msra.mxu0 %v3070
        %3091 = vmatprep.subr.bf16.mxu0 0
        %3092 = vmatpush1.bf16.msra.mxu0 %v3071
        %3093 = vmatprep.subr.bf16.mxu0 0
        %3094 = vmatpush1.bf16.msra.mxu0 %v3072
        %3095 = vmatprep.subr.bf16.mxu0 0
        %3096 = vmatpush1.bf16.msra.mxu0 %v3073
        %3097 = vmatprep.subr.bf16.mxu0 0
        %3098 = vmatpush1.bf16.msra.mxu0 %v3074
        %3099 = vmatprep.subr.bf16.mxu0 0
        %3100 = vmatpush1.bf16.msra.mxu0 0
        %3101 = vmatprep.subr.bf16.mxu0 0
        %3102 = vmatpush1.bf16.msra.mxu0 0
        %3103 = vmatprep.subr.bf16.mxu0 0
        %3104 = vmatpush1.bf16.msra.mxu0 0
        %3105 = vmatprep.subr.bf16.mxu0 0
        %3106 = vmatpush1.bf16.msra.mxu0 0
        %3107 = vmatprep.subr.bf16.mxu0 0
        %3108 = vmatpush1.bf16.msra.mxu0 0
        %3109 = vmatprep.subr.bf16.mxu0 0
        %3110 = vmatpush1.bf16.msra.mxu0 0
        %3111 = vmatprep.subr.bf16.mxu0 0
        %3112 = vmatpush1.bf16.msra.mxu0 0
        %3113 = vmatprep.subr.bf16.mxu0 0
        %3114 = vmatpush1.bf16.msra.mxu0 0
        %3115 = vmatprep.mubr.bf16.mxu0 0
        %3116 = vmatmul.mubr.bf16.gmra.mrb[0].mxu0 %v715
        %v3117 = vpop.f32.mrb[0].mxu0
        %v3118 = vadd.f32 0.0, %v3117
        %v3119 = vpop.f32.mrb[0].mxu0
        %v3120 = vpop.f32.mrb[0].mxu0
        %v3121 = vadd.f32 0.0, %v3120
        %v3122 = vpop.f32.mrb[0].mxu0
        %3123 = vdwg.mxu0
        %v3124 = vpack.c.bf16 %v3121, %v3118
        %s3125 = scalar_lea.vmem %s11, 192
        %v3126 = vld [vmem:[%s3125] sm:$0xf]
        %v3127 = vld [vmem:[%s3125 + $0x4] sm:$0xf]
        %v3128 = vld [vmem:[%s3125 + $0x8] sm:$0xf]
        %v3129 = vld [vmem:[%s3125 + $0xc] sm:$0xf]
        %v3130 = vld [vmem:[%s3125 + $0x10] sm:$0xf]
        %v3131 = vld [vmem:[%s3125 + $0x14] sm:$0xf]
        %v3132 = vld [vmem:[%s3125 + $0x18] sm:$0xf]
        %v3133 = vld [vmem:[%s3125 + $0x1c] sm:$0xf]
        %v3134 = vld [vmem:[%s3125 + $0x20] sm:$0xf]
        %v3135 = vld [vmem:[%s3125 + $0x24] sm:$0xf]
        %v3136 = vld [vmem:[%s3125 + $0x28] sm:$0xf]
        %v3137 = vld [vmem:[%s3125 + $0x2c] sm:$0xf]
        %v3138 = vld [vmem:[%s3125 + $0x30] sm:$0xf]
        %v3139 = vld [vmem:[%s3125 + $0x34] sm:$0xf]
        %v3140 = vld [vmem:[%s3125 + $0x38] sm:$0xf]
        %v3141 = vld [vmem:[%s3125 + $0x3c] sm:$0xf]
        %v3158 = vunpack.c.l.b16 %v3126
        %v3159 = vunpack.c.l.b16 %v3127
        %v3160 = vunpack.c.l.b16 %v3128
        %v3161 = vunpack.c.l.b16 %v3129
        %v3162 = vunpack.c.l.b16 %v3130
        %v3163 = vunpack.c.l.b16 %v3131
        %v3164 = vunpack.c.l.b16 %v3132
        %v3165 = vunpack.c.l.b16 %v3133
        %v3166 = vunpack.c.l.b16 %v3134
        %v3167 = vunpack.c.l.b16 %v3135
        %v3168 = vunpack.c.l.b16 %v3136
        %v3169 = vunpack.c.l.b16 %v3137
        %v3170 = vunpack.c.l.b16 %v3138
        %v3171 = vunpack.c.l.b16 %v3139
        %v3172 = vunpack.c.l.b16 %v3140
        %v3173 = vunpack.c.l.b16 %v3141
        %v3174 = vpack.c.b16 %v3159, %v3158
        %v3175 = vpack.c.b16 %v3161, %v3160
        %v3176 = vpack.c.b16 %v3163, %v3162
        %v3177 = vpack.c.b16 %v3165, %v3164
        %v3178 = vpack.c.b16 %v3167, %v3166
        %v3179 = vpack.c.b16 %v3169, %v3168
        %v3180 = vpack.c.b16 %v3171, %v3170
        %v3181 = vpack.c.b16 %v3173, %v3172
        %3190 = vmatprep.subr.bf16.mxu0 0
        %3191 = vmatpush1.bf16.msra.mxu0 %v3174
        %3192 = vmatprep.subr.bf16.mxu0 0
        %3193 = vmatpush1.bf16.msra.mxu0 %v3175
        %3194 = vmatprep.subr.bf16.mxu0 0
        %3195 = vmatpush1.bf16.msra.mxu0 %v3176
        %3196 = vmatprep.subr.bf16.mxu0 0
        %3197 = vmatpush1.bf16.msra.mxu0 %v3177
        %3198 = vmatprep.subr.bf16.mxu0 0
        %3199 = vmatpush1.bf16.msra.mxu0 %v3178
        %3200 = vmatprep.subr.bf16.mxu0 0
        %3201 = vmatpush1.bf16.msra.mxu0 %v3179
        %3202 = vmatprep.subr.bf16.mxu0 0
        %3203 = vmatpush1.bf16.msra.mxu0 %v3180
        %3204 = vmatprep.subr.bf16.mxu0 0
        %3205 = vmatpush1.bf16.msra.mxu0 %v3181
        %3206 = vmatprep.subr.bf16.mxu0 0
        %3207 = vmatpush1.bf16.msra.mxu0 0
        %3208 = vmatprep.subr.bf16.mxu0 0
        %3209 = vmatpush1.bf16.msra.mxu0 0
        %3210 = vmatprep.subr.bf16.mxu0 0
        %3211 = vmatpush1.bf16.msra.mxu0 0
        %3212 = vmatprep.subr.bf16.mxu0 0
        %3213 = vmatpush1.bf16.msra.mxu0 0
        %3214 = vmatprep.subr.bf16.mxu0 0
        %3215 = vmatpush1.bf16.msra.mxu0 0
        %3216 = vmatprep.subr.bf16.mxu0 0
        %3217 = vmatpush1.bf16.msra.mxu0 0
        %3218 = vmatprep.subr.bf16.mxu0 0
        %3219 = vmatpush1.bf16.msra.mxu0 0
        %3220 = vmatprep.subr.bf16.mxu0 0
        %3221 = vmatpush1.bf16.msra.mxu0 0
        %3222 = vmatprep.mubr.bf16.mxu0 0
        %3223 = vmatmul.mubr.bf16.gmra.mrb[0].mxu0 %v715
        %v3224 = vpop.f32.mrb[0].mxu0
        %v3225 = vadd.f32 0.0, %v3224
        %v3226 = vpop.f32.mrb[0].mxu0
        %v3227 = vpop.f32.mrb[0].mxu0
        %v3228 = vadd.f32 0.0, %v3227
        %v3229 = vpop.f32.mrb[0].mxu0
        %3230 = vdwg.mxu0
        %v3231 = vpack.c.bf16 %v3228, %v3225
        %v3233 = vsel %vm1061, %v3017, 0
        %v3236 = vsel %vm1061, %v3124, 0
        %3238 = vmatprep.subr.bf16.mxu0 0
        %3239 = vmatpush1.bf16.xpose.msra.mxu0 %v3236
        %3240 = vmatprep.subr.bf16.mxu0 0
        %3241 = vmatpush1.bf16.xpose.msra.mxu0 0
        %3242 = vmatprep.subr.bf16.mxu0 0
        %3243 = vmatpush1.bf16.xpose.msra.mxu0 0
        %3244 = vmatprep.subr.bf16.mxu0 0
        %3245 = vmatpush1.bf16.xpose.msra.mxu0 0
        %3246 = vmatprep.subr.bf16.mxu0 0
        %3247 = vmatpush1.bf16.xpose.msra.mxu0 0
        %3248 = vmatprep.subr.bf16.mxu0 0
        %3249 = vmatpush1.bf16.xpose.msra.mxu0 0
        %3250 = vmatprep.subr.bf16.mxu0 0
        %3251 = vmatpush1.bf16.xpose.msra.mxu0 0
        %3252 = vmatprep.subr.bf16.mxu0 0
        %3253 = vmatpush1.bf16.xpose.msra.mxu0 0
        %3254 = vmatprep.subr.bf16.mxu0 0
        %3255 = vmatpush1.bf16.xpose.msra.mxu0 0
        %3256 = vmatprep.subr.bf16.mxu0 0
        %3257 = vmatpush1.bf16.xpose.msra.mxu0 0
        %3258 = vmatprep.subr.bf16.mxu0 0
        %3259 = vmatpush1.bf16.xpose.msra.mxu0 0
        %3260 = vmatprep.subr.bf16.mxu0 0
        %3261 = vmatpush1.bf16.xpose.msra.mxu0 0
        %3262 = vmatprep.subr.bf16.mxu0 0
        %3263 = vmatpush1.bf16.xpose.msra.mxu0 0
        %3264 = vmatprep.subr.bf16.mxu0 0
        %3265 = vmatpush1.bf16.xpose.msra.mxu0 0
        %3266 = vmatprep.subr.bf16.mxu0 0
        %3267 = vmatpush1.bf16.xpose.msra.mxu0 0
        %3268 = vmatprep.subr.bf16.mxu0 0
        %3269 = vmatpush1.bf16.xpose.msra.mxu0 0
        %3270 = vmatprep.mubr.bf16.mxu0 0
        %3271 = vmatmul.mubr.bf16.gmra.mrb[0].mxu0 %v3233
        %v3272 = vpop.f32.mrb[0].mxu0
        %v3273 = vadd.f32 0.0, %v3272
        %v3274 = vpop.f32.mrb[0].mxu0
        %v3275 = vpop.f32.mrb[0].mxu0
        %v3276 = vpop.f32.mrb[0].mxu0
        %3277 = vdwg.mxu0
        %v3278 = vsel %vm1108, %v3273, -inf
        %3279 = vmax.xlane.f32.xlu0 %v3278
        %v3280 = vpop.xlane.xlu0 %3279
        %v3281 = vsub.f32 %v3273, %v3280
        %v3282 = vmul.f32 %v3281, 1.442695
        %v3283 = vpow.pop %v3282
        %v3284 = vsel %vm1108, %v3283, 0.0
        %3285 = vadd.xlane.f32.xlu0 %v3284
        %v3286 = vpop.xlane.xlu0 %3285
        %v3287 = vrcp.pop %v3286
        %v3288 = vmul.f32 %v3283, %v3287
        %v3289 = vpack.c.bf16 %v3288, %v3288
        %v3291 = vsel %vm1108, %v3289, 0
        %3293 = vmatprep.subr.bf16.mxu0 0
        %3294 = vmatpush1.bf16.msra.mxu0 %v3231
        %3295 = vmatprep.subr.bf16.mxu0 0
        %3296 = vmatpush1.bf16.msra.mxu0 0
        %3297 = vmatprep.subr.bf16.mxu0 0
        %3298 = vmatpush1.bf16.msra.mxu0 0
        %3299 = vmatprep.subr.bf16.mxu0 0
        %3300 = vmatpush1.bf16.msra.mxu0 0
        %3301 = vmatprep.subr.bf16.mxu0 0
        %3302 = vmatpush1.bf16.msra.mxu0 0
        %3303 = vmatprep.subr.bf16.mxu0 0
        %3304 = vmatpush1.bf16.msra.mxu0 0
        %3305 = vmatprep.subr.bf16.mxu0 0
        %3306 = vmatpush1.bf16.msra.mxu0 0
        %3307 = vmatprep.subr.bf16.mxu0 0
        %3308 = vmatpush1.bf16.msra.mxu0 0
        %3309 = vmatprep.subr.bf16.mxu0 0
        %3310 = vmatpush1.bf16.msra.mxu0 0
        %3311 = vmatprep.subr.bf16.mxu0 0
        %3312 = vmatpush1.bf16.msra.mxu0 0
        %3313 = vmatprep.subr.bf16.mxu0 0
        %3314 = vmatpush1.bf16.msra.mxu0 0
        %3315 = vmatprep.subr.bf16.mxu0 0
        %3316 = vmatpush1.bf16.msra.mxu0 0
        %3317 = vmatprep.subr.bf16.mxu0 0
        %3318 = vmatpush1.bf16.msra.mxu0 0
        %3319 = vmatprep.subr.bf16.mxu0 0
        %3320 = vmatpush1.bf16.msra.mxu0 0
        %3321 = vmatprep.subr.bf16.mxu0 0
        %3322 = vmatpush1.bf16.msra.mxu0 0
        %3323 = vmatprep.subr.bf16.mxu0 0
        %3324 = vmatpush1.bf16.msra.mxu0 0
        %3325 = vmatprep.mubr.bf16.mxu0 0
        %3326 = vmatmul.mubr.bf16.gmra.mrb[0].mxu0 %v3291
        %v3327 = vpop.f32.mrb[0].mxu0
        %v3328 = vadd.f32 0.0, %v3327
        %v3329 = vpop.f32.mrb[0].mxu0
        %v3330 = vpop.f32.mrb[0].mxu0
        %v3331 = vpop.f32.mrb[0].mxu0
        %3332 = vdwg.mxu0
        %v3333 = vpack.c.bf16 %v3328, %v3328
        %s3334 = scalar_lea.vmem [#allocation10], 96
        %v3335 = vld [vmem:[%s3334] sm:$0xf]
        %v3336 = vld [vmem:[%s3334 + $0x4] sm:$0xf]
        %v3337 = vld [vmem:[%s3334 + $0x8] sm:$0xf]
        %v3338 = vld [vmem:[%s3334 + $0xc] sm:$0xf]
        %v3339 = vld [vmem:[%s3334 + $0x10] sm:$0xf]
        %v3340 = vld [vmem:[%s3334 + $0x14] sm:$0xf]
        %v3341 = vld [vmem:[%s3334 + $0x18] sm:$0xf]
        %v3342 = vld [vmem:[%s3334 + $0x1c] sm:$0xf]
        %v3351 = vunpack.c.l.b16 %v3335
        %v3352 = vunpack.c.l.b16 %v3336
        %v3353 = vunpack.c.l.b16 %v3337
        %v3354 = vunpack.c.l.b16 %v3338
        %v3355 = vunpack.c.l.b16 %v3339
        %v3356 = vunpack.c.l.b16 %v3340
        %v3357 = vunpack.c.l.b16 %v3341
        %v3358 = vunpack.c.l.b16 %v3342
        %v3359 = vpack.c.b16 %v3352, %v3351
        %v3360 = vpack.c.b16 %v3354, %v3353
        %v3361 = vpack.c.b16 %v3356, %v3355
        %v3362 = vpack.c.b16 %v3358, %v3357
        %v3368 = vsel %vm1061, %v3333, 0
        %3370 = vmatprep.subr.bf16.mxu0 0
        %3371 = vmatpush1.bf16.msra.mxu0 %v3359
        %3372 = vmatprep.subr.bf16.mxu0 0
        %3373 = vmatpush1.bf16.msra.mxu0 %v3360
        %3374 = vmatprep.subr.bf16.mxu0 0
        %3375 = vmatpush1.bf16.msra.mxu0 %v3361
        %3376 = vmatprep.subr.bf16.mxu0 0
        %3377 = vmatpush1.bf16.msra.mxu0 %v3362
        %3378 = vmatprep.subr.bf16.mxu0 0
        %3379 = vmatpush1.bf16.msra.mxu0 0
        %3380 = vmatprep.subr.bf16.mxu0 0
        %3381 = vmatpush1.bf16.msra.mxu0 0
        %3382 = vmatprep.subr.bf16.mxu0 0
        %3383 = vmatpush1.bf16.msra.mxu0 0
        %3384 = vmatprep.subr.bf16.mxu0 0
        %3385 = vmatpush1.bf16.msra.mxu0 0
        %3386 = vmatprep.subr.bf16.mxu0 0
        %3387 = vmatpush1.bf16.msra.mxu0 0
        %3388 = vmatprep.subr.bf16.mxu0 0
        %3389 = vmatpush1.bf16.msra.mxu0 0
        %3390 = vmatprep.subr.bf16.mxu0 0
        %3391 = vmatpush1.bf16.msra.mxu0 0
        %3392 = vmatprep.subr.bf16.mxu0 0
        %3393 = vmatpush1.bf16.msra.mxu0 0
        %3394 = vmatprep.subr.bf16.mxu0 0
        %3395 = vmatpush1.bf16.msra.mxu0 0
        %3396 = vmatprep.subr.bf16.mxu0 0
        %3397 = vmatpush1.bf16.msra.mxu0 0
        %3398 = vmatprep.subr.bf16.mxu0 0
        %3399 = vmatpush1.bf16.msra.mxu0 0
        %3400 = vmatprep.subr.bf16.mxu0 0
        %3401 = vmatpush1.bf16.msra.mxu0 0
        %3402 = vmatprep.mubr.bf16.mxu0 0
        %3403 = vmatmul.mubr.bf16.gmra.mrb[0].mxu0 %v3368
        %v3404 = vpop.f32.mrb[0].mxu0
        %v3405 = vadd.f32 0.0, %v3404
        %v3406 = vpop.f32.mrb[0].mxu0
        %v3407 = vpop.f32.mrb[0].mxu0
        %v3408 = vpop.f32.mrb[0].mxu0
        %3409 = vdwg.mxu0
        %v3418 = vunpack.c.l.b16 %v2904
        %v3419 = vunpack.c.l.b16 %v2905
        %v3420 = vunpack.c.l.b16 %v2906
        %v3421 = vunpack.c.l.b16 %v2907
        %v3422 = vunpack.c.l.b16 %v2908
        %v3423 = vunpack.c.l.b16 %v2909
        %v3424 = vunpack.c.l.b16 %v2910
        %v3425 = vunpack.c.l.b16 %v2911
        %v3426 = vpack.c.b16 %v3419, %v3418
        %v3427 = vpack.c.b16 %v3421, %v3420
        %v3428 = vpack.c.b16 %v3423, %v3422
        %v3429 = vpack.c.b16 %v3425, %v3424
        %v3435 = vsel %vm1061, %v2902, 0
        %3437 = vmatprep.subr.bf16.mxu0 0
        %3438 = vmatpush1.bf16.msra.mxu0 %v3426
        %3439 = vmatprep.subr.bf16.mxu0 0
        %3440 = vmatpush1.bf16.msra.mxu0 %v3427
        %3441 = vmatprep.subr.bf16.mxu0 0
        %3442 = vmatpush1.bf16.msra.mxu0 %v3428
        %3443 = vmatprep.subr.bf16.mxu0 0
        %3444 = vmatpush1.bf16.msra.mxu0 %v3429
        %3445 = vmatprep.subr.bf16.mxu0 0
        %3446 = vmatpush1.bf16.msra.mxu0 0
        %3447 = vmatprep.subr.bf16.mxu0 0
        %3448 = vmatpush1.bf16.msra.mxu0 0
        %3449 = vmatprep.subr.bf16.mxu0 0
        %3450 = vmatpush1.bf16.msra.mxu0 0
        %3451 = vmatprep.subr.bf16.mxu0 0
        %3452 = vmatpush1.bf16.msra.mxu0 0
        %3453 = vmatprep.subr.bf16.mxu0 0
        %3454 = vmatpush1.bf16.msra.mxu0 0
        %3455 = vmatprep.subr.bf16.mxu0 0
        %3456 = vmatpush1.bf16.msra.mxu0 0
        %3457 = vmatprep.subr.bf16.mxu0 0
        %3458 = vmatpush1.bf16.msra.mxu0 0
        %3459 = vmatprep.subr.bf16.mxu0 0
        %3460 = vmatpush1.bf16.msra.mxu0 0
        %3461 = vmatprep.subr.bf16.mxu0 0
        %3462 = vmatpush1.bf16.msra.mxu0 0
        %3463 = vmatprep.subr.bf16.mxu0 0
        %3464 = vmatpush1.bf16.msra.mxu0 0
        %3465 = vmatprep.subr.bf16.mxu0 0
        %3466 = vmatpush1.bf16.msra.mxu0 0
        %3467 = vmatprep.subr.bf16.mxu0 0
        %3468 = vmatpush1.bf16.msra.mxu0 0
        %3469 = vmatprep.mubr.bf16.mxu0 0
        %3470 = vmatmul.mubr.bf16.gmra.mrb[0].mxu0 %v3435
        %v3471 = vpop.f32.mrb[0].mxu0
        %v3472 = vadd.f32 %v3405, %v3471
        %v3473 = vpop.f32.mrb[0].mxu0
        %v3474 = vpop.f32.mrb[0].mxu0
        %v3475 = vpop.f32.mrb[0].mxu0
        %3476 = vdwg.mxu0
        %v3477 = vadd.f32 %v2450, %v3472
        %s3478 = scalar_lea.vmem %s13, 1
        %v3479 = vld [vmem:[%s3478] sm:$0x1]
        %v3481 = vlaneseq
        %v3482 = vshrl.u32 %v3481, 7
        %v3483 = vsub.s32 0, %v3482
        %v3484 = vrot.slane %v3479, %v3483
        %v3486 = vadd.f32 %v3477, %v3484
        %s3487 = scalar_lea.vmem %s7, 1
        %v3488 = vld [vmem:[%s3487] sm:$0x1]
        %s3489 = scalar_lea.vmem %s8, 1
        %v3490 = vld [vmem:[%s3489] sm:$0x1]
        %3491 = vadd.xlane.f32.xlu0 %v3486
        %v3492 = vpop.xlane.xlu0 %3491
        %v3493 = vmul.f32 %v3492, %v680
        %v3494 = vsub.f32 %v3486, %v3493
        %v3495 = vmul.f32 %v3494, %v3494
        %3496 = vadd.xlane.f32.xlu0 %v3495
        %v3497 = vpop.xlane.xlu0 %3496
        %v3498 = vmul.f32 %v3497, %v680
        %v3499 = vadd.f32 %v3498, 1e-05
        %v3500 = vrsqrt.pop %v3499
        %v3501 = vmul.f32 %v3494, %v3500
        %v3503 = vlaneseq
        %v3504 = vshrl.u32 %v3503, 7
        %v3505 = vsub.s32 0, %v3504
        %v3506 = vrot.slane %v3488, %v3505
        %v3508 = vmul.f32 %v3501, %v3506
        %v3510 = vlaneseq
        %v3511 = vshrl.u32 %v3510, 7
        %v3512 = vsub.s32 0, %v3511
        %v3513 = vrot.slane %v3490, %v3512
        %v3515 = vadd.f32 %v3508, %v3513
        %v3516 = vpack.c.bf16 %v3515, %v3515
        %s3517 = scalar_lea.vmem %s14, 256
        %v3518 = vld [vmem:[%s3517] sm:$0xff]
        %v3519 = vld [vmem:[%s3517 + $0x8] sm:$0xff]
        %v3520 = vld [vmem:[%s3517 + $0x10] sm:$0xff]
        %v3521 = vld [vmem:[%s3517 + $0x18] sm:$0xff]
        %v3522 = vld [vmem:[%s3517 + $0x20] sm:$0xff]
        %v3523 = vld [vmem:[%s3517 + $0x28] sm:$0xff]
        %v3524 = vld [vmem:[%s3517 + $0x30] sm:$0xff]
        %v3525 = vld [vmem:[%s3517 + $0x38] sm:$0xff]
        %v3526 = vld [vmem:[%s3517 + $0x40] sm:$0xff]
        %v3527 = vld [vmem:[%s3517 + $0x48] sm:$0xff]
        %v3528 = vld [vmem:[%s3517 + $0x50] sm:$0xff]
        %v3529 = vld [vmem:[%s3517 + $0x58] sm:$0xff]
        %v3530 = vld [vmem:[%s3517 + $0x60] sm:$0xff]
        %v3531 = vld [vmem:[%s3517 + $0x68] sm:$0xff]
        %v3532 = vld [vmem:[%s3517 + $0x70] sm:$0xff]
        %v3533 = vld [vmem:[%s3517 + $0x78] sm:$0xff]
        %v3534 = vld [vmem:[%s3517 + $0x80] sm:$0xff]
        %v3535 = vld [vmem:[%s3517 + $0x88] sm:$0xff]
        %v3536 = vld [vmem:[%s3517 + $0x90] sm:$0xff]
        %v3537 = vld [vmem:[%s3517 + $0x98] sm:$0xff]
        %v3538 = vld [vmem:[%s3517 + $0xa0] sm:$0xff]
        %v3539 = vld [vmem:[%s3517 + $0xa8] sm:$0xff]
        %v3540 = vld [vmem:[%s3517 + $0xb0] sm:$0xff]
        %v3541 = vld [vmem:[%s3517 + $0xb8] sm:$0xff]
        %v3542 = vld [vmem:[%s3517 + $0xc0] sm:$0xff]
        %v3543 = vld [vmem:[%s3517 + $0xc8] sm:$0xff]
        %v3544 = vld [vmem:[%s3517 + $0xd0] sm:$0xff]
        %v3545 = vld [vmem:[%s3517 + $0xd8] sm:$0xff]
        %v3546 = vld [vmem:[%s3517 + $0xe0] sm:$0xff]
        %v3547 = vld [vmem:[%s3517 + $0xe8] sm:$0xff]
        %v3548 = vld [vmem:[%s3517 + $0xf0] sm:$0xff]
        %v3549 = vld [vmem:[%s3517 + $0xf8] sm:$0xff]
        %s3550 = scalar_lea.vmem %s15, 4
        %v3551 = vld [vmem:[%s3550] sm:$0xf]
        %v3553 = vlaneseq
        %v3554 = vshrl.u32 %v3553, 7
        %v3555 = vsub.s32 0, %v3554
        %v3556 = vrot.slane %v3551, %v3555
        %v3557 = vlaneseq
        %v3558 = vshrl.u32 %v3557, 7
        %v3559 = vsub.s32 1, %v3558
        %v3560 = vrot.slane %v3551, %v3559
        %v3561 = vlaneseq
        %v3562 = vshrl.u32 %v3561, 7
        %v3563 = vsub.s32 2, %v3562
        %v3564 = vrot.slane %v3551, %v3563
        %v3565 = vlaneseq
        %v3566 = vshrl.u32 %v3565, 7
        %v3567 = vsub.s32 3, %v3566
        %v3568 = vrot.slane %v3551, %v3567
        %v3605 = vunpack.c.l.b16 %v3518
        %v3606 = vunpack.c.h.b16 %v3518
        %v3607 = vunpack.c.l.b16 %v3519
        %v3608 = vunpack.c.h.b16 %v3519
        %v3609 = vunpack.c.l.b16 %v3520
        %v3610 = vunpack.c.h.b16 %v3520
        %v3611 = vunpack.c.l.b16 %v3521
        %v3612 = vunpack.c.h.b16 %v3521
        %v3613 = vunpack.c.l.b16 %v3522
        %v3614 = vunpack.c.h.b16 %v3522
        %v3615 = vunpack.c.l.b16 %v3523
        %v3616 = vunpack.c.h.b16 %v3523
        %v3617 = vunpack.c.l.b16 %v3524
        %v3618 = vunpack.c.h.b16 %v3524
        %v3619 = vunpack.c.l.b16 %v3525
        %v3620 = vunpack.c.h.b16 %v3525
        %v3621 = vunpack.c.l.b16 %v3526
        %v3622 = vunpack.c.h.b16 %v3526
        %v3623 = vunpack.c.l.b16 %v3527
        %v3624 = vunpack.c.h.b16 %v3527
        %v3625 = vunpack.c.l.b16 %v3528
        %v3626 = vunpack.c.h.b16 %v3528
        %v3627 = vunpack.c.l.b16 %v3529
        %v3628 = vunpack.c.h.b16 %v3529
        %v3629 = vunpack.c.l.b16 %v3530
        %v3630 = vunpack.c.h.b16 %v3530
        %v3631 = vunpack.c.l.b16 %v3531
        %v3632 = vunpack.c.h.b16 %v3531
        %v3633 = vunpack.c.l.b16 %v3532
        %v3634 = vunpack.c.h.b16 %v3532
        %v3635 = vunpack.c.l.b16 %v3533
        %v3636 = vunpack.c.h.b16 %v3533
        %v3637 = vunpack.c.l.b16 %v3534
        %v3638 = vunpack.c.h.b16 %v3534
        %v3639 = vunpack.c.l.b16 %v3535
        %v3640 = vunpack.c.h.b16 %v3535
        %v3641 = vunpack.c.l.b16 %v3536
        %v3642 = vunpack.c.h.b16 %v3536
        %v3643 = vunpack.c.l.b16 %v3537
        %v3644 = vunpack.c.h.b16 %v3537
        %v3645 = vunpack.c.l.b16 %v3538
        %v3646 = vunpack.c.h.b16 %v3538
        %v3647 = vunpack.c.l.b16 %v3539
        %v3648 = vunpack.c.h.b16 %v3539
        %v3649 = vunpack.c.l.b16 %v3540
        %v3650 = vunpack.c.h.b16 %v3540
        %v3651 = vunpack.c.l.b16 %v3541
        %v3652 = vunpack.c.h.b16 %v3541
        %v3653 = vunpack.c.l.b16 %v3542
        %v3654 = vunpack.c.h.b16 %v3542
        %v3655 = vunpack.c.l.b16 %v3543
        %v3656 = vunpack.c.h.b16 %v3543
        %v3657 = vunpack.c.l.b16 %v3544
        %v3658 = vunpack.c.h.b16 %v3544
        %v3659 = vunpack.c.l.b16 %v3545
        %v3660 = vunpack.c.h.b16 %v3545
        %v3661 = vunpack.c.l.b16 %v3546
        %v3662 = vunpack.c.h.b16 %v3546
        %v3663 = vunpack.c.l.b16 %v3547
        %v3664 = vunpack.c.h.b16 %v3547
        %v3665 = vunpack.c.l.b16 %v3548
        %v3666 = vunpack.c.h.b16 %v3548
        %v3667 = vunpack.c.l.b16 %v3549
        %v3668 = vunpack.c.h.b16 %v3549
        %v3669 = vpack.c.b16 %v3609, %v3605
        %v3670 = vpack.c.b16 %v3610, %v3606
        %v3671 = vpack.c.b16 %v3611, %v3607
        %v3672 = vpack.c.b16 %v3612, %v3608
        %v3673 = vpack.c.b16 %v3617, %v3613
        %v3674 = vpack.c.b16 %v3618, %v3614
        %v3675 = vpack.c.b16 %v3619, %v3615
        %v3676 = vpack.c.b16 %v3620, %v3616
        %v3677 = vpack.c.b16 %v3625, %v3621
        %v3678 = vpack.c.b16 %v3626, %v3622
        %v3679 = vpack.c.b16 %v3627, %v3623
        %v3680 = vpack.c.b16 %v3628, %v3624
        %v3681 = vpack.c.b16 %v3633, %v3629
        %v3682 = vpack.c.b16 %v3634, %v3630
        %v3683 = vpack.c.b16 %v3635, %v3631
        %v3684 = vpack.c.b16 %v3636, %v3632
        %v3685 = vpack.c.b16 %v3641, %v3637
        %v3686 = vpack.c.b16 %v3642, %v3638
        %v3687 = vpack.c.b16 %v3643, %v3639
        %v3688 = vpack.c.b16 %v3644, %v3640
        %v3689 = vpack.c.b16 %v3649, %v3645
        %v3690 = vpack.c.b16 %v3650, %v3646
        %v3691 = vpack.c.b16 %v3651, %v3647
        %v3692 = vpack.c.b16 %v3652, %v3648
        %v3693 = vpack.c.b16 %v3657, %v3653
        %v3694 = vpack.c.b16 %v3658, %v3654
        %v3695 = vpack.c.b16 %v3659, %v3655
        %v3696 = vpack.c.b16 %v3660, %v3656
        %v3697 = vpack.c.b16 %v3665, %v3661
        %v3698 = vpack.c.b16 %v3666, %v3662
        %v3699 = vpack.c.b16 %v3667, %v3663
        %v3700 = vpack.c.b16 %v3668, %v3664
        %3733 = vmatprep.subr.bf16.mxu0 %v3670
        %3734 = vmatpush1.bf16.msra.mxu0 %v3669
        %3735 = vmatprep.subr.bf16.mxu0 %v3674
        %3736 = vmatpush1.bf16.msra.mxu0 %v3673
        %3737 = vmatprep.subr.bf16.mxu0 %v3678
        %3738 = vmatpush1.bf16.msra.mxu0 %v3677
        %3739 = vmatprep.subr.bf16.mxu0 %v3682
        %3740 = vmatpush1.bf16.msra.mxu0 %v3681
        %3741 = vmatprep.subr.bf16.mxu0 %v3686
        %3742 = vmatpush1.bf16.msra.mxu0 %v3685
        %3743 = vmatprep.subr.bf16.mxu0 %v3690
        %3744 = vmatpush1.bf16.msra.mxu0 %v3689
        %3745 = vmatprep.subr.bf16.mxu0 %v3694
        %3746 = vmatpush1.bf16.msra.mxu0 %v3693
        %3747 = vmatprep.subr.bf16.mxu0 %v3698
        %3748 = vmatpush1.bf16.msra.mxu0 %v3697
        %3749 = vmatprep.subr.bf16.mxu0 0
        %3750 = vmatpush1.bf16.msra.mxu0 0
        %3751 = vmatprep.subr.bf16.mxu0 0
        %3752 = vmatpush1.bf16.msra.mxu0 0
        %3753 = vmatprep.subr.bf16.mxu0 0
        %3754 = vmatpush1.bf16.msra.mxu0 0
        %3755 = vmatprep.subr.bf16.mxu0 0
        %3756 = vmatpush1.bf16.msra.mxu0 0
        %3757 = vmatprep.subr.bf16.mxu0 0
        %3758 = vmatpush1.bf16.msra.mxu0 0
        %3759 = vmatprep.subr.bf16.mxu0 0
        %3760 = vmatpush1.bf16.msra.mxu0 0
        %3761 = vmatprep.subr.bf16.mxu0 0
        %3762 = vmatpush1.bf16.msra.mxu0 0
        %3763 = vmatprep.subr.bf16.mxu0 0
        %3764 = vmatpush1.bf16.msra.mxu0 0
        %3765 = vmatprep.mubr.bf16.mxu0 0
        %3766 = vmatmul.mubr.bf16.gmra.mrb[0].mxu0 %v3516
        %v3767 = vpop.f32.mrb[0].mxu0
        %v3768 = vadd.f32 %v3556, %v3767
        %v3769 = vpop.f32.mrb[0].mxu0
        %v3770 = vadd.f32 %v3560, %v3769
        %v3771 = vpop.f32.mrb[0].mxu0
        %v3772 = vpop.f32.mrb[0].mxu0
        %3773 = vdwg.mxu0
        %3774 = vmatprep.subr.bf16.mxu0 %v3672
        %3775 = vmatpush1.bf16.msra.mxu0 %v3671
        %3776 = vmatprep.subr.bf16.mxu0 %v3676
        %3777 = vmatpush1.bf16.msra.mxu0 %v3675
        %3778 = vmatprep.subr.bf16.mxu0 %v3680
        %3779 = vmatpush1.bf16.msra.mxu0 %v3679
        %3780 = vmatprep.subr.bf16.mxu0 %v3684
        %3781 = vmatpush1.bf16.msra.mxu0 %v3683
        %3782 = vmatprep.subr.bf16.mxu0 %v3688
        %3783 = vmatpush1.bf16.msra.mxu0 %v3687
        %3784 = vmatprep.subr.bf16.mxu0 %v3692
        %3785 = vmatpush1.bf16.msra.mxu0 %v3691
        %3786 = vmatprep.subr.bf16.mxu0 %v3696
        %3787 = vmatpush1.bf16.msra.mxu0 %v3695
        %3788 = vmatprep.subr.bf16.mxu0 %v3700
        %3789 = vmatpush1.bf16.msra.mxu0 %v3699
        %3790 = vmatprep.subr.bf16.mxu0 0
        %3791 = vmatpush1.bf16.msra.mxu0 0
        %3792 = vmatprep.subr.bf16.mxu0 0
        %3793 = vmatpush1.bf16.msra.mxu0 0
        %3794 = vmatprep.subr.bf16.mxu0 0
        %3795 = vmatpush1.bf16.msra.mxu0 0
        %3796 = vmatprep.subr.bf16.mxu0 0
        %3797 = vmatpush1.bf16.msra.mxu0 0
        %3798 = vmatprep.subr.bf16.mxu0 0
        %3799 = vmatpush1.bf16.msra.mxu0 0
        %3800 = vmatprep.subr.bf16.mxu0 0
        %3801 = vmatpush1.bf16.msra.mxu0 0
        %3802 = vmatprep.subr.bf16.mxu0 0
        %3803 = vmatpush1.bf16.msra.mxu0 0
        %3804 = vmatprep.subr.bf16.mxu0 0
        %3805 = vmatpush1.bf16.msra.mxu0 0
        %3806 = vmatprep.mubr.bf16.mxu0 0
        %3807 = vmatmul.mubr.bf16.gmra.mrb[0].mxu0 %v3516
        %v3808 = vpop.f32.mrb[0].mxu0
        %v3809 = vadd.f32 %v3564, %v3808
        %v3810 = vpop.f32.mrb[0].mxu0
        %v3811 = vadd.f32 %v3568, %v3810
        %v3812 = vpop.f32.mrb[0].mxu0
        %v3813 = vpop.f32.mrb[0].mxu0
        %3814 = vdwg.mxu0
        %v3815 = vmul.f32 %v3768, 1.702
        %v3816 = vmul.f32 %v3770, 1.702
        %v3817 = vmul.f32 %v3809, 1.702
        %v3818 = vmul.f32 %v3811, 1.702
        %v3819 = vxor.u32 %v3815, 2147483648
        %v3820 = vxor.u32 %v3816, 2147483648
        %v3821 = vxor.u32 %v3817, 2147483648
        %v3822 = vxor.u32 %v3818, 2147483648
        %v3823 = vmul.f32 %v3819, 1.442695
        %v3824 = vpow.pop %v3823
        %v3825 = vmul.f32 %v3820, 1.442695
        %v3826 = vpow.pop %v3825
        %v3827 = vmul.f32 %v3821, 1.442695
        %v3828 = vpow.pop %v3827
        %v3829 = vmul.f32 %v3822, 1.442695
        %v3830 = vpow.pop %v3829
        %v3831 = vadd.f32 %v3824, 1.0
        %v3832 = vadd.f32 %v3826, 1.0
        %v3833 = vadd.f32 %v3828, 1.0
        %v3834 = vadd.f32 %v3830, 1.0
        %v3835 = vrcp.pop %v3831
        %v3836 = vmul.f32 1.0, %v3835
        %v3837 = vrcp.pop %v3832
        %v3838 = vmul.f32 1.0, %v3837
        %v3839 = vrcp.pop %v3833
        %v3840 = vmul.f32 1.0, %v3839
        %v3841 = vrcp.pop %v3834
        %v3842 = vmul.f32 1.0, %v3841
        %v3843 = vmul.f32 %v3768, %v3836
        %v3844 = vmul.f32 %v3770, %v3838
        %v3845 = vmul.f32 %v3809, %v3840
        %v3846 = vmul.f32 %v3811, %v3842
        %v3847 = vpack.c.bf16 %v3843, %v3843
        %v3848 = vpack.c.bf16 %v3844, %v3844
        %v3849 = vpack.c.bf16 %v3845, %v3845
        %v3850 = vpack.c.bf16 %v3846, %v3846
        %s3851 = scalar_lea.vmem %s16, 256
        %v3852 = vld [vmem:[%s3851] sm:$0xf]
        %v3853 = vld [vmem:[%s3851 + $0x4] sm:$0xf]
        %v3854 = vld [vmem:[%s3851 + $0x8] sm:$0xf]
        %v3855 = vld [vmem:[%s3851 + $0xc] sm:$0xf]
        %v3856 = vld [vmem:[%s3851 + $0x10] sm:$0xf]
        %v3857 = vld [vmem:[%s3851 + $0x14] sm:$0xf]
        %v3858 = vld [vmem:[%s3851 + $0x18] sm:$0xf]
        %v3859 = vld [vmem:[%s3851 + $0x1c] sm:$0xf]
        %v3860 = vld [vmem:[%s3851 + $0x20] sm:$0xf]
        %v3861 = vld [vmem:[%s3851 + $0x24] sm:$0xf]
        %v3862 = vld [vmem:[%s3851 + $0x28] sm:$0xf]
        %v3863 = vld [vmem:[%s3851 + $0x2c] sm:$0xf]
        %v3864 = vld [vmem:[%s3851 + $0x30] sm:$0xf]
        %v3865 = vld [vmem:[%s3851 + $0x34] sm:$0xf]
        %v3866 = vld [vmem:[%s3851 + $0x38] sm:$0xf]
        %v3867 = vld [vmem:[%s3851 + $0x3c] sm:$0xf]
        %v3868 = vld [vmem:[%s3851 + $0x40] sm:$0xf]
        %v3869 = vld [vmem:[%s3851 + $0x44] sm:$0xf]
        %v3870 = vld [vmem:[%s3851 + $0x48] sm:$0xf]
        %v3871 = vld [vmem:[%s3851 + $0x4c] sm:$0xf]
        %v3872 = vld [vmem:[%s3851 + $0x50] sm:$0xf]
        %v3873 = vld [vmem:[%s3851 + $0x54] sm:$0xf]
        %v3874 = vld [vmem:[%s3851 + $0x58] sm:$0xf]
        %v3875 = vld [vmem:[%s3851 + $0x5c] sm:$0xf]
        %v3876 = vld [vmem:[%s3851 + $0x60] sm:$0xf]
        %v3877 = vld [vmem:[%s3851 + $0x64] sm:$0xf]
        %v3878 = vld [vmem:[%s3851 + $0x68] sm:$0xf]
        %v3879 = vld [vmem:[%s3851 + $0x6c] sm:$0xf]
        %v3880 = vld [vmem:[%s3851 + $0x70] sm:$0xf]
        %v3881 = vld [vmem:[%s3851 + $0x74] sm:$0xf]
        %v3882 = vld [vmem:[%s3851 + $0x78] sm:$0xf]
        %v3883 = vld [vmem:[%s3851 + $0x7c] sm:$0xf]
        %v3884 = vld [vmem:[%s3851 + $0x80] sm:$0xf]
        %v3885 = vld [vmem:[%s3851 + $0x84] sm:$0xf]
        %v3886 = vld [vmem:[%s3851 + $0x88] sm:$0xf]
        %v3887 = vld [vmem:[%s3851 + $0x8c] sm:$0xf]
        %v3888 = vld [vmem:[%s3851 + $0x90] sm:$0xf]
        %v3889 = vld [vmem:[%s3851 + $0x94] sm:$0xf]
        %v3890 = vld [vmem:[%s3851 + $0x98] sm:$0xf]
        %v3891 = vld [vmem:[%s3851 + $0x9c] sm:$0xf]
        %v3892 = vld [vmem:[%s3851 + $0xa0] sm:$0xf]
        %v3893 = vld [vmem:[%s3851 + $0xa4] sm:$0xf]
        %v3894 = vld [vmem:[%s3851 + $0xa8] sm:$0xf]
        %v3895 = vld [vmem:[%s3851 + $0xac] sm:$0xf]
        %v3896 = vld [vmem:[%s3851 + $0xb0] sm:$0xf]
        %v3897 = vld [vmem:[%s3851 + $0xb4] sm:$0xf]
        %v3898 = vld [vmem:[%s3851 + $0xb8] sm:$0xf]
        %v3899 = vld [vmem:[%s3851 + $0xbc] sm:$0xf]
        %v3900 = vld [vmem:[%s3851 + $0xc0] sm:$0xf]
        %v3901 = vld [vmem:[%s3851 + $0xc4] sm:$0xf]
        %v3902 = vld [vmem:[%s3851 + $0xc8] sm:$0xf]
        %v3903 = vld [vmem:[%s3851 + $0xcc] sm:$0xf]
        %v3904 = vld [vmem:[%s3851 + $0xd0] sm:$0xf]
        %v3905 = vld [vmem:[%s3851 + $0xd4] sm:$0xf]
        %v3906 = vld [vmem:[%s3851 + $0xd8] sm:$0xf]
        %v3907 = vld [vmem:[%s3851 + $0xdc] sm:$0xf]
        %v3908 = vld [vmem:[%s3851 + $0xe0] sm:$0xf]
        %v3909 = vld [vmem:[%s3851 + $0xe4] sm:$0xf]
        %v3910 = vld [vmem:[%s3851 + $0xe8] sm:$0xf]
        %v3911 = vld [vmem:[%s3851 + $0xec] sm:$0xf]
        %v3912 = vld [vmem:[%s3851 + $0xf0] sm:$0xf]
        %v3913 = vld [vmem:[%s3851 + $0xf4] sm:$0xf]
        %v3914 = vld [vmem:[%s3851 + $0xf8] sm:$0xf]
        %v3915 = vld [vmem:[%s3851 + $0xfc] sm:$0xf]
        %s3916 = scalar_lea.vmem %s17, 1
        %v3917 = vld [vmem:[%s3916] sm:$0x1]
        %v3919 = vlaneseq
        %v3920 = vshrl.u32 %v3919, 7
        %v3921 = vsub.s32 0, %v3920
        %v3922 = vrot.slane %v3917, %v3921
        %v3988 = vunpack.c.l.b16 %v3852
        %v3989 = vunpack.c.l.b16 %v3853
        %v3990 = vunpack.c.l.b16 %v3854
        %v3991 = vunpack.c.l.b16 %v3855
        %v3992 = vunpack.c.l.b16 %v3856
        %v3993 = vunpack.c.l.b16 %v3857
        %v3994 = vunpack.c.l.b16 %v3858
        %v3995 = vunpack.c.l.b16 %v3859
        %v3996 = vunpack.c.l.b16 %v3860
        %v3997 = vunpack.c.l.b16 %v3861
        %v3998 = vunpack.c.l.b16 %v3862
        %v3999 = vunpack.c.l.b16 %v3863
        %v4000 = vunpack.c.l.b16 %v3864
        %v4001 = vunpack.c.l.b16 %v3865
        %v4002 = vunpack.c.l.b16 %v3866
        %v4003 = vunpack.c.l.b16 %v3867
        %v4004 = vunpack.c.l.b16 %v3868
        %v4005 = vunpack.c.l.b16 %v3869
        %v4006 = vunpack.c.l.b16 %v3870
        %v4007 = vunpack.c.l.b16 %v3871
        %v4008 = vunpack.c.l.b16 %v3872
        %v4009 = vunpack.c.l.b16 %v3873
        %v4010 = vunpack.c.l.b16 %v3874
        %v4011 = vunpack.c.l.b16 %v3875
        %v4012 = vunpack.c.l.b16 %v3876
        %v4013 = vunpack.c.l.b16 %v3877
        %v4014 = vunpack.c.l.b16 %v3878
        %v4015 = vunpack.c.l.b16 %v3879
        %v4016 = vunpack.c.l.b16 %v3880
        %v4017 = vunpack.c.l.b16 %v3881
        %v4018 = vunpack.c.l.b16 %v3882
        %v4019 = vunpack.c.l.b16 %v3883
        %v4020 = vunpack.c.l.b16 %v3884
        %v4021 = vunpack.c.l.b16 %v3885
        %v4022 = vunpack.c.l.b16 %v3886
        %v4023 = vunpack.c.l.b16 %v3887
        %v4024 = vunpack.c.l.b16 %v3888
        %v4025 = vunpack.c.l.b16 %v3889
        %v4026 = vunpack.c.l.b16 %v3890
        %v4027 = vunpack.c.l.b16 %v3891
        %v4028 = vunpack.c.l.b16 %v3892
        %v4029 = vunpack.c.l.b16 %v3893
        %v4030 = vunpack.c.l.b16 %v3894
        %v4031 = vunpack.c.l.b16 %v3895
        %v4032 = vunpack.c.l.b16 %v3896
        %v4033 = vunpack.c.l.b16 %v3897
        %v4034 = vunpack.c.l.b16 %v3898
        %v4035 = vunpack.c.l.b16 %v3899
        %v4036 = vunpack.c.l.b16 %v3900
        %v4037 = vunpack.c.l.b16 %v3901
        %v4038 = vunpack.c.l.b16 %v3902
        %v4039 = vunpack.c.l.b16 %v3903
        %v4040 = vunpack.c.l.b16 %v3904
        %v4041 = vunpack.c.l.b16 %v3905
        %v4042 = vunpack.c.l.b16 %v3906
        %v4043 = vunpack.c.l.b16 %v3907
        %v4044 = vunpack.c.l.b16 %v3908
        %v4045 = vunpack.c.l.b16 %v3909
        %v4046 = vunpack.c.l.b16 %v3910
        %v4047 = vunpack.c.l.b16 %v3911
        %v4048 = vunpack.c.l.b16 %v3912
        %v4049 = vunpack.c.l.b16 %v3913
        %v4050 = vunpack.c.l.b16 %v3914
        %v4051 = vunpack.c.l.b16 %v3915
        %v4052 = vpack.c.b16 %v3989, %v3988
        %v4053 = vpack.c.b16 %v3991, %v3990
        %v4054 = vpack.c.b16 %v3993, %v3992
        %v4055 = vpack.c.b16 %v3995, %v3994
        %v4056 = vpack.c.b16 %v3997, %v3996
        %v4057 = vpack.c.b16 %v3999, %v3998
        %v4058 = vpack.c.b16 %v4001, %v4000
        %v4059 = vpack.c.b16 %v4003, %v4002
        %v4060 = vpack.c.b16 %v4005, %v4004
        %v4061 = vpack.c.b16 %v4007, %v4006
        %v4062 = vpack.c.b16 %v4009, %v4008
        %v4063 = vpack.c.b16 %v4011, %v4010
        %v4064 = vpack.c.b16 %v4013, %v4012
        %v4065 = vpack.c.b16 %v4015, %v4014
        %v4066 = vpack.c.b16 %v4017, %v4016
        %v4067 = vpack.c.b16 %v4019, %v4018
        %v4068 = vpack.c.b16 %v4021, %v4020
        %v4069 = vpack.c.b16 %v4023, %v4022
        %v4070 = vpack.c.b16 %v4025, %v4024
        %v4071 = vpack.c.b16 %v4027, %v4026
        %v4072 = vpack.c.b16 %v4029, %v4028
        %v4073 = vpack.c.b16 %v4031, %v4030
        %v4074 = vpack.c.b16 %v4033, %v4032
        %v4075 = vpack.c.b16 %v4035, %v4034
        %v4076 = vpack.c.b16 %v4037, %v4036
        %v4077 = vpack.c.b16 %v4039, %v4038
        %v4078 = vpack.c.b16 %v4041, %v4040
        %v4079 = vpack.c.b16 %v4043, %v4042
        %v4080 = vpack.c.b16 %v4045, %v4044
        %v4081 = vpack.c.b16 %v4047, %v4046
        %v4082 = vpack.c.b16 %v4049, %v4048
        %v4083 = vpack.c.b16 %v4051, %v4050
        %4116 = vmatprep.subr.bf16.mxu0 0
        %4117 = vmatpush1.bf16.msra.mxu0 %v4052
        %4118 = vmatprep.subr.bf16.mxu0 0
        %4119 = vmatpush1.bf16.msra.mxu0 %v4053
        %4120 = vmatprep.subr.bf16.mxu0 0
        %4121 = vmatpush1.bf16.msra.mxu0 %v4054
        %4122 = vmatprep.subr.bf16.mxu0 0
        %4123 = vmatpush1.bf16.msra.mxu0 %v4055
        %4124 = vmatprep.subr.bf16.mxu0 0
        %4125 = vmatpush1.bf16.msra.mxu0 %v4056
        %4126 = vmatprep.subr.bf16.mxu0 0
        %4127 = vmatpush1.bf16.msra.mxu0 %v4057
        %4128 = vmatprep.subr.bf16.mxu0 0
        %4129 = vmatpush1.bf16.msra.mxu0 %v4058
        %4130 = vmatprep.subr.bf16.mxu0 0
        %4131 = vmatpush1.bf16.msra.mxu0 %v4059
        %4132 = vmatprep.subr.bf16.mxu0 0
        %4133 = vmatpush1.bf16.msra.mxu0 %v4060
        %4134 = vmatprep.subr.bf16.mxu0 0
        %4135 = vmatpush1.bf16.msra.mxu0 %v4061
        %4136 = vmatprep.subr.bf16.mxu0 0
        %4137 = vmatpush1.bf16.msra.mxu0 %v4062
        %4138 = vmatprep.subr.bf16.mxu0 0
        %4139 = vmatpush1.bf16.msra.mxu0 %v4063
        %4140 = vmatprep.subr.bf16.mxu0 0
        %4141 = vmatpush1.bf16.msra.mxu0 %v4064
        %4142 = vmatprep.subr.bf16.mxu0 0
        %4143 = vmatpush1.bf16.msra.mxu0 %v4065
        %4144 = vmatprep.subr.bf16.mxu0 0
        %4145 = vmatpush1.bf16.msra.mxu0 %v4066
        %4146 = vmatprep.subr.bf16.mxu0 0
        %4147 = vmatpush1.bf16.msra.mxu0 %v4067
        %4148 = vmatprep.mubr.bf16.mxu0 %v3848
        %4149 = vmatmul.mubr.bf16.gmra.mrb[0].mxu0 %v3847
        %v4150 = vpop.f32.mrb[0].mxu0
        %v4151 = vadd.f32 %v3922, %v4150
        %v4152 = vpop.f32.mrb[0].mxu0
        %v4153 = vpop.f32.mrb[0].mxu0
        %v4154 = vpop.f32.mrb[0].mxu0
        %4155 = vdwg.mxu0
        %4156 = vmatprep.subr.bf16.mxu0 0
        %4157 = vmatpush1.bf16.msra.mxu0 %v4068
        %4158 = vmatprep.subr.bf16.mxu0 0
        %4159 = vmatpush1.bf16.msra.mxu0 %v4069
        %4160 = vmatprep.subr.bf16.mxu0 0
        %4161 = vmatpush1.bf16.msra.mxu0 %v4070
        %4162 = vmatprep.subr.bf16.mxu0 0
        %4163 = vmatpush1.bf16.msra.mxu0 %v4071
        %4164 = vmatprep.subr.bf16.mxu0 0
        %4165 = vmatpush1.bf16.msra.mxu0 %v4072
        %4166 = vmatprep.subr.bf16.mxu0 0
        %4167 = vmatpush1.bf16.msra.mxu0 %v4073
        %4168 = vmatprep.subr.bf16.mxu0 0
        %4169 = vmatpush1.bf16.msra.mxu0 %v4074
        %4170 = vmatprep.subr.bf16.mxu0 0
        %4171 = vmatpush1.bf16.msra.mxu0 %v4075
        %4172 = vmatprep.subr.bf16.mxu0 0
        %4173 = vmatpush1.bf16.msra.mxu0 %v4076
        %4174 = vmatprep.subr.bf16.mxu0 0
        %4175 = vmatpush1.bf16.msra.mxu0 %v4077
        %4176 = vmatprep.subr.bf16.mxu0 0
        %4177 = vmatpush1.bf16.msra.mxu0 %v4078
        %4178 = vmatprep.subr.bf16.mxu0 0
        %4179 = vmatpush1.bf16.msra.mxu0 %v4079
        %4180 = vmatprep.subr.bf16.mxu0 0
        %4181 = vmatpush1.bf16.msra.mxu0 %v4080
        %4182 = vmatprep.subr.bf16.mxu0 0
        %4183 = vmatpush1.bf16.msra.mxu0 %v4081
        %4184 = vmatprep.subr.bf16.mxu0 0
        %4185 = vmatpush1.bf16.msra.mxu0 %v4082
        %4186 = vmatprep.subr.bf16.mxu0 0
        %4187 = vmatpush1.bf16.msra.mxu0 %v4083
        %4188 = vmatprep.mubr.bf16.mxu0 %v3850
        %4189 = vmatmul.mubr.bf16.gmra.mrb[0].mxu0 %v3849
        %v4190 = vpop.f32.mrb[0].mxu0
        %v4191 = vadd.f32 %v4151, %v4190
        %v4192 = vpop.f32.mrb[0].mxu0
        %v4193 = vpop.f32.mrb[0].mxu0
        %v4194 = vpop.f32.mrb[0].mxu0
        %4195 = vdwg.mxu0
        %v4196 = vadd.f32 %v3486, %v4191
        %v4197 = vld [vmem:[#allocation8] sm:$0x1]
        %v4199 = vlaneseq
        %v4200 = vshrl.u32 %v4199, 7
        %v4201 = vsub.s32 0, %v4200
        %v4202 = vrot.slane %v4197, %v4201
        %v4204 = vmul.f32 %v4202, %v4196
        %4205 = vst [vmem:[%s669] sm:$0xff] %v4204
        %s4206 = sand.u32 %s435, 1
        %s4207 = scalar_lea.sflag [#allocation4], %s4206
        %s4208 = sand.u32 %s435, 1
        %s4209 = smul.addr %s4208, 8
        %s4210 = scalar_lea.vmem [#allocation11], %s4209
        // Predicated region
        $region113: #{tpu_custom_call.1} parent=91 // pred_check
          %p4211 = pneg %p445
        $region114: #{tpu_custom_call.1} parent=91 // pred_check_branch
          %4213 = sbr.rel (%p4211) target = $region116
        $region115: #{tpu_custom_call.1} parent=91 // pred_region
          %s4215 = ssub.s32 128, 128
          %4216 = vsyncadd %s4207, %s4215
          %s4217 = smul.addr %s39, 128
          %s4218 = scalar_lea.hbm %s18, %s4217
          %s4220 = sshll.u32 %s4210, 4
          %s4221 = int_to_ptr.vmem [resolvable:$true] %s4220
          %4223 = dma.vmem_to_hbm [thread:$0]  %s4221, 128, %s4218, %s4207
        $region116: #{tpu_custom_call.1} parent=91 // pred_fallthru
          _
      $region92: #{tpu_custom_call.1} parent=5 // pred_fallthru
        _
      %p4224 = scmp.le.s32.totalorder 2, %s34
      // Predicated region
      $region117: #{tpu_custom_call.1} parent=5 // pred_check
        %p4225 = pneg %p4224
      $region118: #{tpu_custom_call.1} parent=5 // pred_check_branch
        %4227 = sbr.rel (%p4225) target = $region120
      $region119: #{tpu_custom_call.1} parent=5 // pred_region
        %s4228 = ssub.s32 %s34, 2
        // Predicated region
        $region121: #{tpu_custom_call.1} parent=119 // pred_check
          %p4229 = pneg %p451
        $region122: #{tpu_custom_call.1} parent=119 // pred_check_branch
          %4231 = sbr.rel (%p4229) target = $region124
        $region123: #{tpu_custom_call.1} parent=119 // pred_region
          %s4232 = sand.u32 %s436, 1
          %s4233 = scalar_lea.sflag [#allocation4], %s4232
          %s4234 = sand.u32 %s436, 1
          %s4235 = smul.addr %s4234, 8
          %s4236 = scalar_lea.vmem [#allocation11], %s4235
          %4237 = dma.done %s4233, 128
        $region124: #{tpu_custom_call.1} parent=119 // pred_fallthru
          _
      $region120: #{tpu_custom_call.1} parent=5 // pred_fallthru
        _
    $region6: #{tpu_custom_call.1} parent=1 // loop_footer
      %s38 = sadd.s32 1, %s34
    $region7: #{tpu_custom_call.1} parent=1 // loop_footer_branch
      %33 = sbr.rel target = $region3
    $region8: #{tpu_custom_call.1} parent=1 // loop_exit
      _
    %4238 = vsyncpa [#allocation3], 1
    %s4239 = scalar_lea.sflag [#allocation3], 1
    %4240 = vsyncpa %s4239, 1
    %4241 = vsyncpa [#allocation6], 1
    %s4242 = scalar_lea.sflag [#allocation6], 1
    %4243 = vsyncpa %s4242, 1
    %4244 = vsyncpa [#allocation9], 1
    %4245 = vsyncpa [#allocation4], 1
    %s4246 = scalar_lea.sflag [#allocation4], 1
    %4247 = vsyncpa %s4246, 1

</llo_original>
